<compile_context>
chip_gen: v7x
topology: tpu7x:2x2x1
jax: 0.10.0
libtpu: 0.0.40
codegen_flags: <defaults>
</compile_context>

<pallas_src>
import jax
import jax.numpy as jnp
import numpy as np
from jax.experimental import pallas as pl
from jax.experimental.pallas import tpu as pltpu


def _round_up(x, m):
    return ((x + m - 1) // m) * m


def _pad_to(a, size, axis):
    pad = size - a.shape[axis]
    if pad <= 0:
        return a
    widths = [(0, 0)] * a.ndim
    widths[axis] = (0, pad)
    return jnp.pad(a, widths)


def _genrenet_kernel(xt_ref, xa_ref, xv_ref,
                     wt_ref, wa_ref, wv_ref,
                     wqkv_ref, wo_ref, wout_ref,
                     m3_ref, mht3_ref,
                     bqkv_ref, bo_ref, bout_ref,
                     o_ref, z_ref):
    """Full GenreNet forward for one TB-row batch tile."""
    f32 = jnp.float32
    bf16 = jnp.bfloat16
    TB = xt_ref.shape[0]
    D = wo_ref.shape[0]

    # ---- modality encoders: Linear (bias folded into a 1.0 input lane) + ReLU ----
    # TODO(synk): nn.Dropout layers are treated as eval/inference-mode identity.
    def encode(x_ref, w_ref):
        z = jnp.dot(x_ref[...], w_ref[...], preferred_element_type=f32)
        return jnp.maximum(z, 0.0).astype(bf16)

    # write the three modality tokens straight into the (3*TB, D) VMEM scratch
    z_ref[0:TB, :] = encode(xt_ref, wt_ref)
    z_ref[TB:2 * TB, :] = encode(xa_ref, wa_ref)
    z_ref[2 * TB:3 * TB, :] = encode(xv_ref, wv_ref)

    # ---- fused QKV projection over all 3 tokens: (3*TB, D) @ (D, 3D) ----
    qkv = jnp.dot(z_ref[...], wqkv_ref[...],
                  preferred_element_type=f32) + bqkv_ref[...]          # (3TB, 3D) f32

    # token s lives in rows [s*TB, (s+1)*TB); q/k/v at lane offsets 0 / D / 2D
    q = [qkv[s * TB:(s + 1) * TB, 0:D] for s in range(3)]              # scale pre-folded
    k = [qkv[s * TB:(s + 1) * TB, D:2 * D] for s in range(3)]
    v = [qkv[s * TB:(s + 1) * TB, 2 * D:3 * D] for s in range(3)]

    # ---- fused per-head scores: ONE (TB, 3D) @ (3D, Hp) matmul per key token ----
    # lane i*heads + h of s_cat[j] = <q_i, k_j> restricted to head h
    m3 = m3_ref[...]                                                   # (3D, Hp) bf16
    s_cat = []
    for j in range(3):
        qk = jnp.concatenate([(q[0] * k[j]).astype(bf16),
                              (q[1] * k[j]).astype(bf16),
                              (q[2] * k[j]).astype(bf16)], axis=1)     # (TB, 3D)
        s_cat.append(jnp.dot(qk, m3, preferred_element_type=f32))      # (TB, Hp)

    # ---- softmax over key tokens j (per lane = per (query, head)), f32, exact ----
    m = jnp.maximum(jnp.maximum(s_cat[0], s_cat[1]), s_cat[2])
    e = [jnp.exp(s_cat[j] - m) for j in range(3)]
    # 1/3 (sequence mean over query tokens) folded into the normalization
    inv = jnp.float32(1.0 / 3.0) / (e[0] + e[1] + e[2])

    # ---- head->lane broadcast (+ mean over queries) via 0/1 matmul, weight V ----
    # padded lanes of e*inv hit all-zero rows of mht3, so they cannot leak in.
    mht3 = mht3_ref[...]                                               # (Hp, D) bf16
    attn_mean = jnp.zeros((TB, D), f32)
    for j in range(3):
        wfull = jnp.dot((e[j] * inv).astype(bf16), mht3,
                        preferred_element_type=f32)                    # (TB, D)
        attn_mean = attn_mean + wfull * v[j]

    # ---- attention out-projection (sequence mean already folded), final head ----
    y = jnp.dot(attn_mean.astype(bf16), wo_ref[...],
                preferred_element_type=f32) + bo_ref[...]              # (TB, D)
    emb = jnp.dot(y.astype(bf16), wout_ref[...],
                  preferred_element_type=f32) + bout_ref[...]          # (TB, E_pad)
    o_ref[...] = emb


def prepare_params(params, *, heads=4):
    """One-time host-side weight prep (pad / transpose / bf16 / QKV fusion)."""
    D = params["text_w"].shape[0]
    emb_dim = params["head_w"].shape[0]
    assert D % 128 == 0 and D % heads == 0, "D must be a multiple of 128 and heads"
    assert 3 * heads <= 128, "3*heads must fit in one 128-lane block"
    Dh = D // heads

    n_text = params["text_w"].shape[1]
    n_audio = params["audio_w"].shape[1]
    n_vision = params["vision_w"].shape[1]
    # +1 lane reserved for the folded encoder bias
    Ft, Fa, Fv = (_round_up(n + 1, 128) for n in (n_text, n_audio, n_vision))
    E_pad = _round_up(emb_dim, 128)
    Hp = 128

    def enc_w(wname, bname, Fp):            # torch (D, F) -> (Fp, D) bf16, bias row at F
        w = params[wname].astype(jnp.float32).T
        b = params[bname].astype(jnp.float32).reshape(1, D)
        return _pad_to(jnp.concatenate([w, b], axis=0), Fp, 0).astype(jnp.bfloat16)

    wt_t = enc_w("text_w", "text_b", Ft)
    wa_t = enc_w("audio_w", "audio_b", Fa)
    wv_t = enc_w("vision_w", "vision_b", Fv)

    # fused QKV weight, softmax 1/sqrt(Dh) folded into the Q third
    ipw = params["in_proj_weight"].astype(jnp.float32)                 # (3D, D)
    ipb = params["in_proj_bias"].astype(jnp.float32)                   # (3D,)
    scale = 1.0 / float(np.sqrt(Dh))
    wqkv = jnp.concatenate(
        [ipw[0:D].T * scale, ipw[D:2 * D].T, ipw[2 * D:3 * D].T],
        axis=1).astype(jnp.bfloat16)                                   # (D, 3D)
    bqkv = jnp.concatenate(
        [ipb[0:D] * scale, ipb[D:2 * D], ipb[2 * D:3 * D]]).reshape(1, 3 * D)

    wo_t = params["out_proj_weight"].astype(jnp.float32).T.astype(jnp.bfloat16)
    bo = params["out_proj_bias"].astype(jnp.float32).reshape(1, D)
    wout_t = _pad_to(params["head_w"].astype(jnp.float32),
                     E_pad, 0).T.astype(jnp.bfloat16)                  # (D, E_pad)
    bout = _pad_to(params["head_b"].astype(jnp.float32), E_pad, 0).reshape(1, E_pad)

    # lane-shifted head-segment matrices (0/1, exactly representable in bf16):
    #   m3[i*D + d, i*heads + h]   = 1 iff d // Dh == h      (scores)
    #   mht3[i*heads + h, d]       = 1 iff d // Dh == h      (mean-over-i + broadcast)
    m3_np = np.zeros((3 * D, Hp), np.float32)
    mht3_np = np.zeros((Hp, D), np.float32)
    for i in range(3):
        for h in range(heads):
            m3_np[i * D + h * Dh: i * D + (h + 1) * Dh, i * heads + h] = 1.0
            mht3_np[i * heads + h, h * Dh:(h + 1) * Dh] = 1.0
    m3 = jnp.asarray(m3_np).astype(jnp.bfloat16)
    mht3 = jnp.asarray(mht3_np).astype(jnp.bfloat16)

    return dict(heads=heads, D=D, Dh=Dh, emb_dim=emb_dim,
                n_text=n_text, n_audio=n_audio, n_vision=n_vision,
                Ft=Ft, Fa=Fa, Fv=Fv, E_pad=E_pad, Hp=Hp,
                wt=wt_t, wa=wa_t, wv=wv_t, wqkv=wqkv, bqkv=bqkv,
                wo=wo_t, bo=bo, wout=wout_t, bout=bout, m3=m3, mht3=mht3)


def genre_net_forward(xt, xa, xv, prep, *, block_batch=None):
    """GenreNet forward: xt (B, Ft), xa (B, Fa), xv (B, Fv) -> (B, emb_dim)."""
    B = xt.shape[0]
    D, Hp, E_pad = prep["D"], prep["Hp"], prep["E_pad"]
    Ft, Fa, Fv = prep["Ft"], prep["Fa"], prep["Fv"]

    # ---- batch tiling: TB rows per grid step (bf16-native multiple of 16) ----
    if block_batch is None:
        block_batch = 512                     # amortize ~0.35us/step; fits v7x 64 MiB VMEM
        if B >= 256:                          # keep >= 2 grid steps for v7x megacore split
            block_batch = min(block_batch, _round_up(-(-B // 2), 16))
    TB = min(_round_up(block_batch, 16), _round_up(B, 16))
    B_pad = _round_up(B, TB)
    nb = B_pad // TB

    def prep_x(x, Fp):
        x = x.astype(jnp.float32)
        ones = jnp.ones((x.shape[0], 1), jnp.float32)      # bias lane (matches weight row)
        x = _pad_to(jnp.concatenate([x, ones], axis=1), Fp, 1)
        x = _pad_to(x, B_pad, 0)
        return x.astype(jnp.bfloat16)

    xt_p, xa_p, xv_p = prep_x(xt, Ft), prep_x(xa, Fa), prep_x(xv, Fv)

    def xspec(Fp):
        return pl.BlockSpec((TB, Fp), lambda b: (b, 0))

    def cspec(shape):
        # constant-index operand: fetched once, single VMEM buffer (saves VMEM headroom)
        return pl.BlockSpec(shape, lambda b: (0, 0), pipeline_mode=pl.Buffered(1))

    # advisory cost hint for XLA scheduling around the custom call
    macs = (TB * (Ft + Fa + Fv) * D          # encoders
            + 3 * TB * D * 3 * D             # fused QKV
            + 3 * TB * 3 * D * Hp            # fused score matmuls
            + 3 * TB * Hp * D                # head->lane broadcast (+ query mean)
            + TB * D * D                     # attention out-proj
            + TB * D * E_pad)                # final head
    bytes_w = sum(int(np.prod(prep[k].shape)) * 2 for k in
                  ("wt", "wa", "wv", "wqkv", "wo", "wout", "m3", "mht3"))
    cost = pl.CostEstimate(
        flops=int(2 * nb * macs),
        transcendentals=int(nb * TB * 4 * Hp),
        bytes_accessed=int((xt_p.size + xa_p.size + xv_p.size) * 2
                           + bytes_w + B_pad * E_pad * 4))

    out = pl.pallas_call(
        _genrenet_kernel,
        out_shape=jax.ShapeDtypeStruct((B_pad, E_pad), jnp.float32),
        grid_spec=pltpu.PrefetchScalarGridSpec(
            num_scalar_prefetch=0,
            grid=(nb,),
            in_specs=[
                xspec(Ft), xspec(Fa), xspec(Fv),
                cspec((Ft, D)), cspec((Fa, D)), cspec((Fv, D)),
                cspec((D, 3 * D)), cspec((D, D)), cspec((D, E_pad)),
                cspec((3 * D, Hp)), cspec((Hp, D)),
                cspec((1, 3 * D)), cspec((1, D)), cspec((1, E_pad)),
            ],
            out_specs=pl.BlockSpec((TB, E_pad), lambda b: (b, 0)),
            scratch_shapes=[pltpu.VMEM((3 * TB, D), jnp.bfloat16)],
        ),
        compiler_params=pltpu.CompilerParams(
            dimension_semantics=("parallel",),
            vmem_limit_bytes=48 * 1024 * 1024),
        cost_estimate=cost,
    )(xt_p, xa_p, xv_p, prep["wt"], prep["wa"], prep["wv"],
      prep["wqkv"], prep["wo"], prep["wout"], prep["m3"], prep["mht3"],
      prep["bqkv"], prep["bo"], prep["bout"])

    return out[:B, :prep["emb_dim"]]


def _reference(xt, xa, xv, params, *, heads=4):
    """Pure-JAX float32 reimplementation of the PyTorch GenreNet forward (eval mode)."""
    D = params["text_w"].shape[0]
    Dh = D // heads
    B = xt.shape[0]

    zt = jax.nn.relu(xt @ params["text_w"].T + params["text_b"])
    za = jax.nn.relu(xa @ params["audio_w"].T + params["audio_b"])
    zv = jax.nn.relu(xv @ params["vision_w"].T + params["vision_b"])

    x = jnp.stack([zt, za, zv], axis=1)                                 # (B, 3, D)
    ipw, ipb = params["in_proj_weight"], params["in_proj_bias"]
    q = x @ ipw[0:D].T + ipb[0:D]
    k = x @ ipw[D:2 * D].T + ipb[D:2 * D]
    v = x @ ipw[2 * D:3 * D].T + ipb[2 * D:3 * D]

    def split(t):                                                       # -> (B, H, 3, Dh)
        return t.reshape(B, 3, heads, Dh).transpose(0, 2, 1, 3)

    qh, kh, vh = split(q), split(k), split(v)
    s = jnp.einsum("bhqd,bhkd->bhqk", qh, kh) / jnp.sqrt(jnp.float32(Dh))
    pm = jax.nn.softmax(s, axis=-1)
    o = jnp.einsum("bhqk,bhkd->bhqd", pm, vh).transpose(0, 2, 1, 3).reshape(B, 3, D)
    y = o @ params["out_proj_weight"].T + params["out_proj_bias"]
    fused = y.mean(axis=1)
    return fused @ params["head_w"].T + params["head_b"]


def _init_params(key, n_text, n_audio, n_vision, D, emb_dim):
    ks = jax.random.split(key, 12)

    def w(k, shape, s=0.1):
        return s * jax.random.normal(k, shape, jnp.float32)

    return {
        "text_w": w(ks[0], (D, n_text)), "text_b": w(ks[1], (D,)),
        "audio_w": w(ks[2], (D, n_audio)), "audio_b": w(ks[3], (D,)),
        "vision_w": w(ks[4], (D, n_vision)), "vision_b": w(ks[5], (D,)),
        "in_proj_weight": w(ks[6], (3 * D, D)), "in_proj_bias": w(ks[7], (3 * D,)),
        "out_proj_weight": w(ks[8], (D, D)), "out_proj_bias": w(ks[9], (D,)),
        "head_w": w(ks[10], (emb_dim, D)), "head_b": w(ks[11], (emb_dim,)),
    }


if __name__ == "__main__":
    B, D, H, emb_dim = 20, 256, 4, 32
    n_text, n_audio, n_vision = 64, 43, 48

    key = jax.random.PRNGKey(0)
    kt, ka, kv, kp = jax.random.split(key, 4)
    xt = jax.random.normal(kt, (B, n_text), jnp.float32)
    xa = jax.random.normal(ka, (B, n_audio), jnp.float32)
    xv = jax.random.normal(kv, (B, n_vision), jnp.float32)
    params = _init_params(kp, n_text, n_audio, n_vision, D, emb_dim)

    prep = prepare_params(params, heads=H)
    # block_batch=16 exercises multi-step batch tiling + padding at this small B (nb=2).
    out = genre_net_forward(xt, xa, xv, prep, block_batch=16)
    out = jax.block_until_ready(out)

    ref = _reference(xt, xa, xv, params, heads=H)
    # Tolerance relaxed because all MXU matmul inputs are bf16 (f32 accumulation).
    np.testing.assert_allclose(np.asarray(out), np.asarray(ref), rtol=1e-1, atol=1e-1)

    print("KERNEL_OK")
</pallas_src>

<mosaic_0001>
module attributes {stable_mosaic.version = 11 : i64} {
  func.func @_genrenet_kernel(%arg0: i32, %arg1: memref<16x128xbf16, #tpu.memory_space<vmem>>, %arg2: memref<16x128xbf16, #tpu.memory_space<vmem>>, %arg3: memref<16x128xbf16, #tpu.memory_space<vmem>>, %arg4: memref<128x256xbf16, #tpu.memory_space<vmem>>, %arg5: memref<128x256xbf16, #tpu.memory_space<vmem>>, %arg6: memref<128x256xbf16, #tpu.memory_space<vmem>>, %arg7: memref<256x768xbf16, #tpu.memory_space<vmem>>, %arg8: memref<256x256xbf16, #tpu.memory_space<vmem>>, %arg9: memref<256x128xbf16, #tpu.memory_space<vmem>>, %arg10: memref<768x128xbf16, #tpu.memory_space<vmem>>, %arg11: memref<128x256xbf16, #tpu.memory_space<vmem>>, %arg12: memref<1x768xf32, #tpu.memory_space<vmem>>, %arg13: memref<1x256xf32, #tpu.memory_space<vmem>>, %arg14: memref<1x128xf32, #tpu.memory_space<vmem>>, %arg15: memref<16x128xf32, #tpu.memory_space<vmem>>, %arg16: memref<48x256xbf16, #tpu.memory_space<vmem>>) attributes {dimension_semantics = [#tpu.dimension_semantics<parallel>], iteration_bounds = array<i64: 2>, scalar_prefetch = 0 : i64, scratch_operands = 1 : i64, tpu.core_type = #tpu.core_type<tc>, window_params = [{transform_indices = @transform_0, window_bounds = array<i64: 16, 128>}, {transform_indices = @transform_1, window_bounds = array<i64: 16, 128>}, {transform_indices = @transform_2, window_bounds = array<i64: 16, 128>}, {pipeline_mode = #tpu.pipeline_mode<synchronous>, transform_indices = @transform_3, window_bounds = array<i64: 128, 256>}, {pipeline_mode = #tpu.pipeline_mode<synchronous>, transform_indices = @transform_4, window_bounds = array<i64: 128, 256>}, {pipeline_mode = #tpu.pipeline_mode<synchronous>, transform_indices = @transform_5, window_bounds = array<i64: 128, 256>}, {pipeline_mode = #tpu.pipeline_mode<synchronous>, transform_indices = @transform_6, window_bounds = array<i64: 256, 768>}, {pipeline_mode = #tpu.pipeline_mode<synchronous>, transform_indices = @transform_7, window_bounds = array<i64: 256, 256>}, {pipeline_mode = #tpu.pipeline_mode<synchronous>, transform_indices = @transform_8, window_bounds = array<i64: 256, 128>}, {pipeline_mode = #tpu.pipeline_mode<synchronous>, transform_indices = @transform_9, window_bounds = array<i64: 768, 128>}, {pipeline_mode = #tpu.pipeline_mode<synchronous>, transform_indices = @transform_10, window_bounds = array<i64: 128, 256>}, {pipeline_mode = #tpu.pipeline_mode<synchronous>, transform_indices = @transform_11, window_bounds = array<i64: 1, 768>}, {pipeline_mode = #tpu.pipeline_mode<synchronous>, transform_indices = @transform_12, window_bounds = array<i64: 1, 256>}, {pipeline_mode = #tpu.pipeline_mode<synchronous>, transform_indices = @transform_13, window_bounds = array<i64: 1, 128>}, {transform_indices = @transform_14, window_bounds = array<i64: 16, 128>}]} {
    %c0 = arith.constant 0 : index
    %c0_0 = arith.constant 0 : index
    %0 = vector.load %arg1[%c0, %c0_0] : memref<16x128xbf16, #tpu.memory_space<vmem>>, vector<16x128xbf16>
    %c0_1 = arith.constant 0 : index
    %c0_2 = arith.constant 0 : index
    %1 = vector.load %arg4[%c0_1, %c0_2] : memref<128x256xbf16, #tpu.memory_space<vmem>>, vector<128x256xbf16>
    %cst = arith.constant dense<0.000000e+00> : vector<16x256xf32>
    %2 = tpu.matmul %0, %1, %cst {dimension_numbers = #tpu.dot_dimension_numbers<[1], [0], [0], [1], [0, 0, 1, 1], [], []>} : vector<16x128xbf16>, vector<128x256xbf16>, vector<16x256xf32> -> vector<16x256xf32>
    %cst_3 = arith.constant 0.000000e+00 : f32
    %3 = vector.broadcast %cst_3 : f32 to vector<16x256xf32>
    %4 = arith.maximumf %2, %3 : vector<16x256xf32>
    %5 = arith.truncf %4 : vector<16x256xf32> to vector<16x256xbf16>
    %c0_4 = arith.constant 0 : index
    %c0_5 = arith.constant 0 : index
    %6 = vector.load %arg16[%c0_4, %c0_5] : memref<48x256xbf16, #tpu.memory_space<vmem>>, vector<16x256xbf16>
    tpu.vector_store %arg16[%c0_4, %c0_5], %5 {strides = array<i32>} : memref<48x256xbf16, #tpu.memory_space<vmem>>, vector<16x256xbf16>,
    %c0_6 = arith.constant 0 : index
    %c0_7 = arith.constant 0 : index
    %7 = vector.load %arg2[%c0_6, %c0_7] : memref<16x128xbf16, #tpu.memory_space<vmem>>, vector<16x128xbf16>
    %c0_8 = arith.constant 0 : index
    %c0_9 = arith.constant 0 : index
    %8 = vector.load %arg5[%c0_8, %c0_9] : memref<128x256xbf16, #tpu.memory_space<vmem>>, vector<128x256xbf16>
    %cst_10 = arith.constant dense<0.000000e+00> : vector<16x256xf32>
    %9 = tpu.matmul %7, %8, %cst_10 {dimension_numbers = #tpu.dot_dimension_numbers<[1], [0], [0], [1], [0, 0, 1, 1], [], []>} : vector<16x128xbf16>, vector<128x256xbf16>, vector<16x256xf32> -> vector<16x256xf32>
    %cst_11 = arith.constant 0.000000e+00 : f32
    %10 = vector.broadcast %cst_11 : f32 to vector<16x256xf32>
    %11 = arith.maximumf %9, %10 : vector<16x256xf32>
    %12 = arith.truncf %11 : vector<16x256xf32> to vector<16x256xbf16>
    %c16 = arith.constant 16 : index
    %c0_12 = arith.constant 0 : index
    %13 = vector.load %arg16[%c16, %c0_12] : memref<48x256xbf16, #tpu.memory_space<vmem>>, vector<16x256xbf16>
    tpu.vector_store %arg16[%c16, %c0_12], %12 {strides = array<i32>} : memref<48x256xbf16, #tpu.memory_space<vmem>>, vector<16x256xbf16>,
    %c0_13 = arith.constant 0 : index
    %c0_14 = arith.constant 0 : index
    %14 = vector.load %arg3[%c0_13, %c0_14] : memref<16x128xbf16, #tpu.memory_space<vmem>>, vector<16x128xbf16>
    %c0_15 = arith.constant 0 : index
    %c0_16 = arith.constant 0 : index
    %15 = vector.load %arg6[%c0_15, %c0_16] : memref<128x256xbf16, #tpu.memory_space<vmem>>, vector<128x256xbf16>
    %cst_17 = arith.constant dense<0.000000e+00> : vector<16x256xf32>
    %16 = tpu.matmul %14, %15, %cst_17 {dimension_numbers = #tpu.dot_dimension_numbers<[1], [0], [0], [1], [0, 0, 1, 1], [], []>} : vector<16x128xbf16>, vector<128x256xbf16>, vector<16x256xf32> -> vector<16x256xf32>
    %cst_18 = arith.constant 0.000000e+00 : f32
    %17 = vector.broadcast %cst_18 : f32 to vector<16x256xf32>
    %18 = arith.maximumf %16, %17 : vector<16x256xf32>
    %19 = arith.truncf %18 : vector<16x256xf32> to vector<16x256xbf16>
    %c32 = arith.constant 32 : index
    %c0_19 = arith.constant 0 : index
    %20 = vector.load %arg16[%c32, %c0_19] : memref<48x256xbf16, #tpu.memory_space<vmem>>, vector<16x256xbf16>
    tpu.vector_store %arg16[%c32, %c0_19], %19 {strides = array<i32>} : memref<48x256xbf16, #tpu.memory_space<vmem>>, vector<16x256xbf16>,
    %c0_20 = arith.constant 0 : index
    %c0_21 = arith.constant 0 : index
    %21 = vector.load %arg16[%c0_20, %c0_21] : memref<48x256xbf16, #tpu.memory_space<vmem>>, vector<48x256xbf16>
    %c0_22 = arith.constant 0 : index
    %c0_23 = arith.constant 0 : index
    %22 = vector.load %arg7[%c0_22, %c0_23] : memref<256x768xbf16, #tpu.memory_space<vmem>>, vector<256x768xbf16>
    %cst_24 = arith.constant dense<0.000000e+00> : vector<48x768xf32>
    %23 = tpu.matmul %21, %22, %cst_24 {dimension_numbers = #tpu.dot_dimension_numbers<[1], [0], [0], [1], [0, 0, 1, 1], [], []>} : vector<48x256xbf16>, vector<256x768xbf16>, vector<48x768xf32> -> vector<48x768xf32>
    %c0_25 = arith.constant 0 : index
    %c0_26 = arith.constant 0 : index
    %24 = vector.load %arg12[%c0_25, %c0_26] : memref<1x768xf32, #tpu.memory_space<vmem>>, vector<1x768xf32>
    %25 = vector.broadcast %24 : vector<1x768xf32> to vector<48x768xf32>
    %26 = arith.addf %23, %25 : vector<48x768xf32>
    %27 = vector.extract_strided_slice %26 {offsets = [0, 0], sizes = [16, 256], strides = [1, 1]} : vector<48x768xf32> to vector<16x256xf32>
    %28 = vector.extract_strided_slice %26 {offsets = [16, 0], sizes = [16, 256], strides = [1, 1]} : vector<48x768xf32> to vector<16x256xf32>
    %29 = vector.extract_strided_slice %26 {offsets = [32, 0], sizes = [16, 256], strides = [1, 1]} : vector<48x768xf32> to vector<16x256xf32>
    %30 = vector.extract_strided_slice %26 {offsets = [0, 256], sizes = [16, 256], strides = [1, 1]} : vector<48x768xf32> to vector<16x256xf32>
    %31 = vector.extract_strided_slice %26 {offsets = [16, 256], sizes = [16, 256], strides = [1, 1]} : vector<48x768xf32> to vector<16x256xf32>
    %32 = vector.extract_strided_slice %26 {offsets = [32, 256], sizes = [16, 256], strides = [1, 1]} : vector<48x768xf32> to vector<16x256xf32>
    %33 = vector.extract_strided_slice %26 {offsets = [0, 512], sizes = [16, 256], strides = [1, 1]} : vector<48x768xf32> to vector<16x256xf32>
    %34 = vector.extract_strided_slice %26 {offsets = [16, 512], sizes = [16, 256], strides = [1, 1]} : vector<48x768xf32> to vector<16x256xf32>
    %35 = vector.extract_strided_slice %26 {offsets = [32, 512], sizes = [16, 256], strides = [1, 1]} : vector<48x768xf32> to vector<16x256xf32>
    %c0_27 = arith.constant 0 : index
    %c0_28 = arith.constant 0 : index
    %36 = vector.load %arg10[%c0_27, %c0_28] : memref<768x128xbf16, #tpu.memory_space<vmem>>, vector<768x128xbf16>
    %37 = arith.mulf %27, %30 : vector<16x256xf32>
    %38 = arith.truncf %37 : vector<16x256xf32> to vector<16x256xbf16>
    %39 = arith.mulf %28, %30 : vector<16x256xf32>
    %40 = arith.truncf %39 : vector<16x256xf32> to vector<16x256xbf16>
    %41 = arith.mulf %29, %30 : vector<16x256xf32>
    %42 = arith.truncf %41 : vector<16x256xf32> to vector<16x256xbf16>
    %43 = tpu.concatenate %38, %40, %42 in 1 : vector<16x256xbf16>, vector<16x256xbf16>, vector<16x256xbf16> -> vector<16x768xbf16>
    %cst_29 = arith.constant dense<0.000000e+00> : vector<16x128xf32>
    %44 = tpu.matmul %43, %36, %cst_29 {dimension_numbers = #tpu.dot_dimension_numbers<[1], [0], [0], [1], [0, 0, 1, 1], [], []>} : vector<16x768xbf16>, vector<768x128xbf16>, vector<16x128xf32> -> vector<16x128xf32>
    %45 = arith.mulf %27, %31 : vector<16x256xf32>
    %46 = arith.truncf %45 : vector<16x256xf32> to vector<16x256xbf16>
    %47 = arith.mulf %28, %31 : vector<16x256xf32>
    %48 = arith.truncf %47 : vector<16x256xf32> to vector<16x256xbf16>
    %49 = arith.mulf %29, %31 : vector<16x256xf32>
    %50 = arith.truncf %49 : vector<16x256xf32> to vector<16x256xbf16>
    %51 = tpu.concatenate %46, %48, %50 in 1 : vector<16x256xbf16>, vector<16x256xbf16>, vector<16x256xbf16> -> vector<16x768xbf16>
    %cst_30 = arith.constant dense<0.000000e+00> : vector<16x128xf32>
    %52 = tpu.matmul %51, %36, %cst_30 {dimension_numbers = #tpu.dot_dimension_numbers<[1], [0], [0], [1], [0, 0, 1, 1], [], []>} : vector<16x768xbf16>, vector<768x128xbf16>, vector<16x128xf32> -> vector<16x128xf32>
    %53 = arith.mulf %27, %32 : vector<16x256xf32>
    %54 = arith.truncf %53 : vector<16x256xf32> to vector<16x256xbf16>
    %55 = arith.mulf %28, %32 : vector<16x256xf32>
    %56 = arith.truncf %55 : vector<16x256xf32> to vector<16x256xbf16>
    %57 = arith.mulf %29, %32 : vector<16x256xf32>
    %58 = arith.truncf %57 : vector<16x256xf32> to vector<16x256xbf16>
    %59 = tpu.concatenate %54, %56, %58 in 1 : vector<16x256xbf16>, vector<16x256xbf16>, vector<16x256xbf16> -> vector<16x768xbf16>
    %cst_31 = arith.constant dense<0.000000e+00> : vector<16x128xf32>
    %60 = tpu.matmul %59, %36, %cst_31 {dimension_numbers = #tpu.dot_dimension_numbers<[1], [0], [0], [1], [0, 0, 1, 1], [], []>} : vector<16x768xbf16>, vector<768x128xbf16>, vector<16x128xf32> -> vector<16x128xf32>
    %61 = arith.maximumf %44, %52 : vector<16x128xf32>
    %62 = arith.maximumf %61, %60 : vector<16x128xf32>
    %63 = arith.subf %44, %62 : vector<16x128xf32>
    %64 = math.exp %63 : vector<16x128xf32>
    %65 = arith.subf %52, %62 : vector<16x128xf32>
    %66 = math.exp %65 : vector<16x128xf32>
    %67 = arith.subf %60, %62 : vector<16x128xf32>
    %68 = math.exp %67 : vector<16x128xf32>
    %69 = arith.addf %64, %66 : vector<16x128xf32>
    %70 = arith.addf %69, %68 : vector<16x128xf32>
    %cst_32 = arith.constant 0.333333343 : f32
    %71 = vector.broadcast %cst_32 : f32 to vector<16x128xf32>
    %72 = arith.divf %71, %70 : vector<16x128xf32>
    %c0_33 = arith.constant 0 : index
    %c0_34 = arith.constant 0 : index
    %73 = vector.load %arg11[%c0_33, %c0_34] : memref<128x256xbf16, #tpu.memory_space<vmem>>, vector<128x256xbf16>
    %cst_35 = arith.constant 0.000000e+00 : f32
    %74 = vector.broadcast %cst_35 : f32 to vector<16x256xf32>
    %75 = arith.mulf %64, %72 : vector<16x128xf32>
    %76 = arith.truncf %75 : vector<16x128xf32> to vector<16x128xbf16>
    %cst_36 = arith.constant dense<0.000000e+00> : vector<16x256xf32>
    %77 = tpu.matmul %76, %73, %cst_36 {dimension_numbers = #tpu.dot_dimension_numbers<[1], [0], [0], [1], [0, 0, 1, 1], [], []>} : vector<16x128xbf16>, vector<128x256xbf16>, vector<16x256xf32> -> vector<16x256xf32>
    %78 = arith.mulf %77, %33 : vector<16x256xf32>
    %79 = arith.addf %74, %78 : vector<16x256xf32>
    %80 = arith.mulf %66, %72 : vector<16x128xf32>
    %81 = arith.truncf %80 : vector<16x128xf32> to vector<16x128xbf16>
    %cst_37 = arith.constant dense<0.000000e+00> : vector<16x256xf32>
    %82 = tpu.matmul %81, %73, %cst_37 {dimension_numbers = #tpu.dot_dimension_numbers<[1], [0], [0], [1], [0, 0, 1, 1], [], []>} : vector<16x128xbf16>, vector<128x256xbf16>, vector<16x256xf32> -> vector<16x256xf32>
    %83 = arith.mulf %82, %34 : vector<16x256xf32>
    %84 = arith.addf %79, %83 : vector<16x256xf32>
    %85 = arith.mulf %68, %72 : vector<16x128xf32>
    %86 = arith.truncf %85 : vector<16x128xf32> to vector<16x128xbf16>
    %cst_38 = arith.constant dense<0.000000e+00> : vector<16x256xf32>
    %87 = tpu.matmul %86, %73, %cst_38 {dimension_numbers = #tpu.dot_dimension_numbers<[1], [0], [0], [1], [0, 0, 1, 1], [], []>} : vector<16x128xbf16>, vector<128x256xbf16>, vector<16x256xf32> -> vector<16x256xf32>
    %88 = arith.mulf %87, %35 : vector<16x256xf32>
    %89 = arith.addf %84, %88 : vector<16x256xf32>
    %90 = arith.truncf %89 : vector<16x256xf32> to vector<16x256xbf16>
    %c0_39 = arith.constant 0 : index
    %c0_40 = arith.constant 0 : index
    %91 = vector.load %arg8[%c0_39, %c0_40] : memref<256x256xbf16, #tpu.memory_space<vmem>>, vector<256x256xbf16>
    %cst_41 = arith.constant dense<0.000000e+00> : vector<16x256xf32>
    %92 = tpu.matmul %90, %91, %cst_41 {dimension_numbers = #tpu.dot_dimension_numbers<[1], [0], [0], [1], [0, 0, 1, 1], [], []>} : vector<16x256xbf16>, vector<256x256xbf16>, vector<16x256xf32> -> vector<16x256xf32>
    %c0_42 = arith.constant 0 : index
    %c0_43 = arith.constant 0 : index
    %93 = vector.load %arg13[%c0_42, %c0_43] : memref<1x256xf32, #tpu.memory_space<vmem>>, vector<1x256xf32>
    %94 = vector.broadcast %93 : vector<1x256xf32> to vector<16x256xf32>
    %95 = arith.addf %92, %94 : vector<16x256xf32>
    %96 = arith.truncf %95 : vector<16x256xf32> to vector<16x256xbf16>
    %c0_44 = arith.constant 0 : index
    %c0_45 = arith.constant 0 : index
    %97 = vector.load %arg9[%c0_44, %c0_45] : memref<256x128xbf16, #tpu.memory_space<vmem>>, vector<256x128xbf16>
    %cst_46 = arith.constant dense<0.000000e+00> : vector<16x128xf32>
    %98 = tpu.matmul %96, %97, %cst_46 {dimension_numbers = #tpu.dot_dimension_numbers<[1], [0], [0], [1], [0, 0, 1, 1], [], []>} : vector<16x256xbf16>, vector<256x128xbf16>, vector<16x128xf32> -> vector<16x128xf32>
    %c0_47 = arith.constant 0 : index
    %c0_48 = arith.constant 0 : index
    %99 = vector.load %arg14[%c0_47, %c0_48] : memref<1x128xf32, #tpu.memory_space<vmem>>, vector<1x128xf32>
    %100 = vector.broadcast %99 : vector<1x128xf32> to vector<16x128xf32>
    %101 = arith.addf %98, %100 : vector<16x128xf32>
    %c0_49 = arith.constant 0 : index
    %c0_50 = arith.constant 0 : index
    %102 = vector.load %arg15[%c0_49, %c0_50] : memref<16x128xf32, #tpu.memory_space<vmem>>, vector<16x128xf32>
    tpu.vector_store %arg15[%c0_49, %c0_50], %101 {strides = array<i32>} : memref<16x128xf32, #tpu.memory_space<vmem>>, vector<16x128xf32>,
    return
  }
  func.func @transform_0(%arg0: i32) -> (i32, i32) {
    %c0_i32 = arith.constant 0 : i32
    %c0_i32_0 = arith.constant 0 : i32
    return %arg0, %c0_i32 : i32, i32
  }
  func.func @transform_1(%arg0: i32) -> (i32, i32) {
    %c0_i32 = arith.constant 0 : i32
    %c0_i32_0 = arith.constant 0 : i32
    return %arg0, %c0_i32 : i32, i32
  }
  func.func @transform_2(%arg0: i32) -> (i32, i32) {
    %c0_i32 = arith.constant 0 : i32
    %c0_i32_0 = arith.constant 0 : i32
    return %arg0, %c0_i32 : i32, i32
  }
  func.func @transform_3(%arg0: i32) -> (i32, i32) {
    %c0_i32 = arith.constant 0 : i32
    %c0_i32_0 = arith.constant 0 : i32
    %c0_i32_1 = arith.constant 0 : i32
    return %c0_i32, %c0_i32_0 : i32, i32
  }
  func.func @transform_4(%arg0: i32) -> (i32, i32) {
    %c0_i32 = arith.constant 0 : i32
    %c0_i32_0 = arith.constant 0 : i32
    %c0_i32_1 = arith.constant 0 : i32
    return %c0_i32, %c0_i32_0 : i32, i32
  }
  func.func @transform_5(%arg0: i32) -> (i32, i32) {
    %c0_i32 = arith.constant 0 : i32
    %c0_i32_0 = arith.constant 0 : i32
    %c0_i32_1 = arith.constant 0 : i32
    return %c0_i32, %c0_i32_0 : i32, i32
  }
  func.func @transform_6(%arg0: i32) -> (i32, i32) {
    %c0_i32 = arith.constant 0 : i32
    %c0_i32_0 = arith.constant 0 : i32
    %c0_i32_1 = arith.constant 0 : i32
    return %c0_i32, %c0_i32_0 : i32, i32
  }
  func.func @transform_7(%arg0: i32) -> (i32, i32) {
    %c0_i32 = arith.constant 0 : i32
    %c0_i32_0 = arith.constant 0 : i32
    %c0_i32_1 = arith.constant 0 : i32
    return %c0_i32, %c0_i32_0 : i32, i32
  }
  func.func @transform_8(%arg0: i32) -> (i32, i32) {
    %c0_i32 = arith.constant 0 : i32
    %c0_i32_0 = arith.constant 0 : i32
    %c0_i32_1 = arith.constant 0 : i32
    return %c0_i32, %c0_i32_0 : i32, i32
  }
  func.func @transform_9(%arg0: i32) -> (i32, i32) {
    %c0_i32 = arith.constant 0 : i32
    %c0_i32_0 = arith.constant 0 : i32
    %c0_i32_1 = arith.constant 0 : i32
    return %c0_i32, %c0_i32_0 : i32, i32
  }
  func.func @transform_10(%arg0: i32) -> (i32, i32) {
    %c0_i32 = arith.constant 0 : i32
    %c0_i32_0 = arith.constant 0 : i32
    %c0_i32_1 = arith.constant 0 : i32
    return %c0_i32, %c0_i32_0 : i32, i32
  }
  func.func @transform_11(%arg0: i32) -> (i32, i32) {
    %c0_i32 = arith.constant 0 : i32
    %c0_i32_0 = arith.constant 0 : i32
    %c0_i32_1 = arith.constant 0 : i32
    return %c0_i32, %c0_i32_0 : i32, i32
  }
  func.func @transform_12(%arg0: i32) -> (i32, i32) {
    %c0_i32 = arith.constant 0 : i32
    %c0_i32_0 = arith.constant 0 : i32
    %c0_i32_1 = arith.constant 0 : i32
    return %c0_i32, %c0_i32_0 : i32, i32
  }
  func.func @transform_13(%arg0: i32) -> (i32, i32) {
    %c0_i32 = arith.constant 0 : i32
    %c0_i32_0 = arith.constant 0 : i32
    %c0_i32_1 = arith.constant 0 : i32
    return %c0_i32, %c0_i32_0 : i32, i32
  }
  func.func @transform_14(%arg0: i32) -> (i32, i32) {
    %c0_i32 = arith.constant 0 : i32
    %c0_i32_0 = arith.constant 0 : i32
    return %arg0, %c0_i32 : i32, i32
  }
}

</mosaic_0001>

<llo_original>
// kernel: tpu_custom_call.1
$region0: #{tpu_custom_call.1}
  #allocation0 [shape = 'u32[]', space=smem, size = 0x4, offset = 0x4, fixed_abs, tag = 'smem constant byte address 0x4 - core index']
  #allocation1 [shape = 'u32[144,128]{1,0:T(1,128)}', space=vmem, size = 0x12000, scoped, tag = 'internal scratch']
  #allocation2 [shape = 'bf16[48,256]{1,0:T(16,128)(2,1)}', space=vmem, size = 0x6000, scoped, tag = 'scratch operand']
  %s0 = inlined_call_operand.hbm [shape: bf16[32,128], index: 0, kind: input, shape index: {}]
  %s1 = inlined_call_operand.hbm [shape: bf16[32,128], index: 1, kind: input, shape index: {}]
  %s2 = inlined_call_operand.hbm [shape: bf16[32,128], index: 2, kind: input, shape index: {}]
  %s3 = inlined_call_operand.hbm [shape: bf16[128,256], index: 3, kind: input, shape index: {}]
  %s4 = inlined_call_operand.hbm [shape: bf16[128,256], index: 4, kind: input, shape index: {}]
  %s5 = inlined_call_operand.hbm [shape: bf16[128,256], index: 5, kind: input, shape index: {}]
  %s6 = inlined_call_operand.hbm [shape: bf16[256,768], index: 6, kind: input, shape index: {}]
  %s7 = inlined_call_operand.hbm [shape: bf16[256,256], index: 7, kind: input, shape index: {}]
  %s8 = inlined_call_operand.hbm [shape: bf16[256,128], index: 8, kind: input, shape index: {}]
  %s9 = inlined_call_operand.hbm [shape: bf16[768,128], index: 9, kind: input, shape index: {}]
  %s10 = inlined_call_operand.hbm [shape: bf16[128,256], index: 10, kind: input, shape index: {}]
  %s11 = inlined_call_operand.vmem [shape: f32[1,768], index: 11, kind: input, shape index: {}]
  %s12 = inlined_call_operand.vmem [shape: f32[1,256], index: 12, kind: input, shape index: {}]
  %s13 = inlined_call_operand.vmem [shape: f32[1,128], index: 13, kind: input, shape index: {}]
  %s14 = inlined_call_operand.hbm [shape: f32[32,128], index: 14, kind: output, shape index: {}]
  %s15 = sld [smem:[#allocation0]]
  $region133: #{tpu_custom_call.1} parent=0
    _
  %s17 = ssub.s32 1, %s15
  %s18 = scalar_select 0, %s17, %s15
  $region1: #{tpu_custom_call.1} parent=0
    #allocation3 [shape = 'u8[8192]{0}', space=vmem, size = 0x2000, scoped, tag = 'input window, operand 0']
    #allocation4 [shape = 's32[2]{0}', space=sflag, size = 0x8, scoped, tag = 'scoped memory for tpu_custom_call.1']
    #allocation5 [shape = 's32[2]{0}', space=sflag, size = 0x8, scoped, tag = 'scoped memory for tpu_custom_call.1']
    #allocation6 [shape = 'u8[8192]{0}', space=vmem, size = 0x2000, scoped, tag = 'input window, operand 1']
    #allocation7 [shape = 's32[2]{0}', space=sflag, size = 0x8, scoped, tag = 'scoped memory for tpu_custom_call.1']
    #allocation8 [shape = 'u8[8192]{0}', space=vmem, size = 0x2000, scoped, tag = 'input window, operand 2']
    #allocation9 [shape = 'u8[65536]{0}', space=vmem, size = 0x10000, scoped, tag = 'input window, operand 3, single buffered']
    #allocation10 [shape = 's32[1]{0}', space=sflag, size = 0x4, scoped, tag = 'scoped memory for tpu_custom_call.1']
    #allocation11 [shape = 'u8[65536]{0}', space=vmem, size = 0x10000, scoped, tag = 'input window, operand 4, single buffered']
    #allocation12 [shape = 'u8[65536]{0}', space=vmem, size = 0x10000, scoped, tag = 'input window, operand 5, single buffered']
    #allocation13 [shape = 's32[1]{0}', space=sflag, size = 0x4, scoped, tag = 'scoped memory for tpu_custom_call.1']
    #allocation14 [shape = 'u8[393216]{0}', space=vmem, size = 0x60000, scoped, tag = 'input window, operand 6, single buffered']
    #allocation15 [shape = 'u8[131072]{0}', space=vmem, size = 0x20000, scoped, tag = 'input window, operand 7, single buffered']
    #allocation16 [shape = 's32[1]{0}', space=sflag, size = 0x4, scoped, tag = 'scoped memory for tpu_custom_call.1']
    #allocation17 [shape = 'u8[65536]{0}', space=vmem, size = 0x10000, scoped, tag = 'input window, operand 8, single buffered']
    #allocation18 [shape = 'u8[196608]{0}', space=vmem, size = 0x30000, scoped, tag = 'input window, operand 9, single buffered']
    #allocation19 [shape = 's32[1]{0}', space=sflag, size = 0x4, scoped, tag = 'scoped memory for tpu_custom_call.1']
    #allocation20 [shape = 'u8[65536]{0}', space=vmem, size = 0x10000, scoped, tag = 'input window, operand 10, single buffered']
    #allocation21 [shape = 'u8[16384]{0}', space=vmem, size = 0x4000, scoped, tag = 'output window, operand 0']
    %19 = vsyncpa [#allocation4], 0
    %s20 = scalar_lea.sflag [#allocation4], 1
    %21 = vsyncpa %s20, 0
    %22 = vsyncpa [#allocation7], 0
    %s23 = scalar_lea.sflag [#allocation7], 1
    %24 = vsyncpa %s23, 0
    %25 = vsyncpa [#allocation10], 0
    %26 = vsyncpa [#allocation13], 0
    %27 = vsyncpa [#allocation16], 0
    %28 = vsyncpa [#allocation19], 0
    %29 = vsyncpa [#allocation5], 0
    %s30 = scalar_lea.sflag [#allocation5], 1
    %31 = vsyncpa %s30, 0
    loop: start=0, step=1, limit=4
    $region2: #{tpu_custom_call.1} parent=1 // loop_pre_header
      _
    $region3: #{tpu_custom_call.1} parent=1 // loop_header
      %s33 = sphi 0, %s37
      %p34 = scmp.ge.s32.totalorder %s33, 4
      %s43 = sphi 0, %s45
      %s46 = sphi 0, %s43
      %s47 = sphi 0, %s46
      %s63 = sphi 0, %s47
      %s69 = sphi 0, %s71
      %s72 = sphi 0, %s69
      %s73 = sphi 0, %s72
      %s89 = sphi 0, %s73
      %s95 = sphi 0, %s97
      %s98 = sphi 0, %s95
      %s99 = sphi 0, %s98
      %s115 = sphi 0, %s99
      %s119 = sphi 0, %s119
      %s121 = sphi 0, %s119
      %s122 = sphi 0, %s121
      %s136 = sphi 0, %s122
      %s140 = sphi 0, %s140
      %s142 = sphi 0, %s140
      %s143 = sphi 0, %s142
      %s157 = sphi 0, %s143
      %s161 = sphi 0, %s161
      %s163 = sphi 0, %s161
      %s164 = sphi 0, %s163
      %s178 = sphi 0, %s164
      %s182 = sphi 0, %s182
      %s184 = sphi 0, %s182
      %s185 = sphi 0, %s184
      %s199 = sphi 0, %s185
      %s203 = sphi 0, %s203
      %s205 = sphi 0, %s203
      %s206 = sphi 0, %s205
      %s220 = sphi 0, %s206
      %s224 = sphi 0, %s224
      %s226 = sphi 0, %s224
      %s227 = sphi 0, %s226
      %s241 = sphi 0, %s227
      %s245 = sphi 0, %s245
      %s247 = sphi 0, %s245
      %s248 = sphi 0, %s247
      %s262 = sphi 0, %s248
      %s266 = sphi 0, %s266
      %s268 = sphi 0, %s266
      %s269 = sphi 0, %s268
      %s283 = sphi 0, %s269
      %s287 = sphi 0, %s287
      %s289 = sphi 0, %s287
      %s290 = sphi 0, %s289
      %s304 = sphi 0, %s290
      %s308 = sphi 0, %s308
      %s310 = sphi 0, %s308
      %s311 = sphi 0, %s310
      %s325 = sphi 0, %s311
      %s329 = sphi 0, %s329
      %s331 = sphi 0, %s329
      %s332 = sphi 0, %s331
      %s346 = sphi 0, %s332
      %s352 = sphi 0, %s354
      %s355 = sphi 0, %s352
      %s356 = sphi 0, %s355
      %s372 = sphi 0, %s356
    $region4: #{tpu_custom_call.1} parent=1 // loop_header_branch
      %36 = sbr.rel (%p34) target = $region8
    $region5: #{tpu_custom_call.1} parent=1 // loop_body
      %s38 = ssub.s32 %s33, 1
      %s39 = ssub.s32 %s33, 2
      %s40 = sadd.s32 %s33, 1
      %s41 = ssub.s32 %s33, %s40
      %p42 = scmp.eq.s32.totalorder %s41, 0
      %s44 = sadd.s32 %s43, 1
      %s45 = scalar_select %p42, %s43, %s44
      %p48 = pneg %p42
      %p49 = scmp.eq.s32.totalorder %s33, 1
      %p50 = por %p48, %p49
      %p51 = scmp.ne.s32.totalorder %s43, %s46
      %p52 = scmp.eq.s32.totalorder %s33, 0
      %p53 = por %p51, %p52
      %p54 = scmp.ne.s32.totalorder %s43, %s46
      %p55 = scmp.eq.s32.totalorder %s38, 1
      %p56 = por %p54, %p55
      %p57 = scmp.ne.s32.totalorder %s46, %s47
      %p58 = scmp.eq.s32.totalorder %s38, 0
      %p59 = por %p57, %p58
      %p60 = scmp.ne.s32.totalorder %s46, %s47
      %p61 = scmp.eq.s32.totalorder %s39, 1
      %p62 = por %p60, %p61
      %p64 = scmp.ne.s32.totalorder %s47, %s63
      %p65 = scmp.eq.s32.totalorder %s39, 0
      %p66 = por %p64, %p65
      %s67 = ssub.s32 %s33, %s40
      %p68 = scmp.eq.s32.totalorder %s67, 0
      %s70 = sadd.s32 %s69, 1
      %s71 = scalar_select %p68, %s69, %s70
      %p74 = pneg %p68
      %p75 = scmp.eq.s32.totalorder %s33, 1
      %p76 = por %p74, %p75
      %p77 = scmp.ne.s32.totalorder %s69, %s72
      %p78 = scmp.eq.s32.totalorder %s33, 0
      %p79 = por %p77, %p78
      %p80 = scmp.ne.s32.totalorder %s69, %s72
      %p81 = scmp.eq.s32.totalorder %s38, 1
      %p82 = por %p80, %p81
      %p83 = scmp.ne.s32.totalorder %s72, %s73
      %p84 = scmp.eq.s32.totalorder %s38, 0
      %p85 = por %p83, %p84
      %p86 = scmp.ne.s32.totalorder %s72, %s73
      %p87 = scmp.eq.s32.totalorder %s39, 1
      %p88 = por %p86, %p87
      %p90 = scmp.ne.s32.totalorder %s73, %s89
      %p91 = scmp.eq.s32.totalorder %s39, 0
      %p92 = por %p90, %p91
      %s93 = ssub.s32 %s33, %s40
      %p94 = scmp.eq.s32.totalorder %s93, 0
      %s96 = sadd.s32 %s95, 1
      %s97 = scalar_select %p94, %s95, %s96
      %p100 = pneg %p94
      %p101 = scmp.eq.s32.totalorder %s33, 1
      %p102 = por %p100, %p101
      %p103 = scmp.ne.s32.totalorder %s95, %s98
      %p104 = scmp.eq.s32.totalorder %s33, 0
      %p105 = por %p103, %p104
      %p106 = scmp.ne.s32.totalorder %s95, %s98
      %p107 = scmp.eq.s32.totalorder %s38, 1
      %p108 = por %p106, %p107
      %p109 = scmp.ne.s32.totalorder %s98, %s99
      %p110 = scmp.eq.s32.totalorder %s38, 0
      %p111 = por %p109, %p110
      %p112 = scmp.ne.s32.totalorder %s98, %s99
      %p113 = scmp.eq.s32.totalorder %s39, 1
      %p114 = por %p112, %p113
      %p116 = scmp.ne.s32.totalorder %s99, %s115
      %p117 = scmp.eq.s32.totalorder %s39, 0
      %p118 = por %p116, %p117
      %s120 = sadd.s32 %s119, 1
      %p123 = scmp.eq.s32.totalorder %s33, 1
      %p124 = scmp.ne.s32.totalorder %s119, %s121
      %p125 = scmp.eq.s32.totalorder %s33, 0
      %p126 = por %p124, %p125
      %p127 = scmp.ne.s32.totalorder %s119, %s121
      %p128 = scmp.eq.s32.totalorder %s38, 1
      %p129 = por %p127, %p128
      %p130 = scmp.ne.s32.totalorder %s121, %s122
      %p131 = scmp.eq.s32.totalorder %s38, 0
      %p132 = por %p130, %p131
      %p133 = scmp.ne.s32.totalorder %s121, %s122
      %p134 = scmp.eq.s32.totalorder %s39, 1
      %p135 = por %p133, %p134
      %p137 = scmp.ne.s32.totalorder %s122, %s136
      %p138 = scmp.eq.s32.totalorder %s39, 0
      %p139 = por %p137, %p138
      %s141 = sadd.s32 %s140, 1
      %p144 = scmp.eq.s32.totalorder %s33, 1
      %p145 = scmp.ne.s32.totalorder %s140, %s142
      %p146 = scmp.eq.s32.totalorder %s33, 0
      %p147 = por %p145, %p146
      %p148 = scmp.ne.s32.totalorder %s140, %s142
      %p149 = scmp.eq.s32.totalorder %s38, 1
      %p150 = por %p148, %p149
      %p151 = scmp.ne.s32.totalorder %s142, %s143
      %p152 = scmp.eq.s32.totalorder %s38, 0
      %p153 = por %p151, %p152
      %p154 = scmp.ne.s32.totalorder %s142, %s143
      %p155 = scmp.eq.s32.totalorder %s39, 1
      %p156 = por %p154, %p155
      %p158 = scmp.ne.s32.totalorder %s143, %s157
      %p159 = scmp.eq.s32.totalorder %s39, 0
      %p160 = por %p158, %p159
      %s162 = sadd.s32 %s161, 1
      %p165 = scmp.eq.s32.totalorder %s33, 1
      %p166 = scmp.ne.s32.totalorder %s161, %s163
      %p167 = scmp.eq.s32.totalorder %s33, 0
      %p168 = por %p166, %p167
      %p169 = scmp.ne.s32.totalorder %s161, %s163
      %p170 = scmp.eq.s32.totalorder %s38, 1
      %p171 = por %p169, %p170
      %p172 = scmp.ne.s32.totalorder %s163, %s164
      %p173 = scmp.eq.s32.totalorder %s38, 0
      %p174 = por %p172, %p173
      %p175 = scmp.ne.s32.totalorder %s163, %s164
      %p176 = scmp.eq.s32.totalorder %s39, 1
      %p177 = por %p175, %p176
      %p179 = scmp.ne.s32.totalorder %s164, %s178
      %p180 = scmp.eq.s32.totalorder %s39, 0
      %p181 = por %p179, %p180
      %s183 = sadd.s32 %s182, 1
      %p186 = scmp.eq.s32.totalorder %s33, 1
      %p187 = scmp.ne.s32.totalorder %s182, %s184
      %p188 = scmp.eq.s32.totalorder %s33, 0
      %p189 = por %p187, %p188
      %p190 = scmp.ne.s32.totalorder %s182, %s184
      %p191 = scmp.eq.s32.totalorder %s38, 1
      %p192 = por %p190, %p191
      %p193 = scmp.ne.s32.totalorder %s184, %s185
      %p194 = scmp.eq.s32.totalorder %s38, 0
      %p195 = por %p193, %p194
      %p196 = scmp.ne.s32.totalorder %s184, %s185
      %p197 = scmp.eq.s32.totalorder %s39, 1
      %p198 = por %p196, %p197
      %p200 = scmp.ne.s32.totalorder %s185, %s199
      %p201 = scmp.eq.s32.totalorder %s39, 0
      %p202 = por %p200, %p201
      %s204 = sadd.s32 %s203, 1
      %p207 = scmp.eq.s32.totalorder %s33, 1
      %p208 = scmp.ne.s32.totalorder %s203, %s205
      %p209 = scmp.eq.s32.totalorder %s33, 0
      %p210 = por %p208, %p209
      %p211 = scmp.ne.s32.totalorder %s203, %s205
      %p212 = scmp.eq.s32.totalorder %s38, 1
      %p213 = por %p211, %p212
      %p214 = scmp.ne.s32.totalorder %s205, %s206
      %p215 = scmp.eq.s32.totalorder %s38, 0
      %p216 = por %p214, %p215
      %p217 = scmp.ne.s32.totalorder %s205, %s206
      %p218 = scmp.eq.s32.totalorder %s39, 1
      %p219 = por %p217, %p218
      %p221 = scmp.ne.s32.totalorder %s206, %s220
      %p222 = scmp.eq.s32.totalorder %s39, 0
      %p223 = por %p221, %p222
      %s225 = sadd.s32 %s224, 1
      %p228 = scmp.eq.s32.totalorder %s33, 1
      %p229 = scmp.ne.s32.totalorder %s224, %s226
      %p230 = scmp.eq.s32.totalorder %s33, 0
      %p231 = por %p229, %p230
      %p232 = scmp.ne.s32.totalorder %s224, %s226
      %p233 = scmp.eq.s32.totalorder %s38, 1
      %p234 = por %p232, %p233
      %p235 = scmp.ne.s32.totalorder %s226, %s227
      %p236 = scmp.eq.s32.totalorder %s38, 0
      %p237 = por %p235, %p236
      %p238 = scmp.ne.s32.totalorder %s226, %s227
      %p239 = scmp.eq.s32.totalorder %s39, 1
      %p240 = por %p238, %p239
      %p242 = scmp.ne.s32.totalorder %s227, %s241
      %p243 = scmp.eq.s32.totalorder %s39, 0
      %p244 = por %p242, %p243
      %s246 = sadd.s32 %s245, 1
      %p249 = scmp.eq.s32.totalorder %s33, 1
      %p250 = scmp.ne.s32.totalorder %s245, %s247
      %p251 = scmp.eq.s32.totalorder %s33, 0
      %p252 = por %p250, %p251
      %p253 = scmp.ne.s32.totalorder %s245, %s247
      %p254 = scmp.eq.s32.totalorder %s38, 1
      %p255 = por %p253, %p254
      %p256 = scmp.ne.s32.totalorder %s247, %s248
      %p257 = scmp.eq.s32.totalorder %s38, 0
      %p258 = por %p256, %p257
      %p259 = scmp.ne.s32.totalorder %s247, %s248
      %p260 = scmp.eq.s32.totalorder %s39, 1
      %p261 = por %p259, %p260
      %p263 = scmp.ne.s32.totalorder %s248, %s262
      %p264 = scmp.eq.s32.totalorder %s39, 0
      %p265 = por %p263, %p264
      %s267 = sadd.s32 %s266, 1
      %p270 = scmp.eq.s32.totalorder %s33, 1
      %p271 = scmp.ne.s32.totalorder %s266, %s268
      %p272 = scmp.eq.s32.totalorder %s33, 0
      %p273 = por %p271, %p272
      %p274 = scmp.ne.s32.totalorder %s266, %s268
      %p275 = scmp.eq.s32.totalorder %s38, 1
      %p276 = por %p274, %p275
      %p277 = scmp.ne.s32.totalorder %s268, %s269
      %p278 = scmp.eq.s32.totalorder %s38, 0
      %p279 = por %p277, %p278
      %p280 = scmp.ne.s32.totalorder %s268, %s269
      %p281 = scmp.eq.s32.totalorder %s39, 1
      %p282 = por %p280, %p281
      %p284 = scmp.ne.s32.totalorder %s269, %s283
      %p285 = scmp.eq.s32.totalorder %s39, 0
      %p286 = por %p284, %p285
      %s288 = sadd.s32 %s287, 1
      %p291 = scmp.eq.s32.totalorder %s33, 1
      %p292 = scmp.ne.s32.totalorder %s287, %s289
      %p293 = scmp.eq.s32.totalorder %s33, 0
      %p294 = por %p292, %p293
      %p295 = scmp.ne.s32.totalorder %s287, %s289
      %p296 = scmp.eq.s32.totalorder %s38, 1
      %p297 = por %p295, %p296
      %p298 = scmp.ne.s32.totalorder %s289, %s290
      %p299 = scmp.eq.s32.totalorder %s38, 0
      %p300 = por %p298, %p299
      %p301 = scmp.ne.s32.totalorder %s289, %s290
      %p302 = scmp.eq.s32.totalorder %s39, 1
      %p303 = por %p301, %p302
      %p305 = scmp.ne.s32.totalorder %s290, %s304
      %p306 = scmp.eq.s32.totalorder %s39, 0
      %p307 = por %p305, %p306
      %s309 = sadd.s32 %s308, 1
      %p312 = scmp.eq.s32.totalorder %s33, 1
      %p313 = scmp.ne.s32.totalorder %s308, %s310
      %p314 = scmp.eq.s32.totalorder %s33, 0
      %p315 = por %p313, %p314
      %p316 = scmp.ne.s32.totalorder %s308, %s310
      %p317 = scmp.eq.s32.totalorder %s38, 1
      %p318 = por %p316, %p317
      %p319 = scmp.ne.s32.totalorder %s310, %s311
      %p320 = scmp.eq.s32.totalorder %s38, 0
      %p321 = por %p319, %p320
      %p322 = scmp.ne.s32.totalorder %s310, %s311
      %p323 = scmp.eq.s32.totalorder %s39, 1
      %p324 = por %p322, %p323
      %p326 = scmp.ne.s32.totalorder %s311, %s325
      %p327 = scmp.eq.s32.totalorder %s39, 0
      %p328 = por %p326, %p327
      %s330 = sadd.s32 %s329, 1
      %p333 = scmp.eq.s32.totalorder %s33, 1
      %p334 = scmp.ne.s32.totalorder %s329, %s331
      %p335 = scmp.eq.s32.totalorder %s33, 0
      %p336 = por %p334, %p335
      %p337 = scmp.ne.s32.totalorder %s329, %s331
      %p338 = scmp.eq.s32.totalorder %s38, 1
      %p339 = por %p337, %p338
      %p340 = scmp.ne.s32.totalorder %s331, %s332
      %p341 = scmp.eq.s32.totalorder %s38, 0
      %p342 = por %p340, %p341
      %p343 = scmp.ne.s32.totalorder %s331, %s332
      %p344 = scmp.eq.s32.totalorder %s39, 1
      %p345 = por %p343, %p344
      %p347 = scmp.ne.s32.totalorder %s332, %s346
      %p348 = scmp.eq.s32.totalorder %s39, 0
      %p349 = por %p347, %p348
      %s350 = ssub.s32 %s33, %s40
      %p351 = scmp.eq.s32.totalorder %s350, 0
      %s353 = sadd.s32 %s352, 1
      %s354 = scalar_select %p351, %s352, %s353
      %p357 = pneg %p351
      %p358 = scmp.eq.s32.totalorder %s33, 1
      %p359 = por %p357, %p358
      %p360 = scmp.ne.s32.totalorder %s352, %s355
      %p361 = scmp.eq.s32.totalorder %s33, 0
      %p362 = por %p360, %p361
      %p363 = scmp.ne.s32.totalorder %s352, %s355
      %p364 = scmp.eq.s32.totalorder %s38, 1
      %p365 = por %p363, %p364
      %p366 = scmp.ne.s32.totalorder %s355, %s356
      %p367 = scmp.eq.s32.totalorder %s38, 0
      %p368 = por %p366, %p367
      %p369 = scmp.ne.s32.totalorder %s355, %s356
      %p370 = scmp.eq.s32.totalorder %s39, 1
      %p371 = por %p369, %p370
      %p373 = scmp.ne.s32.totalorder %s356, %s372
      %p374 = scmp.eq.s32.totalorder %s39, 0
      %p375 = por %p373, %p374
      %p376 = scmp.le.s32.totalorder 1, %s33
      %p377 = scmp.lt.s32.totalorder %s33, 3
      %p378 = pnand %p376, %p377
      %p379 = pneg %p378
      // Predicated region
      $region9: #{tpu_custom_call.1} parent=5 // pred_check
        _
      $region10: #{tpu_custom_call.1} parent=5 // pred_check_branch
        %381 = sbr.rel (%p378) target = $region12
      $region11: #{tpu_custom_call.1} parent=5 // pred_region
        %s382 = ssub.s32 %s33, 1
        // Predicated region
        $region13: #{tpu_custom_call.1} parent=11 // pred_check
          %p383 = pneg %p132
        $region14: #{tpu_custom_call.1} parent=11 // pred_check_branch
          %385 = sbr.rel (%p383) target = $region16
        $region15: #{tpu_custom_call.1} parent=11 // pred_region
          %s387 = ssub.s32 2048, 2048
          %388 = vsyncadd [#allocation10], %s387
          %s389 = sshll.u32 [#allocation9], 4
          %s390 = int_to_ptr.vmem [resolvable:$true] %s389
          %395 = dma.hbm_to_vmem [thread:$0]  %s3, 2048, %s390, [#allocation10], 128, 128, 8
        $region16: #{tpu_custom_call.1} parent=11 // pred_fallthru
          _
        // Predicated region
        $region17: #{tpu_custom_call.1} parent=11 // pred_check
          %p396 = pneg %p153
        $region18: #{tpu_custom_call.1} parent=11 // pred_check_branch
          %398 = sbr.rel (%p396) target = $region20
        $region19: #{tpu_custom_call.1} parent=11 // pred_region
          %s400 = ssub.s32 2048, 2048
          %401 = vsyncadd [#allocation10], %s400
          %s402 = sshll.u32 [#allocation11], 4
          %s403 = int_to_ptr.vmem [resolvable:$true] %s402
          %408 = dma.hbm_to_vmem [thread:$0]  %s4, 2048, %s403, [#allocation10], 128, 128, 8
        $region20: #{tpu_custom_call.1} parent=11 // pred_fallthru
          _
        // Predicated region
        $region21: #{tpu_custom_call.1} parent=11 // pred_check
          %p409 = pneg %p174
        $region22: #{tpu_custom_call.1} parent=11 // pred_check_branch
          %411 = sbr.rel (%p409) target = $region24
        $region23: #{tpu_custom_call.1} parent=11 // pred_region
          %s413 = ssub.s32 2048, 2048
          %414 = vsyncadd [#allocation13], %s413
          %s415 = sshll.u32 [#allocation12], 4
          %s416 = int_to_ptr.vmem [resolvable:$true] %s415
          %421 = dma.hbm_to_vmem [thread:$0]  %s5, 2048, %s416, [#allocation13], 128, 128, 8
        $region24: #{tpu_custom_call.1} parent=11 // pred_fallthru
          _
        // Predicated region
        $region25: #{tpu_custom_call.1} parent=11 // pred_check
          %p422 = pneg %p195
        $region26: #{tpu_custom_call.1} parent=11 // pred_check_branch
          %424 = sbr.rel (%p422) target = $region28
        $region27: #{tpu_custom_call.1} parent=11 // pred_region
          %s426 = ssub.s32 12288, 12288
          %427 = vsyncadd [#allocation13], %s426
          %s428 = sshll.u32 [#allocation14], 4
          %s429 = int_to_ptr.vmem [resolvable:$true] %s428
          %434 = dma.hbm_to_vmem [thread:$0]  %s6, 12288, %s429, [#allocation13], 384, 384, 24
        $region28: #{tpu_custom_call.1} parent=11 // pred_fallthru
          _
        // Predicated region
        $region29: #{tpu_custom_call.1} parent=11 // pred_check
          %p435 = pneg %p216
        $region30: #{tpu_custom_call.1} parent=11 // pred_check_branch
          %437 = sbr.rel (%p435) target = $region32
        $region31: #{tpu_custom_call.1} parent=11 // pred_region
          %s439 = ssub.s32 4096, 4096
          %440 = vsyncadd [#allocation16], %s439
          %s441 = sshll.u32 [#allocation15], 4
          %s442 = int_to_ptr.vmem [resolvable:$true] %s441
          %447 = dma.hbm_to_vmem [thread:$0]  %s7, 4096, %s442, [#allocation16], 128, 128, 8
        $region32: #{tpu_custom_call.1} parent=11 // pred_fallthru
          _
        // Predicated region
        $region33: #{tpu_custom_call.1} parent=11 // pred_check
          %p448 = pneg %p237
        $region34: #{tpu_custom_call.1} parent=11 // pred_check_branch
          %450 = sbr.rel (%p448) target = $region36
        $region35: #{tpu_custom_call.1} parent=11 // pred_region
          %s452 = ssub.s32 2048, 2048
          %453 = vsyncadd [#allocation16], %s452
          %s454 = sshll.u32 [#allocation17], 4
          %s455 = int_to_ptr.vmem [resolvable:$true] %s454
          %460 = dma.hbm_to_vmem [thread:$0]  %s8, 2048, %s455, [#allocation16], 64, 64, 4
        $region36: #{tpu_custom_call.1} parent=11 // pred_fallthru
          _
        // Predicated region
        $region37: #{tpu_custom_call.1} parent=11 // pred_check
          %p461 = pneg %p258
        $region38: #{tpu_custom_call.1} parent=11 // pred_check_branch
          %463 = sbr.rel (%p461) target = $region40
        $region39: #{tpu_custom_call.1} parent=11 // pred_region
          %s465 = ssub.s32 6144, 6144
          %466 = vsyncadd [#allocation19], %s465
          %s467 = sshll.u32 [#allocation18], 4
          %s468 = int_to_ptr.vmem [resolvable:$true] %s467
          %473 = dma.hbm_to_vmem [thread:$0]  %s9, 6144, %s468, [#allocation19], 64, 64, 4
        $region40: #{tpu_custom_call.1} parent=11 // pred_fallthru
          _
        // Predicated region
        $region41: #{tpu_custom_call.1} parent=11 // pred_check
          %p474 = pneg %p279
        $region42: #{tpu_custom_call.1} parent=11 // pred_check_branch
          %476 = sbr.rel (%p474) target = $region44
        $region43: #{tpu_custom_call.1} parent=11 // pred_region
          %s478 = ssub.s32 2048, 2048
          %479 = vsyncadd [#allocation19], %s478
          %s480 = sshll.u32 [#allocation20], 4
          %s481 = int_to_ptr.vmem [resolvable:$true] %s480
          %486 = dma.hbm_to_vmem [thread:$0]  %s10, 2048, %s481, [#allocation19], 128, 128, 8
        $region44: #{tpu_custom_call.1} parent=11 // pred_fallthru
          _
        // Predicated region
        $region45: #{tpu_custom_call.1} parent=11 // pred_check
          %p487 = pneg %p300
        $region46: #{tpu_custom_call.1} parent=11 // pred_check_branch
          %489 = sbr.rel (%p487) target = $region48
        $region47: #{tpu_custom_call.1} parent=11 // pred_region
          _
        $region48: #{tpu_custom_call.1} parent=11 // pred_fallthru
          _
        // Predicated region
        $region49: #{tpu_custom_call.1} parent=11 // pred_check
          %p490 = pneg %p321
        $region50: #{tpu_custom_call.1} parent=11 // pred_check_branch
          %492 = sbr.rel (%p490) target = $region52
        $region51: #{tpu_custom_call.1} parent=11 // pred_region
          _
        $region52: #{tpu_custom_call.1} parent=11 // pred_fallthru
          _
        // Predicated region
        $region53: #{tpu_custom_call.1} parent=11 // pred_check
          %p493 = pneg %p342
        $region54: #{tpu_custom_call.1} parent=11 // pred_check_branch
          %495 = sbr.rel (%p493) target = $region56
        $region55: #{tpu_custom_call.1} parent=11 // pred_region
          _
        $region56: #{tpu_custom_call.1} parent=11 // pred_fallthru
          _
      $region12: #{tpu_custom_call.1} parent=5 // pred_fallthru
        _
      %p496 = scmp.lt.s32.totalorder %s33, 2
      // Predicated region
      $region57: #{tpu_custom_call.1} parent=5 // pred_check
        %p497 = pneg %p496
      $region58: #{tpu_custom_call.1} parent=5 // pred_check_branch
        %499 = sbr.rel (%p497) target = $region60
      $region59: #{tpu_custom_call.1} parent=5 // pred_region
        // Predicated region
        $region61: #{tpu_custom_call.1} parent=59 // pred_check
          %p500 = pneg %p53
        $region62: #{tpu_custom_call.1} parent=59 // pred_check_branch
          %502 = sbr.rel (%p500) target = $region64
        $region63: #{tpu_custom_call.1} parent=59 // pred_region
          %s503 = sand.u32 %s43, 1
          %s504 = scalar_lea.sflag [#allocation4], %s503
          %s505 = sand.u32 %s43, 1
          %s506 = smul.addr %s505, 8
          %s507 = scalar_lea.vmem [#allocation3], %s506
          %s508 = smul.u32 2, %s33
          %s510 = ssub.s32 128, 128
          %511 = vsyncadd %s504, %s510
          %s512 = smul.addr %s508, 64
          %s513 = scalar_lea.hbm %s0, %s512
          %s514 = sshll.u32 %s507, 4
          %s515 = int_to_ptr.vmem [resolvable:$true] %s514
          %520 = dma.hbm_to_vmem [thread:$0]  %s513, 128, %s515, %s504, 64, 64, 4
        $region64: #{tpu_custom_call.1} parent=59 // pred_fallthru
          _
        // Predicated region
        $region65: #{tpu_custom_call.1} parent=59 // pred_check
          %p521 = pneg %p79
        $region66: #{tpu_custom_call.1} parent=59 // pred_check_branch
          %523 = sbr.rel (%p521) target = $region68
        $region67: #{tpu_custom_call.1} parent=59 // pred_region
          %s524 = sand.u32 %s33, 1
          %s525 = scalar_lea.sflag [#allocation7], %s524
          %s526 = sand.u32 %s69, 1
          %s527 = smul.addr %s526, 8
          %s528 = scalar_lea.vmem [#allocation6], %s527
          %s529 = smul.u32 2, %s33
          %s531 = ssub.s32 128, 128
          %532 = vsyncadd %s525, %s531
          %s533 = smul.addr %s529, 64
          %s534 = scalar_lea.hbm %s1, %s533
          %s535 = sshll.u32 %s528, 4
          %s536 = int_to_ptr.vmem [resolvable:$true] %s535
          %541 = dma.hbm_to_vmem [thread:$0]  %s534, 128, %s536, %s525, 64, 64, 4
        $region68: #{tpu_custom_call.1} parent=59 // pred_fallthru
          _
        // Predicated region
        $region69: #{tpu_custom_call.1} parent=59 // pred_check
          %p542 = pneg %p105
        $region70: #{tpu_custom_call.1} parent=59 // pred_check_branch
          %544 = sbr.rel (%p542) target = $region72
        $region71: #{tpu_custom_call.1} parent=59 // pred_region
          %s545 = sand.u32 %s33, 1
          %s546 = scalar_lea.sflag [#allocation7], %s545
          %s547 = sand.u32 %s95, 1
          %s548 = smul.addr %s547, 8
          %s549 = scalar_lea.vmem [#allocation8], %s548
          %s550 = smul.u32 2, %s33
          %s552 = ssub.s32 128, 128
          %553 = vsyncadd %s546, %s552
          %s554 = smul.addr %s550, 64
          %s555 = scalar_lea.hbm %s2, %s554
          %s556 = sshll.u32 %s549, 4
          %s557 = int_to_ptr.vmem [resolvable:$true] %s556
          %562 = dma.hbm_to_vmem [thread:$0]  %s555, 128, %s557, %s546, 64, 64, 4
        $region72: #{tpu_custom_call.1} parent=59 // pred_fallthru
          _
      $region60: #{tpu_custom_call.1} parent=5 // pred_fallthru
        _
      %p563 = scmp.le.s32.totalorder 1, %s33
      %p564 = scmp.lt.s32.totalorder %s33, 3
      %p565 = pnand %p563, %p564
      %p566 = pneg %p565
      // Predicated region
      $region73: #{tpu_custom_call.1} parent=5 // pred_check
        _
      $region74: #{tpu_custom_call.1} parent=5 // pred_check_branch
        %568 = sbr.rel (%p565) target = $region76
      $region75: #{tpu_custom_call.1} parent=5 // pred_region
        %s569 = ssub.s32 %s33, 1
        %s570 = sand.u32 %s46, 1
        %s571 = scalar_lea.sflag [#allocation4], %s570
        %s572 = sand.u32 %s46, 1
        %s573 = smul.addr %s572, 8
        %s574 = scalar_lea.vmem [#allocation3], %s573
        // Predicated region
        $region77: #{tpu_custom_call.1} parent=75 // pred_check
          %p575 = pneg %p59
        $region78: #{tpu_custom_call.1} parent=75 // pred_check_branch
          %577 = sbr.rel (%p575) target = $region80
        $region79: #{tpu_custom_call.1} parent=75 // pred_region
          %578 = dma.done %s571, 128
        $region80: #{tpu_custom_call.1} parent=75 // pred_fallthru
          _
        %s579 = sand.u32 %s38, 1
        %s580 = scalar_lea.sflag [#allocation7], %s579
        %s581 = sand.u32 %s72, 1
        %s582 = smul.addr %s581, 8
        %s583 = scalar_lea.vmem [#allocation6], %s582
        // Predicated region
        $region81: #{tpu_custom_call.1} parent=75 // pred_check
          %p584 = pneg %p85
        $region82: #{tpu_custom_call.1} parent=75 // pred_check_branch
          %586 = sbr.rel (%p584) target = $region84
        $region83: #{tpu_custom_call.1} parent=75 // pred_region
          %587 = dma.done %s580, 128
        $region84: #{tpu_custom_call.1} parent=75 // pred_fallthru
          _
        %s588 = sand.u32 %s38, 1
        %s589 = scalar_lea.sflag [#allocation7], %s588
        %s590 = sand.u32 %s98, 1
        %s591 = smul.addr %s590, 8
        %s592 = scalar_lea.vmem [#allocation8], %s591
        // Predicated region
        $region85: #{tpu_custom_call.1} parent=75 // pred_check
          %p593 = pneg %p111
        $region86: #{tpu_custom_call.1} parent=75 // pred_check_branch
          %595 = sbr.rel (%p593) target = $region88
        $region87: #{tpu_custom_call.1} parent=75 // pred_region
          %596 = dma.done %s589, 128
        $region88: #{tpu_custom_call.1} parent=75 // pred_fallthru
          _
        // Predicated region
        $region89: #{tpu_custom_call.1} parent=75 // pred_check
          %p597 = pneg %p132
        $region90: #{tpu_custom_call.1} parent=75 // pred_check_branch
          %599 = sbr.rel (%p597) target = $region92
        $region91: #{tpu_custom_call.1} parent=75 // pred_region
          %600 = dma.done [#allocation10], 2048
        $region92: #{tpu_custom_call.1} parent=75 // pred_fallthru
          _
        // Predicated region
        $region93: #{tpu_custom_call.1} parent=75 // pred_check
          %p601 = pneg %p153
        $region94: #{tpu_custom_call.1} parent=75 // pred_check_branch
          %603 = sbr.rel (%p601) target = $region96
        $region95: #{tpu_custom_call.1} parent=75 // pred_region
          %604 = dma.done [#allocation10], 2048
        $region96: #{tpu_custom_call.1} parent=75 // pred_fallthru
          _
        // Predicated region
        $region97: #{tpu_custom_call.1} parent=75 // pred_check
          %p605 = pneg %p174
        $region98: #{tpu_custom_call.1} parent=75 // pred_check_branch
          %607 = sbr.rel (%p605) target = $region100
        $region99: #{tpu_custom_call.1} parent=75 // pred_region
          %608 = dma.done [#allocation13], 2048
        $region100: #{tpu_custom_call.1} parent=75 // pred_fallthru
          _
        // Predicated region
        $region101: #{tpu_custom_call.1} parent=75 // pred_check
          %p609 = pneg %p195
        $region102: #{tpu_custom_call.1} parent=75 // pred_check_branch
          %611 = sbr.rel (%p609) target = $region104
        $region103: #{tpu_custom_call.1} parent=75 // pred_region
          %612 = dma.done [#allocation13], 12288
        $region104: #{tpu_custom_call.1} parent=75 // pred_fallthru
          _
        // Predicated region
        $region105: #{tpu_custom_call.1} parent=75 // pred_check
          %p613 = pneg %p216
        $region106: #{tpu_custom_call.1} parent=75 // pred_check_branch
          %615 = sbr.rel (%p613) target = $region108
        $region107: #{tpu_custom_call.1} parent=75 // pred_region
          %616 = dma.done [#allocation16], 4096
        $region108: #{tpu_custom_call.1} parent=75 // pred_fallthru
          _
        // Predicated region
        $region109: #{tpu_custom_call.1} parent=75 // pred_check
          %p617 = pneg %p237
        $region110: #{tpu_custom_call.1} parent=75 // pred_check_branch
          %619 = sbr.rel (%p617) target = $region112
        $region111: #{tpu_custom_call.1} parent=75 // pred_region
          %620 = dma.done [#allocation16], 2048
        $region112: #{tpu_custom_call.1} parent=75 // pred_fallthru
          _
        // Predicated region
        $region113: #{tpu_custom_call.1} parent=75 // pred_check
          %p621 = pneg %p258
        $region114: #{tpu_custom_call.1} parent=75 // pred_check_branch
          %623 = sbr.rel (%p621) target = $region116
        $region115: #{tpu_custom_call.1} parent=75 // pred_region
          %624 = dma.done [#allocation19], 6144
        $region116: #{tpu_custom_call.1} parent=75 // pred_fallthru
          _
        // Predicated region
        $region117: #{tpu_custom_call.1} parent=75 // pred_check
          %p625 = pneg %p279
        $region118: #{tpu_custom_call.1} parent=75 // pred_check_branch
          %627 = sbr.rel (%p625) target = $region120
        $region119: #{tpu_custom_call.1} parent=75 // pred_region
          %628 = dma.done [#allocation19], 2048
        $region120: #{tpu_custom_call.1} parent=75 // pred_fallthru
          _
        %s629 = sand.u32 %s46, 1
        %s630 = scalar_lea.sflag [#allocation4], %s629
        %s631 = sand.u32 %s46, 1
        %s632 = smul.addr %s631, 8
        %s633 = scalar_lea.vmem [#allocation3], %s632
        %p634 = pneg %p59
        %p635 = pneg %p56
        %s636 = sand.u32 %s38, 1
        %s637 = scalar_lea.sflag [#allocation7], %s636
        %s638 = sand.u32 %s72, 1
        %s639 = smul.addr %s638, 8
        %s640 = scalar_lea.vmem [#allocation6], %s639
        %p641 = pneg %p85
        %p642 = pneg %p82
        %s643 = sand.u32 %s38, 1
        %s644 = scalar_lea.sflag [#allocation7], %s643
        %s645 = sand.u32 %s98, 1
        %s646 = smul.addr %s645, 8
        %s647 = scalar_lea.vmem [#allocation8], %s646
        %p648 = pneg %p111
        %p649 = pneg %p108
        %p650 = pneg %p132
        %p651 = pneg %p129
        %p652 = pneg %p153
        %p653 = pneg %p150
        %p654 = pneg %p174
        %p655 = pneg %p171
        %p656 = pneg %p195
        %p657 = pneg %p192
        %p658 = pneg %p216
        %p659 = pneg %p213
        %p660 = pneg %p237
        %p661 = pneg %p234
        %p662 = pneg %p258
        %p663 = pneg %p255
        %p664 = pneg %p279
        %p665 = pneg %p276
        %p666 = pneg %p300
        %p667 = pneg %p297
        %p668 = pneg %p321
        %p669 = pneg %p318
        %p670 = pneg %p342
        %p671 = pneg %p339
        %p672 = pneg %p368
        %p673 = pneg %p365
        %s674 = sand.u32 %s355, 1
        %s675 = scalar_lea.sflag [#allocation5], %s674
        %s676 = sand.u32 %s355, 1
        %s677 = smul.addr %s676, 16
        %s678 = scalar_lea.vmem [#allocation21], %s677
        %s679 = smul.u32 2, %s38
        %s680 = smul.u32 2, %s38
        %s681 = smul.u32 2, %s38
        %s682 = smul.u32 2, %s38
        %v684 = vld [vmem:[%s574] sm:$0xf]
        %v685 = vld [vmem:[%s574 + $0x4] sm:$0xf]
        %v686 = vld [vmem:[#allocation9] sm:$0xff]
        %v687 = vld [vmem:[#allocation9 + $0x8] sm:$0xff]
        %v688 = vld [vmem:[#allocation9 + $0x10] sm:$0xff]
        %v689 = vld [vmem:[#allocation9 + $0x18] sm:$0xff]
        %v690 = vld [vmem:[#allocation9 + $0x20] sm:$0xff]
        %v691 = vld [vmem:[#allocation9 + $0x28] sm:$0xff]
        %v692 = vld [vmem:[#allocation9 + $0x30] sm:$0xff]
        %v693 = vld [vmem:[#allocation9 + $0x38] sm:$0xff]
        %v694 = vld [vmem:[#allocation9 + $0x40] sm:$0xff]
        %v695 = vld [vmem:[#allocation9 + $0x48] sm:$0xff]
        %v696 = vld [vmem:[#allocation9 + $0x50] sm:$0xff]
        %v697 = vld [vmem:[#allocation9 + $0x58] sm:$0xff]
        %v698 = vld [vmem:[#allocation9 + $0x60] sm:$0xff]
        %v699 = vld [vmem:[#allocation9 + $0x68] sm:$0xff]
        %v700 = vld [vmem:[#allocation9 + $0x70] sm:$0xff]
        %v701 = vld [vmem:[#allocation9 + $0x78] sm:$0xff]
        %v704 = vunpack.c.l.b16 %v684
        %v705 = vunpack.c.l.b16 %v685
        %v706 = vpack.c.b16 %v705, %v704
        %v724 = vunpack.c.l.b16 %v686
        %v725 = vunpack.c.h.b16 %v686
        %v726 = vunpack.c.l.b16 %v687
        %v727 = vunpack.c.h.b16 %v687
        %v728 = vunpack.c.l.b16 %v688
        %v729 = vunpack.c.h.b16 %v688
        %v730 = vunpack.c.l.b16 %v689
        %v731 = vunpack.c.h.b16 %v689
        %v732 = vunpack.c.l.b16 %v690
        %v733 = vunpack.c.h.b16 %v690
        %v734 = vunpack.c.l.b16 %v691
        %v735 = vunpack.c.h.b16 %v691
        %v736 = vunpack.c.l.b16 %v692
        %v737 = vunpack.c.h.b16 %v692
        %v738 = vunpack.c.l.b16 %v693
        %v739 = vunpack.c.h.b16 %v693
        %v740 = vunpack.c.l.b16 %v694
        %v741 = vunpack.c.h.b16 %v694
        %v742 = vunpack.c.l.b16 %v695
        %v743 = vunpack.c.h.b16 %v695
        %v744 = vunpack.c.l.b16 %v696
        %v745 = vunpack.c.h.b16 %v696
        %v746 = vunpack.c.l.b16 %v697
        %v747 = vunpack.c.h.b16 %v697
        %v748 = vunpack.c.l.b16 %v698
        %v749 = vunpack.c.h.b16 %v698
        %v750 = vunpack.c.l.b16 %v699
        %v751 = vunpack.c.h.b16 %v699
        %v752 = vunpack.c.l.b16 %v700
        %v753 = vunpack.c.h.b16 %v700
        %v754 = vunpack.c.l.b16 %v701
        %v755 = vunpack.c.h.b16 %v701
        %v756 = vpack.c.b16 %v726, %v724
        %v757 = vpack.c.b16 %v727, %v725
        %v758 = vpack.c.b16 %v730, %v728
        %v759 = vpack.c.b16 %v731, %v729
        %v760 = vpack.c.b16 %v734, %v732
        %v761 = vpack.c.b16 %v735, %v733
        %v762 = vpack.c.b16 %v738, %v736
        %v763 = vpack.c.b16 %v739, %v737
        %v764 = vpack.c.b16 %v742, %v740
        %v765 = vpack.c.b16 %v743, %v741
        %v766 = vpack.c.b16 %v746, %v744
        %v767 = vpack.c.b16 %v747, %v745
        %v768 = vpack.c.b16 %v750, %v748
        %v769 = vpack.c.b16 %v751, %v749
        %v770 = vpack.c.b16 %v754, %v752
        %v771 = vpack.c.b16 %v755, %v753
        %788 = vmatprep.subr.bf16.mxu0 %v757
        %789 = vmatpush1.bf16.msra.mxu0 %v756
        %790 = vmatprep.subr.bf16.mxu0 %v759
        %791 = vmatpush1.bf16.msra.mxu0 %v758
        %792 = vmatprep.subr.bf16.mxu0 %v761
        %793 = vmatpush1.bf16.msra.mxu0 %v760
        %794 = vmatprep.subr.bf16.mxu0 %v763
        %795 = vmatpush1.bf16.msra.mxu0 %v762
        %796 = vmatprep.subr.bf16.mxu0 %v765
        %797 = vmatpush1.bf16.msra.mxu0 %v764
        %798 = vmatprep.subr.bf16.mxu0 %v767
        %799 = vmatpush1.bf16.msra.mxu0 %v766
        %800 = vmatprep.subr.bf16.mxu0 %v769
        %801 = vmatpush1.bf16.msra.mxu0 %v768
        %802 = vmatprep.subr.bf16.mxu0 %v771
        %803 = vmatpush1.bf16.msra.mxu0 %v770
        %804 = vmatprep.subr.bf16.mxu0 0
        %805 = vmatpush1.bf16.msra.mxu0 0
        %806 = vmatprep.subr.bf16.mxu0 0
        %807 = vmatpush1.bf16.msra.mxu0 0
        %808 = vmatprep.subr.bf16.mxu0 0
        %809 = vmatpush1.bf16.msra.mxu0 0
        %810 = vmatprep.subr.bf16.mxu0 0
        %811 = vmatpush1.bf16.msra.mxu0 0
        %812 = vmatprep.subr.bf16.mxu0 0
        %813 = vmatpush1.bf16.msra.mxu0 0
        %814 = vmatprep.subr.bf16.mxu0 0
        %815 = vmatpush1.bf16.msra.mxu0 0
        %816 = vmatprep.subr.bf16.mxu0 0
        %817 = vmatpush1.bf16.msra.mxu0 0
        %818 = vmatprep.subr.bf16.mxu0 0
        %819 = vmatpush1.bf16.msra.mxu0 0
        %820 = vmatprep.mubr.bf16.mxu0 0
        %821 = vmatmul.mubr.bf16.gmra.mrb[0].mxu0 %v706
        %v822 = vpop.f32.mrb[0].mxu0
        %v823 = vadd.f32 0.0, %v822
        %v824 = vpop.f32.mrb[0].mxu0
        %v825 = vadd.f32 0.0, %v824
        %v826 = vpop.f32.mrb[0].mxu0
        %v827 = vadd.f32 0.0, %v826
        %v828 = vpop.f32.mrb[0].mxu0
        %v829 = vadd.f32 0.0, %v828
        %830 = vdwg.mxu0
        %v831 = vmax.f32 %v823, 0.0
        %v832 = vmax.f32 %v825, 0.0
        %v833 = vmax.f32 %v827, 0.0
        %v834 = vmax.f32 %v829, 0.0
        %v835 = vpack.c.bf16 %v833, %v831
        %v836 = vpack.c.bf16 %v834, %v832
        %837 = vst [vmem:[#allocation2] sm:$0xff] %v835
        %838 = vst [vmem:[#allocation2 + $0x8] sm:$0xff] %v836
        %v839 = vld [vmem:[%s583] sm:$0xf]
        %v840 = vld [vmem:[%s583 + $0x4] sm:$0xf]
        %v841 = vld [vmem:[#allocation11] sm:$0xff]
        %v842 = vld [vmem:[#allocation11 + $0x8] sm:$0xff]
        %v843 = vld [vmem:[#allocation11 + $0x10] sm:$0xff]
        %v844 = vld [vmem:[#allocation11 + $0x18] sm:$0xff]
        %v845 = vld [vmem:[#allocation11 + $0x20] sm:$0xff]
        %v846 = vld [vmem:[#allocation11 + $0x28] sm:$0xff]
        %v847 = vld [vmem:[#allocation11 + $0x30] sm:$0xff]
        %v848 = vld [vmem:[#allocation11 + $0x38] sm:$0xff]
        %v849 = vld [vmem:[#allocation11 + $0x40] sm:$0xff]
        %v850 = vld [vmem:[#allocation11 + $0x48] sm:$0xff]
        %v851 = vld [vmem:[#allocation11 + $0x50] sm:$0xff]
        %v852 = vld [vmem:[#allocation11 + $0x58] sm:$0xff]
        %v853 = vld [vmem:[#allocation11 + $0x60] sm:$0xff]
        %v854 = vld [vmem:[#allocation11 + $0x68] sm:$0xff]
        %v855 = vld [vmem:[#allocation11 + $0x70] sm:$0xff]
        %v856 = vld [vmem:[#allocation11 + $0x78] sm:$0xff]
        %v859 = vunpack.c.l.b16 %v839
        %v860 = vunpack.c.l.b16 %v840
        %v861 = vpack.c.b16 %v860, %v859
        %v879 = vunpack.c.l.b16 %v841
        %v880 = vunpack.c.h.b16 %v841
        %v881 = vunpack.c.l.b16 %v842
        %v882 = vunpack.c.h.b16 %v842
        %v883 = vunpack.c.l.b16 %v843
        %v884 = vunpack.c.h.b16 %v843
        %v885 = vunpack.c.l.b16 %v844
        %v886 = vunpack.c.h.b16 %v844
        %v887 = vunpack.c.l.b16 %v845
        %v888 = vunpack.c.h.b16 %v845
        %v889 = vunpack.c.l.b16 %v846
        %v890 = vunpack.c.h.b16 %v846
        %v891 = vunpack.c.l.b16 %v847
        %v892 = vunpack.c.h.b16 %v847
        %v893 = vunpack.c.l.b16 %v848
        %v894 = vunpack.c.h.b16 %v848
        %v895 = vunpack.c.l.b16 %v849
        %v896 = vunpack.c.h.b16 %v849
        %v897 = vunpack.c.l.b16 %v850
        %v898 = vunpack.c.h.b16 %v850
        %v899 = vunpack.c.l.b16 %v851
        %v900 = vunpack.c.h.b16 %v851
        %v901 = vunpack.c.l.b16 %v852
        %v902 = vunpack.c.h.b16 %v852
        %v903 = vunpack.c.l.b16 %v853
        %v904 = vunpack.c.h.b16 %v853
        %v905 = vunpack.c.l.b16 %v854
        %v906 = vunpack.c.h.b16 %v854
        %v907 = vunpack.c.l.b16 %v855
        %v908 = vunpack.c.h.b16 %v855
        %v909 = vunpack.c.l.b16 %v856
        %v910 = vunpack.c.h.b16 %v856
        %v911 = vpack.c.b16 %v881, %v879
        %v912 = vpack.c.b16 %v882, %v880
        %v913 = vpack.c.b16 %v885, %v883
        %v914 = vpack.c.b16 %v886, %v884
        %v915 = vpack.c.b16 %v889, %v887
        %v916 = vpack.c.b16 %v890, %v888
        %v917 = vpack.c.b16 %v893, %v891
        %v918 = vpack.c.b16 %v894, %v892
        %v919 = vpack.c.b16 %v897, %v895
        %v920 = vpack.c.b16 %v898, %v896
        %v921 = vpack.c.b16 %v901, %v899
        %v922 = vpack.c.b16 %v902, %v900
        %v923 = vpack.c.b16 %v905, %v903
        %v924 = vpack.c.b16 %v906, %v904
        %v925 = vpack.c.b16 %v909, %v907
        %v926 = vpack.c.b16 %v910, %v908
        %943 = vmatprep.subr.bf16.mxu0 %v912
        %944 = vmatpush1.bf16.msra.mxu0 %v911
        %945 = vmatprep.subr.bf16.mxu0 %v914
        %946 = vmatpush1.bf16.msra.mxu0 %v913
        %947 = vmatprep.subr.bf16.mxu0 %v916
        %948 = vmatpush1.bf16.msra.mxu0 %v915
        %949 = vmatprep.subr.bf16.mxu0 %v918
        %950 = vmatpush1.bf16.msra.mxu0 %v917
        %951 = vmatprep.subr.bf16.mxu0 %v920
        %952 = vmatpush1.bf16.msra.mxu0 %v919
        %953 = vmatprep.subr.bf16.mxu0 %v922
        %954 = vmatpush1.bf16.msra.mxu0 %v921
        %955 = vmatprep.subr.bf16.mxu0 %v924
        %956 = vmatpush1.bf16.msra.mxu0 %v923
        %957 = vmatprep.subr.bf16.mxu0 %v926
        %958 = vmatpush1.bf16.msra.mxu0 %v925
        %959 = vmatprep.subr.bf16.mxu0 0
        %960 = vmatpush1.bf16.msra.mxu0 0
        %961 = vmatprep.subr.bf16.mxu0 0
        %962 = vmatpush1.bf16.msra.mxu0 0
        %963 = vmatprep.subr.bf16.mxu0 0
        %964 = vmatpush1.bf16.msra.mxu0 0
        %965 = vmatprep.subr.bf16.mxu0 0
        %966 = vmatpush1.bf16.msra.mxu0 0
        %967 = vmatprep.subr.bf16.mxu0 0
        %968 = vmatpush1.bf16.msra.mxu0 0
        %969 = vmatprep.subr.bf16.mxu0 0
        %970 = vmatpush1.bf16.msra.mxu0 0
        %971 = vmatprep.subr.bf16.mxu0 0
        %972 = vmatpush1.bf16.msra.mxu0 0
        %973 = vmatprep.subr.bf16.mxu0 0
        %974 = vmatpush1.bf16.msra.mxu0 0
        %975 = vmatprep.mubr.bf16.mxu0 0
        %976 = vmatmul.mubr.bf16.gmra.mrb[0].mxu0 %v861
        %v977 = vpop.f32.mrb[0].mxu0
        %v978 = vadd.f32 0.0, %v977
        %v979 = vpop.f32.mrb[0].mxu0
        %v980 = vadd.f32 0.0, %v979
        %v981 = vpop.f32.mrb[0].mxu0
        %v982 = vadd.f32 0.0, %v981
        %v983 = vpop.f32.mrb[0].mxu0
        %v984 = vadd.f32 0.0, %v983
        %985 = vdwg.mxu0
        %v986 = vmax.f32 %v978, 0.0
        %v987 = vmax.f32 %v980, 0.0
        %v988 = vmax.f32 %v982, 0.0
        %v989 = vmax.f32 %v984, 0.0
        %v990 = vpack.c.bf16 %v988, %v986
        %v991 = vpack.c.bf16 %v989, %v987
        %992 = vst [vmem:[#allocation2 + $0x10] sm:$0xff] %v990
        %993 = vst [vmem:[#allocation2 + $0x18] sm:$0xff] %v991
        %v994 = vld [vmem:[%s592] sm:$0xf]
        %v995 = vld [vmem:[%s592 + $0x4] sm:$0xf]
        %v996 = vld [vmem:[#allocation12] sm:$0xff]
        %v997 = vld [vmem:[#allocation12 + $0x8] sm:$0xff]
        %v998 = vld [vmem:[#allocation12 + $0x10] sm:$0xff]
        %v999 = vld [vmem:[#allocation12 + $0x18] sm:$0xff]
        %v1000 = vld [vmem:[#allocation12 + $0x20] sm:$0xff]
        %v1001 = vld [vmem:[#allocation12 + $0x28] sm:$0xff]
        %v1002 = vld [vmem:[#allocation12 + $0x30] sm:$0xff]
        %v1003 = vld [vmem:[#allocation12 + $0x38] sm:$0xff]
        %v1004 = vld [vmem:[#allocation12 + $0x40] sm:$0xff]
        %v1005 = vld [vmem:[#allocation12 + $0x48] sm:$0xff]
        %v1006 = vld [vmem:[#allocation12 + $0x50] sm:$0xff]
        %v1007 = vld [vmem:[#allocation12 + $0x58] sm:$0xff]
        %v1008 = vld [vmem:[#allocation12 + $0x60] sm:$0xff]
        %v1009 = vld [vmem:[#allocation12 + $0x68] sm:$0xff]
        %v1010 = vld [vmem:[#allocation12 + $0x70] sm:$0xff]
        %v1011 = vld [vmem:[#allocation12 + $0x78] sm:$0xff]
        %v1014 = vunpack.c.l.b16 %v994
        %v1015 = vunpack.c.l.b16 %v995
        %v1016 = vpack.c.b16 %v1015, %v1014
        %v1034 = vunpack.c.l.b16 %v996
        %v1035 = vunpack.c.h.b16 %v996
        %v1036 = vunpack.c.l.b16 %v997
        %v1037 = vunpack.c.h.b16 %v997
        %v1038 = vunpack.c.l.b16 %v998
        %v1039 = vunpack.c.h.b16 %v998
        %v1040 = vunpack.c.l.b16 %v999
        %v1041 = vunpack.c.h.b16 %v999
        %v1042 = vunpack.c.l.b16 %v1000
        %v1043 = vunpack.c.h.b16 %v1000
        %v1044 = vunpack.c.l.b16 %v1001
        %v1045 = vunpack.c.h.b16 %v1001
        %v1046 = vunpack.c.l.b16 %v1002
        %v1047 = vunpack.c.h.b16 %v1002
        %v1048 = vunpack.c.l.b16 %v1003
        %v1049 = vunpack.c.h.b16 %v1003
        %v1050 = vunpack.c.l.b16 %v1004
        %v1051 = vunpack.c.h.b16 %v1004
        %v1052 = vunpack.c.l.b16 %v1005
        %v1053 = vunpack.c.h.b16 %v1005
        %v1054 = vunpack.c.l.b16 %v1006
        %v1055 = vunpack.c.h.b16 %v1006
        %v1056 = vunpack.c.l.b16 %v1007
        %v1057 = vunpack.c.h.b16 %v1007
        %v1058 = vunpack.c.l.b16 %v1008
        %v1059 = vunpack.c.h.b16 %v1008
        %v1060 = vunpack.c.l.b16 %v1009
        %v1061 = vunpack.c.h.b16 %v1009
        %v1062 = vunpack.c.l.b16 %v1010
        %v1063 = vunpack.c.h.b16 %v1010
        %v1064 = vunpack.c.l.b16 %v1011
        %v1065 = vunpack.c.h.b16 %v1011
        %v1066 = vpack.c.b16 %v1036, %v1034
        %v1067 = vpack.c.b16 %v1037, %v1035
        %v1068 = vpack.c.b16 %v1040, %v1038
        %v1069 = vpack.c.b16 %v1041, %v1039
        %v1070 = vpack.c.b16 %v1044, %v1042
        %v1071 = vpack.c.b16 %v1045, %v1043
        %v1072 = vpack.c.b16 %v1048, %v1046
        %v1073 = vpack.c.b16 %v1049, %v1047
        %v1074 = vpack.c.b16 %v1052, %v1050
        %v1075 = vpack.c.b16 %v1053, %v1051
        %v1076 = vpack.c.b16 %v1056, %v1054
        %v1077 = vpack.c.b16 %v1057, %v1055
        %v1078 = vpack.c.b16 %v1060, %v1058
        %v1079 = vpack.c.b16 %v1061, %v1059
        %v1080 = vpack.c.b16 %v1064, %v1062
        %v1081 = vpack.c.b16 %v1065, %v1063
        %1098 = vmatprep.subr.bf16.mxu0 %v1067
        %1099 = vmatpush1.bf16.msra.mxu0 %v1066
        %1100 = vmatprep.subr.bf16.mxu0 %v1069
        %1101 = vmatpush1.bf16.msra.mxu0 %v1068
        %1102 = vmatprep.subr.bf16.mxu0 %v1071
        %1103 = vmatpush1.bf16.msra.mxu0 %v1070
        %1104 = vmatprep.subr.bf16.mxu0 %v1073
        %1105 = vmatpush1.bf16.msra.mxu0 %v1072
        %1106 = vmatprep.subr.bf16.mxu0 %v1075
        %1107 = vmatpush1.bf16.msra.mxu0 %v1074
        %1108 = vmatprep.subr.bf16.mxu0 %v1077
        %1109 = vmatpush1.bf16.msra.mxu0 %v1076
        %1110 = vmatprep.subr.bf16.mxu0 %v1079
        %1111 = vmatpush1.bf16.msra.mxu0 %v1078
        %1112 = vmatprep.subr.bf16.mxu0 %v1081
        %1113 = vmatpush1.bf16.msra.mxu0 %v1080
        %1114 = vmatprep.subr.bf16.mxu0 0
        %1115 = vmatpush1.bf16.msra.mxu0 0
        %1116 = vmatprep.subr.bf16.mxu0 0
        %1117 = vmatpush1.bf16.msra.mxu0 0
        %1118 = vmatprep.subr.bf16.mxu0 0
        %1119 = vmatpush1.bf16.msra.mxu0 0
        %1120 = vmatprep.subr.bf16.mxu0 0
        %1121 = vmatpush1.bf16.msra.mxu0 0
        %1122 = vmatprep.subr.bf16.mxu0 0
        %1123 = vmatpush1.bf16.msra.mxu0 0
        %1124 = vmatprep.subr.bf16.mxu0 0
        %1125 = vmatpush1.bf16.msra.mxu0 0
        %1126 = vmatprep.subr.bf16.mxu0 0
        %1127 = vmatpush1.bf16.msra.mxu0 0
        %1128 = vmatprep.subr.bf16.mxu0 0
        %1129 = vmatpush1.bf16.msra.mxu0 0
        %1130 = vmatprep.mubr.bf16.mxu0 0
        %1131 = vmatmul.mubr.bf16.gmra.mrb[0].mxu0 %v1016
        %v1132 = vpop.f32.mrb[0].mxu0
        %v1133 = vadd.f32 0.0, %v1132
        %v1134 = vpop.f32.mrb[0].mxu0
        %v1135 = vadd.f32 0.0, %v1134
        %v1136 = vpop.f32.mrb[0].mxu0
        %v1137 = vadd.f32 0.0, %v1136
        %v1138 = vpop.f32.mrb[0].mxu0
        %v1139 = vadd.f32 0.0, %v1138
        %1140 = vdwg.mxu0
        %v1141 = vmax.f32 %v1133, 0.0
        %v1142 = vmax.f32 %v1135, 0.0
        %v1143 = vmax.f32 %v1137, 0.0
        %v1144 = vmax.f32 %v1139, 0.0
        %v1145 = vpack.c.bf16 %v1143, %v1141
        %v1146 = vpack.c.bf16 %v1144, %v1142
        %1147 = vst [vmem:[#allocation2 + $0x20] sm:$0xff] %v1145
        %1148 = vst [vmem:[#allocation2 + $0x28] sm:$0xff] %v1146
        %v1149 = vld [vmem:[#allocation2] sm:$0xff]
        %v1150 = vld [vmem:[#allocation2 + $0x8] sm:$0xff]
        %v1151 = vld [vmem:[#allocation2 + $0x10] sm:$0xff]
        %v1152 = vld [vmem:[#allocation2 + $0x18] sm:$0xff]
        %v1153 = vld [vmem:[#allocation2 + $0x20] sm:$0xff]
        %v1154 = vld [vmem:[#allocation2 + $0x28] sm:$0xff]
        %v1155 = vld [vmem:[#allocation14] sm:$0xff]
        %v1156 = vld [vmem:[#allocation14 + $0x8] sm:$0xff]
        %v1157 = vld [vmem:[#allocation14 + $0x10] sm:$0xff]
        %v1158 = vld [vmem:[#allocation14 + $0x18] sm:$0xff]
        %v1159 = vld [vmem:[#allocation14 + $0x20] sm:$0xff]
        %v1160 = vld [vmem:[#allocation14 + $0x28] sm:$0xff]
        %v1161 = vld [vmem:[#allocation14 + $0x30] sm:$0xff]
        %v1162 = vld [vmem:[#allocation14 + $0x38] sm:$0xff]
        %v1163 = vld [vmem:[#allocation14 + $0x40] sm:$0xff]
        %v1164 = vld [vmem:[#allocation14 + $0x48] sm:$0xff]
        %v1165 = vld [vmem:[#allocation14 + $0x50] sm:$0xff]
        %v1166 = vld [vmem:[#allocation14 + $0x58] sm:$0xff]
        %v1167 = vld [vmem:[#allocation14 + $0x60] sm:$0xff]
        %v1168 = vld [vmem:[#allocation14 + $0x68] sm:$0xff]
        %v1169 = vld [vmem:[#allocation14 + $0x70] sm:$0xff]
        %v1170 = vld [vmem:[#allocation14 + $0x78] sm:$0xff]
        %v1171 = vld [vmem:[#allocation14 + $0x80] sm:$0xff]
        %v1172 = vld [vmem:[#allocation14 + $0x88] sm:$0xff]
        %v1173 = vld [vmem:[#allocation14 + $0x90] sm:$0xff]
        %v1174 = vld [vmem:[#allocation14 + $0x98] sm:$0xff]
        %v1175 = vld [vmem:[#allocation14 + $0xa0] sm:$0xff]
        %v1176 = vld [vmem:[#allocation14 + $0xa8] sm:$0xff]
        %v1177 = vld [vmem:[#allocation14 + $0xb0] sm:$0xff]
        %v1178 = vld [vmem:[#allocation14 + $0xb8] sm:$0xff]
        %v1179 = vld [vmem:[#allocation14 + $0xc0] sm:$0xff]
        %v1180 = vld [vmem:[#allocation14 + $0xc8] sm:$0xff]
        %v1181 = vld [vmem:[#allocation14 + $0xd0] sm:$0xff]
        %v1182 = vld [vmem:[#allocation14 + $0xd8] sm:$0xff]
        %v1183 = vld [vmem:[#allocation14 + $0xe0] sm:$0xff]
        %v1184 = vld [vmem:[#allocation14 + $0xe8] sm:$0xff]
        %v1185 = vld [vmem:[#allocation14 + $0xf0] sm:$0xff]
        %v1186 = vld [vmem:[#allocation14 + $0xf8] sm:$0xff]
        %v1187 = vld [vmem:[#allocation14 + $0x100] sm:$0xff]
        %v1188 = vld [vmem:[#allocation14 + $0x108] sm:$0xff]
        %v1189 = vld [vmem:[#allocation14 + $0x110] sm:$0xff]
        %v1190 = vld [vmem:[#allocation14 + $0x118] sm:$0xff]
        %v1191 = vld [vmem:[#allocation14 + $0x120] sm:$0xff]
        %v1192 = vld [vmem:[#allocation14 + $0x128] sm:$0xff]
        %v1193 = vld [vmem:[#allocation14 + $0x130] sm:$0xff]
        %v1194 = vld [vmem:[#allocation14 + $0x138] sm:$0xff]
        %v1195 = vld [vmem:[#allocation14 + $0x140] sm:$0xff]
        %v1196 = vld [vmem:[#allocation14 + $0x148] sm:$0xff]
        %v1197 = vld [vmem:[#allocation14 + $0x150] sm:$0xff]
        %v1198 = vld [vmem:[#allocation14 + $0x158] sm:$0xff]
        %v1199 = vld [vmem:[#allocation14 + $0x160] sm:$0xff]
        %v1200 = vld [vmem:[#allocation14 + $0x168] sm:$0xff]
        %v1201 = vld [vmem:[#allocation14 + $0x170] sm:$0xff]
        %v1202 = vld [vmem:[#allocation14 + $0x178] sm:$0xff]
        %v1203 = vld [vmem:[#allocation14 + $0x180] sm:$0xff]
        %v1204 = vld [vmem:[#allocation14 + $0x188] sm:$0xff]
        %v1205 = vld [vmem:[#allocation14 + $0x190] sm:$0xff]
        %v1206 = vld [vmem:[#allocation14 + $0x198] sm:$0xff]
        %v1207 = vld [vmem:[#allocation14 + $0x1a0] sm:$0xff]
        %v1208 = vld [vmem:[#allocation14 + $0x1a8] sm:$0xff]
        %v1209 = vld [vmem:[#allocation14 + $0x1b0] sm:$0xff]
        %v1210 = vld [vmem:[#allocation14 + $0x1b8] sm:$0xff]
        %v1211 = vld [vmem:[#allocation14 + $0x1c0] sm:$0xff]
        %v1212 = vld [vmem:[#allocation14 + $0x1c8] sm:$0xff]
        %v1213 = vld [vmem:[#allocation14 + $0x1d0] sm:$0xff]
        %v1214 = vld [vmem:[#allocation14 + $0x1d8] sm:$0xff]
        %v1215 = vld [vmem:[#allocation14 + $0x1e0] sm:$0xff]
        %v1216 = vld [vmem:[#allocation14 + $0x1e8] sm:$0xff]
        %v1217 = vld [vmem:[#allocation14 + $0x1f0] sm:$0xff]
        %v1218 = vld [vmem:[#allocation14 + $0x1f8] sm:$0xff]
        %v1219 = vld [vmem:[#allocation14 + $0x200] sm:$0xff]
        %v1220 = vld [vmem:[#allocation14 + $0x208] sm:$0xff]
        %v1221 = vld [vmem:[#allocation14 + $0x210] sm:$0xff]
        %v1222 = vld [vmem:[#allocation14 + $0x218] sm:$0xff]
        %v1223 = vld [vmem:[#allocation14 + $0x220] sm:$0xff]
        %v1224 = vld [vmem:[#allocation14 + $0x228] sm:$0xff]
        %v1225 = vld [vmem:[#allocation14 + $0x230] sm:$0xff]
        %v1226 = vld [vmem:[#allocation14 + $0x238] sm:$0xff]
        %v1227 = vld [vmem:[#allocation14 + $0x240] sm:$0xff]
        %v1228 = vld [vmem:[#allocation14 + $0x248] sm:$0xff]
        %v1229 = vld [vmem:[#allocation14 + $0x250] sm:$0xff]
        %v1230 = vld [vmem:[#allocation14 + $0x258] sm:$0xff]
        %v1231 = vld [vmem:[#allocation14 + $0x260] sm:$0xff]
        %v1232 = vld [vmem:[#allocation14 + $0x268] sm:$0xff]
        %v1233 = vld [vmem:[#allocation14 + $0x270] sm:$0xff]
        %v1234 = vld [vmem:[#allocation14 + $0x278] sm:$0xff]
        %v1235 = vld [vmem:[#allocation14 + $0x280] sm:$0xff]
        %v1236 = vld [vmem:[#allocation14 + $0x288] sm:$0xff]
        %v1237 = vld [vmem:[#allocation14 + $0x290] sm:$0xff]
        %v1238 = vld [vmem:[#allocation14 + $0x298] sm:$0xff]
        %v1239 = vld [vmem:[#allocation14 + $0x2a0] sm:$0xff]
        %v1240 = vld [vmem:[#allocation14 + $0x2a8] sm:$0xff]
        %v1241 = vld [vmem:[#allocation14 + $0x2b0] sm:$0xff]
        %v1242 = vld [vmem:[#allocation14 + $0x2b8] sm:$0xff]
        %v1243 = vld [vmem:[#allocation14 + $0x2c0] sm:$0xff]
        %v1244 = vld [vmem:[#allocation14 + $0x2c8] sm:$0xff]
        %v1245 = vld [vmem:[#allocation14 + $0x2d0] sm:$0xff]
        %v1246 = vld [vmem:[#allocation14 + $0x2d8] sm:$0xff]
        %v1247 = vld [vmem:[#allocation14 + $0x2e0] sm:$0xff]
        %v1248 = vld [vmem:[#allocation14 + $0x2e8] sm:$0xff]
        %v1249 = vld [vmem:[#allocation14 + $0x2f0] sm:$0xff]
        %v1250 = vld [vmem:[#allocation14 + $0x2f8] sm:$0xff]
        %v1251 = vld [vmem:[%s11] sm:$0x3f]
        %v1253 = vlaneseq
        %v1254 = vshrl.u32 %v1253, 7
        %v1255 = vsub.s32 0, %v1254
        %v1256 = vrot.slane %v1251, %v1255
        %v1257 = vlaneseq
        %v1258 = vshrl.u32 %v1257, 7
        %v1259 = vsub.s32 1, %v1258
        %v1260 = vrot.slane %v1251, %v1259
        %v1261 = vlaneseq
        %v1262 = vshrl.u32 %v1261, 7
        %v1263 = vsub.s32 2, %v1262
        %v1264 = vrot.slane %v1251, %v1263
        %v1265 = vlaneseq
        %v1266 = vshrl.u32 %v1265, 7
        %v1267 = vsub.s32 3, %v1266
        %v1268 = vrot.slane %v1251, %v1267
        %v1269 = vlaneseq
        %v1270 = vshrl.u32 %v1269, 7
        %v1271 = vsub.s32 4, %v1270
        %v1272 = vrot.slane %v1251, %v1271
        %v1273 = vlaneseq
        %v1274 = vshrl.u32 %v1273, 7
        %v1275 = vsub.s32 5, %v1274
        %v1276 = vrot.slane %v1251, %v1275
        %v1379 = vunpack.c.l.b16 %v1155
        %v1380 = vunpack.c.h.b16 %v1155
        %v1381 = vunpack.c.l.b16 %v1156
        %v1382 = vunpack.c.h.b16 %v1156
        %v1383 = vunpack.c.l.b16 %v1157
        %v1384 = vunpack.c.h.b16 %v1157
        %v1385 = vunpack.c.l.b16 %v1158
        %v1386 = vunpack.c.h.b16 %v1158
        %v1387 = vunpack.c.l.b16 %v1159
        %v1388 = vunpack.c.h.b16 %v1159
        %v1389 = vunpack.c.l.b16 %v1160
        %v1390 = vunpack.c.h.b16 %v1160
        %v1391 = vunpack.c.l.b16 %v1161
        %v1392 = vunpack.c.h.b16 %v1161
        %v1393 = vunpack.c.l.b16 %v1162
        %v1394 = vunpack.c.h.b16 %v1162
        %v1395 = vunpack.c.l.b16 %v1163
        %v1396 = vunpack.c.h.b16 %v1163
        %v1397 = vunpack.c.l.b16 %v1164
        %v1398 = vunpack.c.h.b16 %v1164
        %v1399 = vunpack.c.l.b16 %v1165
        %v1400 = vunpack.c.h.b16 %v1165
        %v1401 = vunpack.c.l.b16 %v1166
        %v1402 = vunpack.c.h.b16 %v1166
        %v1403 = vunpack.c.l.b16 %v1167
        %v1404 = vunpack.c.h.b16 %v1167
        %v1405 = vunpack.c.l.b16 %v1168
        %v1406 = vunpack.c.h.b16 %v1168
        %v1407 = vunpack.c.l.b16 %v1169
        %v1408 = vunpack.c.h.b16 %v1169
        %v1409 = vunpack.c.l.b16 %v1170
        %v1410 = vunpack.c.h.b16 %v1170
        %v1411 = vunpack.c.l.b16 %v1171
        %v1412 = vunpack.c.h.b16 %v1171
        %v1413 = vunpack.c.l.b16 %v1172
        %v1414 = vunpack.c.h.b16 %v1172
        %v1415 = vunpack.c.l.b16 %v1173
        %v1416 = vunpack.c.h.b16 %v1173
        %v1417 = vunpack.c.l.b16 %v1174
        %v1418 = vunpack.c.h.b16 %v1174
        %v1419 = vunpack.c.l.b16 %v1175
        %v1420 = vunpack.c.h.b16 %v1175
        %v1421 = vunpack.c.l.b16 %v1176
        %v1422 = vunpack.c.h.b16 %v1176
        %v1423 = vunpack.c.l.b16 %v1177
        %v1424 = vunpack.c.h.b16 %v1177
        %v1425 = vunpack.c.l.b16 %v1178
        %v1426 = vunpack.c.h.b16 %v1178
        %v1427 = vunpack.c.l.b16 %v1179
        %v1428 = vunpack.c.h.b16 %v1179
        %v1429 = vunpack.c.l.b16 %v1180
        %v1430 = vunpack.c.h.b16 %v1180
        %v1431 = vunpack.c.l.b16 %v1181
        %v1432 = vunpack.c.h.b16 %v1181
        %v1433 = vunpack.c.l.b16 %v1182
        %v1434 = vunpack.c.h.b16 %v1182
        %v1435 = vunpack.c.l.b16 %v1183
        %v1436 = vunpack.c.h.b16 %v1183
        %v1437 = vunpack.c.l.b16 %v1184
        %v1438 = vunpack.c.h.b16 %v1184
        %v1439 = vunpack.c.l.b16 %v1185
        %v1440 = vunpack.c.h.b16 %v1185
        %v1441 = vunpack.c.l.b16 %v1186
        %v1442 = vunpack.c.h.b16 %v1186
        %v1443 = vunpack.c.l.b16 %v1187
        %v1444 = vunpack.c.h.b16 %v1187
        %v1445 = vunpack.c.l.b16 %v1188
        %v1446 = vunpack.c.h.b16 %v1188
        %v1447 = vunpack.c.l.b16 %v1189
        %v1448 = vunpack.c.h.b16 %v1189
        %v1449 = vunpack.c.l.b16 %v1190
        %v1450 = vunpack.c.h.b16 %v1190
        %v1451 = vunpack.c.l.b16 %v1191
        %v1452 = vunpack.c.h.b16 %v1191
        %v1453 = vunpack.c.l.b16 %v1192
        %v1454 = vunpack.c.h.b16 %v1192
        %v1455 = vunpack.c.l.b16 %v1193
        %v1456 = vunpack.c.h.b16 %v1193
        %v1457 = vunpack.c.l.b16 %v1194
        %v1458 = vunpack.c.h.b16 %v1194
        %v1459 = vunpack.c.l.b16 %v1195
        %v1460 = vunpack.c.h.b16 %v1195
        %v1461 = vunpack.c.l.b16 %v1196
        %v1462 = vunpack.c.h.b16 %v1196
        %v1463 = vunpack.c.l.b16 %v1197
        %v1464 = vunpack.c.h.b16 %v1197
        %v1465 = vunpack.c.l.b16 %v1198
        %v1466 = vunpack.c.h.b16 %v1198
        %v1467 = vunpack.c.l.b16 %v1199
        %v1468 = vunpack.c.h.b16 %v1199
        %v1469 = vunpack.c.l.b16 %v1200
        %v1470 = vunpack.c.h.b16 %v1200
        %v1471 = vunpack.c.l.b16 %v1201
        %v1472 = vunpack.c.h.b16 %v1201
        %v1473 = vunpack.c.l.b16 %v1202
        %v1474 = vunpack.c.h.b16 %v1202
        %v1475 = vunpack.c.l.b16 %v1203
        %v1476 = vunpack.c.h.b16 %v1203
        %v1477 = vunpack.c.l.b16 %v1204
        %v1478 = vunpack.c.h.b16 %v1204
        %v1479 = vunpack.c.l.b16 %v1205
        %v1480 = vunpack.c.h.b16 %v1205
        %v1481 = vunpack.c.l.b16 %v1206
        %v1482 = vunpack.c.h.b16 %v1206
        %v1483 = vunpack.c.l.b16 %v1207
        %v1484 = vunpack.c.h.b16 %v1207
        %v1485 = vunpack.c.l.b16 %v1208
        %v1486 = vunpack.c.h.b16 %v1208
        %v1487 = vunpack.c.l.b16 %v1209
        %v1488 = vunpack.c.h.b16 %v1209
        %v1489 = vunpack.c.l.b16 %v1210
        %v1490 = vunpack.c.h.b16 %v1210
        %v1491 = vunpack.c.l.b16 %v1211
        %v1492 = vunpack.c.h.b16 %v1211
        %v1493 = vunpack.c.l.b16 %v1212
        %v1494 = vunpack.c.h.b16 %v1212
        %v1495 = vunpack.c.l.b16 %v1213
        %v1496 = vunpack.c.h.b16 %v1213
        %v1497 = vunpack.c.l.b16 %v1214
        %v1498 = vunpack.c.h.b16 %v1214
        %v1499 = vunpack.c.l.b16 %v1215
        %v1500 = vunpack.c.h.b16 %v1215
        %v1501 = vunpack.c.l.b16 %v1216
        %v1502 = vunpack.c.h.b16 %v1216
        %v1503 = vunpack.c.l.b16 %v1217
        %v1504 = vunpack.c.h.b16 %v1217
        %v1505 = vunpack.c.l.b16 %v1218
        %v1506 = vunpack.c.h.b16 %v1218
        %v1507 = vunpack.c.l.b16 %v1219
        %v1508 = vunpack.c.h.b16 %v1219
        %v1509 = vunpack.c.l.b16 %v1220
        %v1510 = vunpack.c.h.b16 %v1220
        %v1511 = vunpack.c.l.b16 %v1221
        %v1512 = vunpack.c.h.b16 %v1221
        %v1513 = vunpack.c.l.b16 %v1222
        %v1514 = vunpack.c.h.b16 %v1222
        %v1515 = vunpack.c.l.b16 %v1223
        %v1516 = vunpack.c.h.b16 %v1223
        %v1517 = vunpack.c.l.b16 %v1224
        %v1518 = vunpack.c.h.b16 %v1224
        %v1519 = vunpack.c.l.b16 %v1225
        %v1520 = vunpack.c.h.b16 %v1225
        %v1521 = vunpack.c.l.b16 %v1226
        %v1522 = vunpack.c.h.b16 %v1226
        %v1523 = vunpack.c.l.b16 %v1227
        %v1524 = vunpack.c.h.b16 %v1227
        %v1525 = vunpack.c.l.b16 %v1228
        %v1526 = vunpack.c.h.b16 %v1228
        %v1527 = vunpack.c.l.b16 %v1229
        %v1528 = vunpack.c.h.b16 %v1229
        %v1529 = vunpack.c.l.b16 %v1230
        %v1530 = vunpack.c.h.b16 %v1230
        %v1531 = vunpack.c.l.b16 %v1231
        %v1532 = vunpack.c.h.b16 %v1231
        %v1533 = vunpack.c.l.b16 %v1232
        %v1534 = vunpack.c.h.b16 %v1232
        %v1535 = vunpack.c.l.b16 %v1233
        %v1536 = vunpack.c.h.b16 %v1233
        %v1537 = vunpack.c.l.b16 %v1234
        %v1538 = vunpack.c.h.b16 %v1234
        %v1539 = vunpack.c.l.b16 %v1235
        %v1540 = vunpack.c.h.b16 %v1235
        %v1541 = vunpack.c.l.b16 %v1236
        %v1542 = vunpack.c.h.b16 %v1236
        %v1543 = vunpack.c.l.b16 %v1237
        %v1544 = vunpack.c.h.b16 %v1237
        %v1545 = vunpack.c.l.b16 %v1238
        %v1546 = vunpack.c.h.b16 %v1238
        %v1547 = vunpack.c.l.b16 %v1239
        %v1548 = vunpack.c.h.b16 %v1239
        %v1549 = vunpack.c.l.b16 %v1240
        %v1550 = vunpack.c.h.b16 %v1240
        %v1551 = vunpack.c.l.b16 %v1241
        %v1552 = vunpack.c.h.b16 %v1241
        %v1553 = vunpack.c.l.b16 %v1242
        %v1554 = vunpack.c.h.b16 %v1242
        %v1555 = vunpack.c.l.b16 %v1243
        %v1556 = vunpack.c.h.b16 %v1243
        %v1557 = vunpack.c.l.b16 %v1244
        %v1558 = vunpack.c.h.b16 %v1244
        %v1559 = vunpack.c.l.b16 %v1245
        %v1560 = vunpack.c.h.b16 %v1245
        %v1561 = vunpack.c.l.b16 %v1246
        %v1562 = vunpack.c.h.b16 %v1246
        %v1563 = vunpack.c.l.b16 %v1247
        %v1564 = vunpack.c.h.b16 %v1247
        %v1565 = vunpack.c.l.b16 %v1248
        %v1566 = vunpack.c.h.b16 %v1248
        %v1567 = vunpack.c.l.b16 %v1249
        %v1568 = vunpack.c.h.b16 %v1249
        %v1569 = vunpack.c.l.b16 %v1250
        %v1570 = vunpack.c.h.b16 %v1250
        %v1571 = vpack.c.b16 %v1385, %v1379
        %v1572 = vpack.c.b16 %v1386, %v1380
        %v1573 = vpack.c.b16 %v1387, %v1381
        %v1574 = vpack.c.b16 %v1388, %v1382
        %v1575 = vpack.c.b16 %v1389, %v1383
        %v1576 = vpack.c.b16 %v1390, %v1384
        %v1577 = vpack.c.b16 %v1397, %v1391
        %v1578 = vpack.c.b16 %v1398, %v1392
        %v1579 = vpack.c.b16 %v1399, %v1393
        %v1580 = vpack.c.b16 %v1400, %v1394
        %v1581 = vpack.c.b16 %v1401, %v1395
        %v1582 = vpack.c.b16 %v1402, %v1396
        %v1583 = vpack.c.b16 %v1409, %v1403
        %v1584 = vpack.c.b16 %v1410, %v1404
        %v1585 = vpack.c.b16 %v1411, %v1405
        %v1586 = vpack.c.b16 %v1412, %v1406
        %v1587 = vpack.c.b16 %v1413, %v1407
        %v1588 = vpack.c.b16 %v1414, %v1408
        %v1589 = vpack.c.b16 %v1421, %v1415
        %v1590 = vpack.c.b16 %v1422, %v1416
        %v1591 = vpack.c.b16 %v1423, %v1417
        %v1592 = vpack.c.b16 %v1424, %v1418
        %v1593 = vpack.c.b16 %v1425, %v1419
        %v1594 = vpack.c.b16 %v1426, %v1420
        %v1595 = vpack.c.b16 %v1433, %v1427
        %v1596 = vpack.c.b16 %v1434, %v1428
        %v1597 = vpack.c.b16 %v1435, %v1429
        %v1598 = vpack.c.b16 %v1436, %v1430
        %v1599 = vpack.c.b16 %v1437, %v1431
        %v1600 = vpack.c.b16 %v1438, %v1432
        %v1601 = vpack.c.b16 %v1445, %v1439
        %v1602 = vpack.c.b16 %v1446, %v1440
        %v1603 = vpack.c.b16 %v1447, %v1441
        %v1604 = vpack.c.b16 %v1448, %v1442
        %v1605 = vpack.c.b16 %v1449, %v1443
        %v1606 = vpack.c.b16 %v1450, %v1444
        %v1607 = vpack.c.b16 %v1457, %v1451
        %v1608 = vpack.c.b16 %v1458, %v1452
        %v1609 = vpack.c.b16 %v1459, %v1453
        %v1610 = vpack.c.b16 %v1460, %v1454
        %v1611 = vpack.c.b16 %v1461, %v1455
        %v1612 = vpack.c.b16 %v1462, %v1456
        %v1613 = vpack.c.b16 %v1469, %v1463
        %v1614 = vpack.c.b16 %v1470, %v1464
        %v1615 = vpack.c.b16 %v1471, %v1465
        %v1616 = vpack.c.b16 %v1472, %v1466
        %v1617 = vpack.c.b16 %v1473, %v1467
        %v1618 = vpack.c.b16 %v1474, %v1468
        %v1619 = vpack.c.b16 %v1481, %v1475
        %v1620 = vpack.c.b16 %v1482, %v1476
        %v1621 = vpack.c.b16 %v1483, %v1477
        %v1622 = vpack.c.b16 %v1484, %v1478
        %v1623 = vpack.c.b16 %v1485, %v1479
        %v1624 = vpack.c.b16 %v1486, %v1480
        %v1625 = vpack.c.b16 %v1493, %v1487
        %v1626 = vpack.c.b16 %v1494, %v1488
        %v1627 = vpack.c.b16 %v1495, %v1489
        %v1628 = vpack.c.b16 %v1496, %v1490
        %v1629 = vpack.c.b16 %v1497, %v1491
        %v1630 = vpack.c.b16 %v1498, %v1492
        %v1631 = vpack.c.b16 %v1505, %v1499
        %v1632 = vpack.c.b16 %v1506, %v1500
        %v1633 = vpack.c.b16 %v1507, %v1501
        %v1634 = vpack.c.b16 %v1508, %v1502
        %v1635 = vpack.c.b16 %v1509, %v1503
        %v1636 = vpack.c.b16 %v1510, %v1504
        %v1637 = vpack.c.b16 %v1517, %v1511
        %v1638 = vpack.c.b16 %v1518, %v1512
        %v1639 = vpack.c.b16 %v1519, %v1513
        %v1640 = vpack.c.b16 %v1520, %v1514
        %v1641 = vpack.c.b16 %v1521, %v1515
        %v1642 = vpack.c.b16 %v1522, %v1516
        %v1643 = vpack.c.b16 %v1529, %v1523
        %v1644 = vpack.c.b16 %v1530, %v1524
        %v1645 = vpack.c.b16 %v1531, %v1525
        %v1646 = vpack.c.b16 %v1532, %v1526
        %v1647 = vpack.c.b16 %v1533, %v1527
        %v1648 = vpack.c.b16 %v1534, %v1528
        %v1649 = vpack.c.b16 %v1541, %v1535
        %v1650 = vpack.c.b16 %v1542, %v1536
        %v1651 = vpack.c.b16 %v1543, %v1537
        %v1652 = vpack.c.b16 %v1544, %v1538
        %v1653 = vpack.c.b16 %v1545, %v1539
        %v1654 = vpack.c.b16 %v1546, %v1540
        %v1655 = vpack.c.b16 %v1553, %v1547
        %v1656 = vpack.c.b16 %v1554, %v1548
        %v1657 = vpack.c.b16 %v1555, %v1549
        %v1658 = vpack.c.b16 %v1556, %v1550
        %v1659 = vpack.c.b16 %v1557, %v1551
        %v1660 = vpack.c.b16 %v1558, %v1552
        %v1661 = vpack.c.b16 %v1565, %v1559
        %v1662 = vpack.c.b16 %v1566, %v1560
        %v1663 = vpack.c.b16 %v1567, %v1561
        %v1664 = vpack.c.b16 %v1568, %v1562
        %v1665 = vpack.c.b16 %v1569, %v1563
        %v1666 = vpack.c.b16 %v1570, %v1564
        %1763 = vmatprep.subr.bf16.mxu0 %v1572
        %1764 = vmatpush1.bf16.msra.mxu0 %v1571
        %1765 = vmatprep.subr.bf16.mxu0 %v1578
        %1766 = vmatpush1.bf16.msra.mxu0 %v1577
        %1767 = vmatprep.subr.bf16.mxu0 %v1584
        %1768 = vmatpush1.bf16.msra.mxu0 %v1583
        %1769 = vmatprep.subr.bf16.mxu0 %v1590
        %1770 = vmatpush1.bf16.msra.mxu0 %v1589
        %1771 = vmatprep.subr.bf16.mxu0 %v1596
        %1772 = vmatpush1.bf16.msra.mxu0 %v1595
        %1773 = vmatprep.subr.bf16.mxu0 %v1602
        %1774 = vmatpush1.bf16.msra.mxu0 %v1601
        %1775 = vmatprep.subr.bf16.mxu0 %v1608
        %1776 = vmatpush1.bf16.msra.mxu0 %v1607
        %1777 = vmatprep.subr.bf16.mxu0 %v1614
        %1778 = vmatpush1.bf16.msra.mxu0 %v1613
        %1779 = vmatprep.subr.bf16.mxu0 %v1620
        %1780 = vmatpush1.bf16.msra.mxu0 %v1619
        %1781 = vmatprep.subr.bf16.mxu0 %v1626
        %1782 = vmatpush1.bf16.msra.mxu0 %v1625
        %1783 = vmatprep.subr.bf16.mxu0 %v1632
        %1784 = vmatpush1.bf16.msra.mxu0 %v1631
        %1785 = vmatprep.subr.bf16.mxu0 %v1638
        %1786 = vmatpush1.bf16.msra.mxu0 %v1637
        %1787 = vmatprep.subr.bf16.mxu0 %v1644
        %1788 = vmatpush1.bf16.msra.mxu0 %v1643
        %1789 = vmatprep.subr.bf16.mxu0 %v1650
        %1790 = vmatpush1.bf16.msra.mxu0 %v1649
        %1791 = vmatprep.subr.bf16.mxu0 %v1656
        %1792 = vmatpush1.bf16.msra.mxu0 %v1655
        %1793 = vmatprep.subr.bf16.mxu0 %v1662
        %1794 = vmatpush1.bf16.msra.mxu0 %v1661
        %1795 = vmatprep.mubr.bf16.mxu0 %v1150
        %1796 = vmatmul.mubr.bf16.gmra.mrb[0].mxu0 %v1149
        %v1797 = vpop.f32.mrb[0].mxu0
        %v1798 = vadd.f32 %v1256, %v1797
        %v1799 = vpop.f32.mrb[0].mxu0
        %v1800 = vadd.f32 %v1260, %v1799
        %v1801 = vpop.f32.mrb[0].mxu0
        %v1802 = vadd.f32 %v1256, %v1801
        %v1803 = vpop.f32.mrb[0].mxu0
        %v1804 = vadd.f32 %v1260, %v1803
        %1805 = vmatprep.mubr.bf16.mxu0 %v1152
        %1806 = vmatmul.mubr.bf16.gmra.mrb[0].mxu0 %v1151
        %v1807 = vpop.f32.mrb[0].mxu0
        %v1808 = vadd.f32 %v1256, %v1807
        %v1809 = vpop.f32.mrb[0].mxu0
        %v1810 = vadd.f32 %v1260, %v1809
        %v1811 = vpop.f32.mrb[0].mxu0
        %v1812 = vadd.f32 %v1256, %v1811
        %v1813 = vpop.f32.mrb[0].mxu0
        %v1814 = vadd.f32 %v1260, %v1813
        %1815 = vmatprep.mubr.bf16.mxu0 %v1154
        %1816 = vmatmul.mubr.bf16.gmra.mrb[0].mxu0 %v1153
        %v1817 = vpop.f32.mrb[0].mxu0
        %v1818 = vadd.f32 %v1256, %v1817
        %v1819 = vpop.f32.mrb[0].mxu0
        %v1820 = vadd.f32 %v1260, %v1819
        %v1821 = vpop.f32.mrb[0].mxu0
        %v1822 = vadd.f32 %v1256, %v1821
        %v1823 = vpop.f32.mrb[0].mxu0
        %v1824 = vadd.f32 %v1260, %v1823
        %1825 = vdwg.mxu0
        %1826 = vmatprep.subr.bf16.mxu0 %v1574
        %1827 = vmatpush1.bf16.msra.mxu0 %v1573
        %1828 = vmatprep.subr.bf16.mxu0 %v1580
        %1829 = vmatpush1.bf16.msra.mxu0 %v1579
        %1830 = vmatprep.subr.bf16.mxu0 %v1586
        %1831 = vmatpush1.bf16.msra.mxu0 %v1585
        %1832 = vmatprep.subr.bf16.mxu0 %v1592
        %1833 = vmatpush1.bf16.msra.mxu0 %v1591
        %1834 = vmatprep.subr.bf16.mxu0 %v1598
        %1835 = vmatpush1.bf16.msra.mxu0 %v1597
        %1836 = vmatprep.subr.bf16.mxu0 %v1604
        %1837 = vmatpush1.bf16.msra.mxu0 %v1603
        %1838 = vmatprep.subr.bf16.mxu0 %v1610
        %1839 = vmatpush1.bf16.msra.mxu0 %v1609
        %1840 = vmatprep.subr.bf16.mxu0 %v1616
        %1841 = vmatpush1.bf16.msra.mxu0 %v1615
        %1842 = vmatprep.subr.bf16.mxu0 %v1622
        %1843 = vmatpush1.bf16.msra.mxu0 %v1621
        %1844 = vmatprep.subr.bf16.mxu0 %v1628
        %1845 = vmatpush1.bf16.msra.mxu0 %v1627
        %1846 = vmatprep.subr.bf16.mxu0 %v1634
        %1847 = vmatpush1.bf16.msra.mxu0 %v1633
        %1848 = vmatprep.subr.bf16.mxu0 %v1640
        %1849 = vmatpush1.bf16.msra.mxu0 %v1639
        %1850 = vmatprep.subr.bf16.mxu0 %v1646
        %1851 = vmatpush1.bf16.msra.mxu0 %v1645
        %1852 = vmatprep.subr.bf16.mxu0 %v1652
        %1853 = vmatpush1.bf16.msra.mxu0 %v1651
        %1854 = vmatprep.subr.bf16.mxu0 %v1658
        %1855 = vmatpush1.bf16.msra.mxu0 %v1657
        %1856 = vmatprep.subr.bf16.mxu0 %v1664
        %1857 = vmatpush1.bf16.msra.mxu0 %v1663
        %1858 = vmatprep.mubr.bf16.mxu0 %v1150
        %1859 = vmatmul.mubr.bf16.gmra.mrb[0].mxu0 %v1149
        %v1860 = vpop.f32.mrb[0].mxu0
        %v1861 = vadd.f32 %v1264, %v1860
        %v1862 = vpop.f32.mrb[0].mxu0
        %v1863 = vadd.f32 %v1268, %v1862
        %v1864 = vpop.f32.mrb[0].mxu0
        %v1865 = vadd.f32 %v1264, %v1864
        %v1866 = vpop.f32.mrb[0].mxu0
        %v1867 = vadd.f32 %v1268, %v1866
        %1868 = vmatprep.mubr.bf16.mxu0 %v1152
        %1869 = vmatmul.mubr.bf16.gmra.mrb[0].mxu0 %v1151
        %v1870 = vpop.f32.mrb[0].mxu0
        %v1871 = vadd.f32 %v1264, %v1870
        %v1872 = vpop.f32.mrb[0].mxu0
        %v1873 = vadd.f32 %v1268, %v1872
        %v1874 = vpop.f32.mrb[0].mxu0
        %v1875 = vadd.f32 %v1264, %v1874
        %v1876 = vpop.f32.mrb[0].mxu0
        %v1877 = vadd.f32 %v1268, %v1876
        %1878 = vmatprep.mubr.bf16.mxu0 %v1154
        %1879 = vmatmul.mubr.bf16.gmra.mrb[0].mxu0 %v1153
        %v1880 = vpop.f32.mrb[0].mxu0
        %v1881 = vadd.f32 %v1264, %v1880
        %v1882 = vpop.f32.mrb[0].mxu0
        %v1883 = vadd.f32 %v1268, %v1882
        %v1884 = vpop.f32.mrb[0].mxu0
        %v1885 = vadd.f32 %v1264, %v1884
        %v1886 = vpop.f32.mrb[0].mxu0
        %v1887 = vadd.f32 %v1268, %v1886
        %1888 = vdwg.mxu0
        %1889 = vmatprep.subr.bf16.mxu0 %v1576
        %1890 = vmatpush1.bf16.msra.mxu0 %v1575
        %1891 = vmatprep.subr.bf16.mxu0 %v1582
        %1892 = vmatpush1.bf16.msra.mxu0 %v1581
        %1893 = vmatprep.subr.bf16.mxu0 %v1588
        %1894 = vmatpush1.bf16.msra.mxu0 %v1587
        %1895 = vmatprep.subr.bf16.mxu0 %v1594
        %1896 = vmatpush1.bf16.msra.mxu0 %v1593
        %1897 = vmatprep.subr.bf16.mxu0 %v1600
        %1898 = vmatpush1.bf16.msra.mxu0 %v1599
        %1899 = vmatprep.subr.bf16.mxu0 %v1606
        %1900 = vmatpush1.bf16.msra.mxu0 %v1605
        %1901 = vmatprep.subr.bf16.mxu0 %v1612
        %1902 = vmatpush1.bf16.msra.mxu0 %v1611
        %1903 = vmatprep.subr.bf16.mxu0 %v1618
        %1904 = vmatpush1.bf16.msra.mxu0 %v1617
        %1905 = vmatprep.subr.bf16.mxu0 %v1624
        %1906 = vmatpush1.bf16.msra.mxu0 %v1623
        %1907 = vmatprep.subr.bf16.mxu0 %v1630
        %1908 = vmatpush1.bf16.msra.mxu0 %v1629
        %1909 = vmatprep.subr.bf16.mxu0 %v1636
        %1910 = vmatpush1.bf16.msra.mxu0 %v1635
        %1911 = vmatprep.subr.bf16.mxu0 %v1642
        %1912 = vmatpush1.bf16.msra.mxu0 %v1641
        %1913 = vmatprep.subr.bf16.mxu0 %v1648
        %1914 = vmatpush1.bf16.msra.mxu0 %v1647
        %1915 = vmatprep.subr.bf16.mxu0 %v1654
        %1916 = vmatpush1.bf16.msra.mxu0 %v1653
        %1917 = vmatprep.subr.bf16.mxu0 %v1660
        %1918 = vmatpush1.bf16.msra.mxu0 %v1659
        %1919 = vmatprep.subr.bf16.mxu0 %v1666
        %1920 = vmatpush1.bf16.msra.mxu0 %v1665
        %1921 = vmatprep.mubr.bf16.mxu0 %v1150
        %1922 = vmatmul.mubr.bf16.gmra.mrb[0].mxu0 %v1149
        %v1923 = vpop.f32.mrb[0].mxu0
        %v1924 = vadd.f32 %v1272, %v1923
        %v1925 = vpop.f32.mrb[0].mxu0
        %v1926 = vadd.f32 %v1276, %v1925
        %v1927 = vpop.f32.mrb[0].mxu0
        %v1928 = vadd.f32 %v1272, %v1927
        %v1929 = vpop.f32.mrb[0].mxu0
        %v1930 = vadd.f32 %v1276, %v1929
        %1931 = vmatprep.mubr.bf16.mxu0 %v1152
        %1932 = vmatmul.mubr.bf16.gmra.mrb[0].mxu0 %v1151
        %v1933 = vpop.f32.mrb[0].mxu0
        %v1934 = vadd.f32 %v1272, %v1933
        %v1935 = vpop.f32.mrb[0].mxu0
        %v1936 = vadd.f32 %v1276, %v1935
        %v1937 = vpop.f32.mrb[0].mxu0
        %v1938 = vadd.f32 %v1272, %v1937
        %v1939 = vpop.f32.mrb[0].mxu0
        %v1940 = vadd.f32 %v1276, %v1939
        %1941 = vmatprep.mubr.bf16.mxu0 %v1154
        %1942 = vmatmul.mubr.bf16.gmra.mrb[0].mxu0 %v1153
        %v1943 = vpop.f32.mrb[0].mxu0
        %v1944 = vadd.f32 %v1272, %v1943
        %v1945 = vpop.f32.mrb[0].mxu0
        %v1946 = vadd.f32 %v1276, %v1945
        %v1947 = vpop.f32.mrb[0].mxu0
        %v1948 = vadd.f32 %v1272, %v1947
        %v1949 = vpop.f32.mrb[0].mxu0
        %v1950 = vadd.f32 %v1276, %v1949
        %1951 = vdwg.mxu0
        %v1952 = vld [vmem:[#allocation18] sm:$0xf]
        %v1953 = vld [vmem:[#allocation18 + $0x4] sm:$0xf]
        %v1954 = vld [vmem:[#allocation18 + $0x8] sm:$0xf]
        %v1955 = vld [vmem:[#allocation18 + $0xc] sm:$0xf]
        %v1956 = vld [vmem:[#allocation18 + $0x10] sm:$0xf]
        %v1957 = vld [vmem:[#allocation18 + $0x14] sm:$0xf]
        %v1958 = vld [vmem:[#allocation18 + $0x18] sm:$0xf]
        %v1959 = vld [vmem:[#allocation18 + $0x1c] sm:$0xf]
        %v1960 = vld [vmem:[#allocation18 + $0x20] sm:$0xf]
        %v1961 = vld [vmem:[#allocation18 + $0x24] sm:$0xf]
        %v1962 = vld [vmem:[#allocation18 + $0x28] sm:$0xf]
        %v1963 = vld [vmem:[#allocation18 + $0x2c] sm:$0xf]
        %v1964 = vld [vmem:[#allocation18 + $0x30] sm:$0xf]
        %v1965 = vld [vmem:[#allocation18 + $0x34] sm:$0xf]
        %v1966 = vld [vmem:[#allocation18 + $0x38] sm:$0xf]
        %v1967 = vld [vmem:[#allocation18 + $0x3c] sm:$0xf]
        %v1968 = vld [vmem:[#allocation18 + $0x40] sm:$0xf]
        %v1969 = vld [vmem:[#allocation18 + $0x44] sm:$0xf]
        %v1970 = vld [vmem:[#allocation18 + $0x48] sm:$0xf]
        %v1971 = vld [vmem:[#allocation18 + $0x4c] sm:$0xf]
        %v1972 = vld [vmem:[#allocation18 + $0x50] sm:$0xf]
        %v1973 = vld [vmem:[#allocation18 + $0x54] sm:$0xf]
        %v1974 = vld [vmem:[#allocation18 + $0x58] sm:$0xf]
        %v1975 = vld [vmem:[#allocation18 + $0x5c] sm:$0xf]
        %v1976 = vld [vmem:[#allocation18 + $0x60] sm:$0xf]
        %v1977 = vld [vmem:[#allocation18 + $0x64] sm:$0xf]
        %v1978 = vld [vmem:[#allocation18 + $0x68] sm:$0xf]
        %v1979 = vld [vmem:[#allocation18 + $0x6c] sm:$0xf]
        %v1980 = vld [vmem:[#allocation18 + $0x70] sm:$0xf]
        %v1981 = vld [vmem:[#allocation18 + $0x74] sm:$0xf]
        %v1982 = vld [vmem:[#allocation18 + $0x78] sm:$0xf]
        %v1983 = vld [vmem:[#allocation18 + $0x7c] sm:$0xf]
        %v1984 = vld [vmem:[#allocation18 + $0x80] sm:$0xf]
        %v1985 = vld [vmem:[#allocation18 + $0x84] sm:$0xf]
        %v1986 = vld [vmem:[#allocation18 + $0x88] sm:$0xf]
        %v1987 = vld [vmem:[#allocation18 + $0x8c] sm:$0xf]
        %v1988 = vld [vmem:[#allocation18 + $0x90] sm:$0xf]
        %v1989 = vld [vmem:[#allocation18 + $0x94] sm:$0xf]
        %v1990 = vld [vmem:[#allocation18 + $0x98] sm:$0xf]
        %v1991 = vld [vmem:[#allocation18 + $0x9c] sm:$0xf]
        %v1992 = vld [vmem:[#allocation18 + $0xa0] sm:$0xf]
        %v1993 = vld [vmem:[#allocation18 + $0xa4] sm:$0xf]
        %v1994 = vld [vmem:[#allocation18 + $0xa8] sm:$0xf]
        %v1995 = vld [vmem:[#allocation18 + $0xac] sm:$0xf]
        %v1996 = vld [vmem:[#allocation18 + $0xb0] sm:$0xf]
        %v1997 = vld [vmem:[#allocation18 + $0xb4] sm:$0xf]
        %v1998 = vld [vmem:[#allocation18 + $0xb8] sm:$0xf]
        %v1999 = vld [vmem:[#allocation18 + $0xbc] sm:$0xf]
        %v2000 = vld [vmem:[#allocation18 + $0xc0] sm:$0xf]
        %v2001 = vld [vmem:[#allocation18 + $0xc4] sm:$0xf]
        %v2002 = vld [vmem:[#allocation18 + $0xc8] sm:$0xf]
        %v2003 = vld [vmem:[#allocation18 + $0xcc] sm:$0xf]
        %v2004 = vld [vmem:[#allocation18 + $0xd0] sm:$0xf]
        %v2005 = vld [vmem:[#allocation18 + $0xd4] sm:$0xf]
        %v2006 = vld [vmem:[#allocation18 + $0xd8] sm:$0xf]
        %v2007 = vld [vmem:[#allocation18 + $0xdc] sm:$0xf]
        %v2008 = vld [vmem:[#allocation18 + $0xe0] sm:$0xf]
        %v2009 = vld [vmem:[#allocation18 + $0xe4] sm:$0xf]
        %v2010 = vld [vmem:[#allocation18 + $0xe8] sm:$0xf]
        %v2011 = vld [vmem:[#allocation18 + $0xec] sm:$0xf]
        %v2012 = vld [vmem:[#allocation18 + $0xf0] sm:$0xf]
        %v2013 = vld [vmem:[#allocation18 + $0xf4] sm:$0xf]
        %v2014 = vld [vmem:[#allocation18 + $0xf8] sm:$0xf]
        %v2015 = vld [vmem:[#allocation18 + $0xfc] sm:$0xf]
        %v2016 = vld [vmem:[#allocation18 + $0x100] sm:$0xf]
        %v2017 = vld [vmem:[#allocation18 + $0x104] sm:$0xf]
        %v2018 = vld [vmem:[#allocation18 + $0x108] sm:$0xf]
        %v2019 = vld [vmem:[#allocation18 + $0x10c] sm:$0xf]
        %v2020 = vld [vmem:[#allocation18 + $0x110] sm:$0xf]
        %v2021 = vld [vmem:[#allocation18 + $0x114] sm:$0xf]
        %v2022 = vld [vmem:[#allocation18 + $0x118] sm:$0xf]
        %v2023 = vld [vmem:[#allocation18 + $0x11c] sm:$0xf]
        %v2024 = vld [vmem:[#allocation18 + $0x120] sm:$0xf]
        %v2025 = vld [vmem:[#allocation18 + $0x124] sm:$0xf]
        %v2026 = vld [vmem:[#allocation18 + $0x128] sm:$0xf]
        %v2027 = vld [vmem:[#allocation18 + $0x12c] sm:$0xf]
        %v2028 = vld [vmem:[#allocation18 + $0x130] sm:$0xf]
        %v2029 = vld [vmem:[#allocation18 + $0x134] sm:$0xf]
        %v2030 = vld [vmem:[#allocation18 + $0x138] sm:$0xf]
        %v2031 = vld [vmem:[#allocation18 + $0x13c] sm:$0xf]
        %v2032 = vld [vmem:[#allocation18 + $0x140] sm:$0xf]
        %v2033 = vld [vmem:[#allocation18 + $0x144] sm:$0xf]
        %v2034 = vld [vmem:[#allocation18 + $0x148] sm:$0xf]
        %v2035 = vld [vmem:[#allocation18 + $0x14c] sm:$0xf]
        %v2036 = vld [vmem:[#allocation18 + $0x150] sm:$0xf]
        %v2037 = vld [vmem:[#allocation18 + $0x154] sm:$0xf]
        %v2038 = vld [vmem:[#allocation18 + $0x158] sm:$0xf]
        %v2039 = vld [vmem:[#allocation18 + $0x15c] sm:$0xf]
        %v2040 = vld [vmem:[#allocation18 + $0x160] sm:$0xf]
        %v2041 = vld [vmem:[#allocation18 + $0x164] sm:$0xf]
        %v2042 = vld [vmem:[#allocation18 + $0x168] sm:$0xf]
        %v2043 = vld [vmem:[#allocation18 + $0x16c] sm:$0xf]
        %v2044 = vld [vmem:[#allocation18 + $0x170] sm:$0xf]
        %v2045 = vld [vmem:[#allocation18 + $0x174] sm:$0xf]
        %v2046 = vld [vmem:[#allocation18 + $0x178] sm:$0xf]
        %v2047 = vld [vmem:[#allocation18 + $0x17c] sm:$0xf]
        %v2048 = vmul.f32 %v1798, %v1861
        %v2049 = vmul.f32 %v1800, %v1863
        %v2050 = vmul.f32 %v1802, %v1865
        %v2051 = vmul.f32 %v1804, %v1867
        %v2052 = vpack.c.bf16 %v2050, %v2048
        %v2053 = vpack.c.bf16 %v2051, %v2049
        %v2054 = vmul.f32 %v1808, %v1861
        %v2055 = vmul.f32 %v1810, %v1863
        %v2056 = vmul.f32 %v1812, %v1865
        %v2057 = vmul.f32 %v1814, %v1867
        %v2058 = vpack.c.bf16 %v2056, %v2054
        %v2059 = vpack.c.bf16 %v2057, %v2055
        %v2060 = vmul.f32 %v1818, %v1861
        %v2061 = vmul.f32 %v1820, %v1863
        %v2062 = vmul.f32 %v1822, %v1865
        %v2063 = vmul.f32 %v1824, %v1867
        %v2064 = vpack.c.bf16 %v2062, %v2060
        %v2065 = vpack.c.bf16 %v2063, %v2061
        %v2162 = vunpack.c.l.b16 %v1952
        %v2163 = vunpack.c.l.b16 %v1953
        %v2164 = vunpack.c.l.b16 %v1954
        %v2165 = vunpack.c.l.b16 %v1955
        %v2166 = vunpack.c.l.b16 %v1956
        %v2167 = vunpack.c.l.b16 %v1957
        %v2168 = vunpack.c.l.b16 %v1958
        %v2169 = vunpack.c.l.b16 %v1959
        %v2170 = vunpack.c.l.b16 %v1960
        %v2171 = vunpack.c.l.b16 %v1961
        %v2172 = vunpack.c.l.b16 %v1962
        %v2173 = vunpack.c.l.b16 %v1963
        %v2174 = vunpack.c.l.b16 %v1964
        %v2175 = vunpack.c.l.b16 %v1965
        %v2176 = vunpack.c.l.b16 %v1966
        %v2177 = vunpack.c.l.b16 %v1967
        %v2178 = vunpack.c.l.b16 %v1968
        %v2179 = vunpack.c.l.b16 %v1969
        %v2180 = vunpack.c.l.b16 %v1970
        %v2181 = vunpack.c.l.b16 %v1971
        %v2182 = vunpack.c.l.b16 %v1972
        %v2183 = vunpack.c.l.b16 %v1973
        %v2184 = vunpack.c.l.b16 %v1974
        %v2185 = vunpack.c.l.b16 %v1975
        %v2186 = vunpack.c.l.b16 %v1976
        %v2187 = vunpack.c.l.b16 %v1977
        %v2188 = vunpack.c.l.b16 %v1978
        %v2189 = vunpack.c.l.b16 %v1979
        %v2190 = vunpack.c.l.b16 %v1980
        %v2191 = vunpack.c.l.b16 %v1981
        %v2192 = vunpack.c.l.b16 %v1982
        %v2193 = vunpack.c.l.b16 %v1983
        %v2194 = vunpack.c.l.b16 %v1984
        %v2195 = vunpack.c.l.b16 %v1985
        %v2196 = vunpack.c.l.b16 %v1986
        %v2197 = vunpack.c.l.b16 %v1987
        %v2198 = vunpack.c.l.b16 %v1988
        %v2199 = vunpack.c.l.b16 %v1989
        %v2200 = vunpack.c.l.b16 %v1990
        %v2201 = vunpack.c.l.b16 %v1991
        %v2202 = vunpack.c.l.b16 %v1992
        %v2203 = vunpack.c.l.b16 %v1993
        %v2204 = vunpack.c.l.b16 %v1994
        %v2205 = vunpack.c.l.b16 %v1995
        %v2206 = vunpack.c.l.b16 %v1996
        %v2207 = vunpack.c.l.b16 %v1997
        %v2208 = vunpack.c.l.b16 %v1998
        %v2209 = vunpack.c.l.b16 %v1999
        %v2210 = vunpack.c.l.b16 %v2000
        %v2211 = vunpack.c.l.b16 %v2001
        %v2212 = vunpack.c.l.b16 %v2002
        %v2213 = vunpack.c.l.b16 %v2003
        %v2214 = vunpack.c.l.b16 %v2004
        %v2215 = vunpack.c.l.b16 %v2005
        %v2216 = vunpack.c.l.b16 %v2006
        %v2217 = vunpack.c.l.b16 %v2007
        %v2218 = vunpack.c.l.b16 %v2008
        %v2219 = vunpack.c.l.b16 %v2009
        %v2220 = vunpack.c.l.b16 %v2010
        %v2221 = vunpack.c.l.b16 %v2011
        %v2222 = vunpack.c.l.b16 %v2012
        %v2223 = vunpack.c.l.b16 %v2013
        %v2224 = vunpack.c.l.b16 %v2014
        %v2225 = vunpack.c.l.b16 %v2015
        %v2226 = vunpack.c.l.b16 %v2016
        %v2227 = vunpack.c.l.b16 %v2017
        %v2228 = vunpack.c.l.b16 %v2018
        %v2229 = vunpack.c.l.b16 %v2019
        %v2230 = vunpack.c.l.b16 %v2020
        %v2231 = vunpack.c.l.b16 %v2021
        %v2232 = vunpack.c.l.b16 %v2022
        %v2233 = vunpack.c.l.b16 %v2023
        %v2234 = vunpack.c.l.b16 %v2024
        %v2235 = vunpack.c.l.b16 %v2025
        %v2236 = vunpack.c.l.b16 %v2026
        %v2237 = vunpack.c.l.b16 %v2027
        %v2238 = vunpack.c.l.b16 %v2028
        %v2239 = vunpack.c.l.b16 %v2029
        %v2240 = vunpack.c.l.b16 %v2030
        %v2241 = vunpack.c.l.b16 %v2031
        %v2242 = vunpack.c.l.b16 %v2032
        %v2243 = vunpack.c.l.b16 %v2033
        %v2244 = vunpack.c.l.b16 %v2034
        %v2245 = vunpack.c.l.b16 %v2035
        %v2246 = vunpack.c.l.b16 %v2036
        %v2247 = vunpack.c.l.b16 %v2037
        %v2248 = vunpack.c.l.b16 %v2038
        %v2249 = vunpack.c.l.b16 %v2039
        %v2250 = vunpack.c.l.b16 %v2040
        %v2251 = vunpack.c.l.b16 %v2041
        %v2252 = vunpack.c.l.b16 %v2042
        %v2253 = vunpack.c.l.b16 %v2043
        %v2254 = vunpack.c.l.b16 %v2044
        %v2255 = vunpack.c.l.b16 %v2045
        %v2256 = vunpack.c.l.b16 %v2046
        %v2257 = vunpack.c.l.b16 %v2047
        %v2258 = vpack.c.b16 %v2163, %v2162
        %v2259 = vpack.c.b16 %v2165, %v2164
        %v2260 = vpack.c.b16 %v2167, %v2166
        %v2261 = vpack.c.b16 %v2169, %v2168
        %v2262 = vpack.c.b16 %v2171, %v2170
        %v2263 = vpack.c.b16 %v2173, %v2172
        %v2264 = vpack.c.b16 %v2175, %v2174
        %v2265 = vpack.c.b16 %v2177, %v2176
        %v2266 = vpack.c.b16 %v2179, %v2178
        %v2267 = vpack.c.b16 %v2181, %v2180
        %v2268 = vpack.c.b16 %v2183, %v2182
        %v2269 = vpack.c.b16 %v2185, %v2184
        %v2270 = vpack.c.b16 %v2187, %v2186
        %v2271 = vpack.c.b16 %v2189, %v2188
        %v2272 = vpack.c.b16 %v2191, %v2190
        %v2273 = vpack.c.b16 %v2193, %v2192
        %v2274 = vpack.c.b16 %v2195, %v2194
        %v2275 = vpack.c.b16 %v2197, %v2196
        %v2276 = vpack.c.b16 %v2199, %v2198
        %v2277 = vpack.c.b16 %v2201, %v2200
        %v2278 = vpack.c.b16 %v2203, %v2202
        %v2279 = vpack.c.b16 %v2205, %v2204
        %v2280 = vpack.c.b16 %v2207, %v2206
        %v2281 = vpack.c.b16 %v2209, %v2208
        %v2282 = vpack.c.b16 %v2211, %v2210
        %v2283 = vpack.c.b16 %v2213, %v2212
        %v2284 = vpack.c.b16 %v2215, %v2214
        %v2285 = vpack.c.b16 %v2217, %v2216
        %v2286 = vpack.c.b16 %v2219, %v2218
        %v2287 = vpack.c.b16 %v2221, %v2220
        %v2288 = vpack.c.b16 %v2223, %v2222
        %v2289 = vpack.c.b16 %v2225, %v2224
        %v2290 = vpack.c.b16 %v2227, %v2226
        %v2291 = vpack.c.b16 %v2229, %v2228
        %v2292 = vpack.c.b16 %v2231, %v2230
        %v2293 = vpack.c.b16 %v2233, %v2232
        %v2294 = vpack.c.b16 %v2235, %v2234
        %v2295 = vpack.c.b16 %v2237, %v2236
        %v2296 = vpack.c.b16 %v2239, %v2238
        %v2297 = vpack.c.b16 %v2241, %v2240
        %v2298 = vpack.c.b16 %v2243, %v2242
        %v2299 = vpack.c.b16 %v2245, %v2244
        %v2300 = vpack.c.b16 %v2247, %v2246
        %v2301 = vpack.c.b16 %v2249, %v2248
        %v2302 = vpack.c.b16 %v2251, %v2250
        %v2303 = vpack.c.b16 %v2253, %v2252
        %v2304 = vpack.c.b16 %v2255, %v2254
        %v2305 = vpack.c.b16 %v2257, %v2256
        %2354 = vmatprep.subr.bf16.mxu0 0
        %2355 = vmatpush1.bf16.msra.mxu0 %v2258
        %2356 = vmatprep.subr.bf16.mxu0 0
        %2357 = vmatpush1.bf16.msra.mxu0 %v2259
        %2358 = vmatprep.subr.bf16.mxu0 0
        %2359 = vmatpush1.bf16.msra.mxu0 %v2260
        %2360 = vmatprep.subr.bf16.mxu0 0
        %2361 = vmatpush1.bf16.msra.mxu0 %v2261
        %2362 = vmatprep.subr.bf16.mxu0 0
        %2363 = vmatpush1.bf16.msra.mxu0 %v2262
        %2364 = vmatprep.subr.bf16.mxu0 0
        %2365 = vmatpush1.bf16.msra.mxu0 %v2263
        %2366 = vmatprep.subr.bf16.mxu0 0
        %2367 = vmatpush1.bf16.msra.mxu0 %v2264
        %2368 = vmatprep.subr.bf16.mxu0 0
        %2369 = vmatpush1.bf16.msra.mxu0 %v2265
        %2370 = vmatprep.subr.bf16.mxu0 0
        %2371 = vmatpush1.bf16.msra.mxu0 %v2266
        %2372 = vmatprep.subr.bf16.mxu0 0
        %2373 = vmatpush1.bf16.msra.mxu0 %v2267
        %2374 = vmatprep.subr.bf16.mxu0 0
        %2375 = vmatpush1.bf16.msra.mxu0 %v2268
        %2376 = vmatprep.subr.bf16.mxu0 0
        %2377 = vmatpush1.bf16.msra.mxu0 %v2269
        %2378 = vmatprep.subr.bf16.mxu0 0
        %2379 = vmatpush1.bf16.msra.mxu0 %v2270
        %2380 = vmatprep.subr.bf16.mxu0 0
        %2381 = vmatpush1.bf16.msra.mxu0 %v2271
        %2382 = vmatprep.subr.bf16.mxu0 0
        %2383 = vmatpush1.bf16.msra.mxu0 %v2272
        %2384 = vmatprep.subr.bf16.mxu0 0
        %2385 = vmatpush1.bf16.msra.mxu0 %v2273
        %2386 = vmatprep.mubr.bf16.mxu0 %v2053
        %2387 = vmatmul.mubr.bf16.gmra.mrb[0].mxu0 %v2052
        %v2388 = vpop.f32.mrb[0].mxu0
        %v2389 = vadd.f32 0.0, %v2388
        %v2390 = vpop.f32.mrb[0].mxu0
        %v2391 = vpop.f32.mrb[0].mxu0
        %v2392 = vadd.f32 0.0, %v2391
        %v2393 = vpop.f32.mrb[0].mxu0
        %2394 = vdwg.mxu0
        %2395 = vmatprep.subr.bf16.mxu0 0
        %2396 = vmatpush1.bf16.msra.mxu0 %v2274
        %2397 = vmatprep.subr.bf16.mxu0 0
        %2398 = vmatpush1.bf16.msra.mxu0 %v2275
        %2399 = vmatprep.subr.bf16.mxu0 0
        %2400 = vmatpush1.bf16.msra.mxu0 %v2276
        %2401 = vmatprep.subr.bf16.mxu0 0
        %2402 = vmatpush1.bf16.msra.mxu0 %v2277
        %2403 = vmatprep.subr.bf16.mxu0 0
        %2404 = vmatpush1.bf16.msra.mxu0 %v2278
        %2405 = vmatprep.subr.bf16.mxu0 0
        %2406 = vmatpush1.bf16.msra.mxu0 %v2279
        %2407 = vmatprep.subr.bf16.mxu0 0
        %2408 = vmatpush1.bf16.msra.mxu0 %v2280
        %2409 = vmatprep.subr.bf16.mxu0 0
        %2410 = vmatpush1.bf16.msra.mxu0 %v2281
        %2411 = vmatprep.subr.bf16.mxu0 0
        %2412 = vmatpush1.bf16.msra.mxu0 %v2282
        %2413 = vmatprep.subr.bf16.mxu0 0
        %2414 = vmatpush1.bf16.msra.mxu0 %v2283
        %2415 = vmatprep.subr.bf16.mxu0 0
        %2416 = vmatpush1.bf16.msra.mxu0 %v2284
        %2417 = vmatprep.subr.bf16.mxu0 0
        %2418 = vmatpush1.bf16.msra.mxu0 %v2285
        %2419 = vmatprep.subr.bf16.mxu0 0
        %2420 = vmatpush1.bf16.msra.mxu0 %v2286
        %2421 = vmatprep.subr.bf16.mxu0 0
        %2422 = vmatpush1.bf16.msra.mxu0 %v2287
        %2423 = vmatprep.subr.bf16.mxu0 0
        %2424 = vmatpush1.bf16.msra.mxu0 %v2288
        %2425 = vmatprep.subr.bf16.mxu0 0
        %2426 = vmatpush1.bf16.msra.mxu0 %v2289
        %2427 = vmatprep.mubr.bf16.mxu0 %v2059
        %2428 = vmatmul.mubr.bf16.gmra.mrb[0].mxu0 %v2058
        %v2429 = vpop.f32.mrb[0].mxu0
        %v2430 = vadd.f32 %v2389, %v2429
        %v2431 = vpop.f32.mrb[0].mxu0
        %v2432 = vpop.f32.mrb[0].mxu0
        %v2433 = vadd.f32 %v2392, %v2432
        %v2434 = vpop.f32.mrb[0].mxu0
        %2435 = vdwg.mxu0
        %2436 = vmatprep.subr.bf16.mxu0 0
        %2437 = vmatpush1.bf16.msra.mxu0 %v2290
        %2438 = vmatprep.subr.bf16.mxu0 0
        %2439 = vmatpush1.bf16.msra.mxu0 %v2291
        %2440 = vmatprep.subr.bf16.mxu0 0
        %2441 = vmatpush1.bf16.msra.mxu0 %v2292
        %2442 = vmatprep.subr.bf16.mxu0 0
        %2443 = vmatpush1.bf16.msra.mxu0 %v2293
        %2444 = vmatprep.subr.bf16.mxu0 0
        %2445 = vmatpush1.bf16.msra.mxu0 %v2294
        %2446 = vmatprep.subr.bf16.mxu0 0
        %2447 = vmatpush1.bf16.msra.mxu0 %v2295
        %2448 = vmatprep.subr.bf16.mxu0 0
        %2449 = vmatpush1.bf16.msra.mxu0 %v2296
        %2450 = vmatprep.subr.bf16.mxu0 0
        %2451 = vmatpush1.bf16.msra.mxu0 %v2297
        %2452 = vmatprep.subr.bf16.mxu0 0
        %2453 = vmatpush1.bf16.msra.mxu0 %v2298
        %2454 = vmatprep.subr.bf16.mxu0 0
        %2455 = vmatpush1.bf16.msra.mxu0 %v2299
        %2456 = vmatprep.subr.bf16.mxu0 0
        %2457 = vmatpush1.bf16.msra.mxu0 %v2300
        %2458 = vmatprep.subr.bf16.mxu0 0
        %2459 = vmatpush1.bf16.msra.mxu0 %v2301
        %2460 = vmatprep.subr.bf16.mxu0 0
        %2461 = vmatpush1.bf16.msra.mxu0 %v2302
        %2462 = vmatprep.subr.bf16.mxu0 0
        %2463 = vmatpush1.bf16.msra.mxu0 %v2303
        %2464 = vmatprep.subr.bf16.mxu0 0
        %2465 = vmatpush1.bf16.msra.mxu0 %v2304
        %2466 = vmatprep.subr.bf16.mxu0 0
        %2467 = vmatpush1.bf16.msra.mxu0 %v2305
        %2468 = vmatprep.mubr.bf16.mxu0 %v2065
        %2469 = vmatmul.mubr.bf16.gmra.mrb[0].mxu0 %v2064
        %v2470 = vpop.f32.mrb[0].mxu0
        %v2471 = vadd.f32 %v2430, %v2470
        %v2472 = vpop.f32.mrb[0].mxu0
        %v2473 = vpop.f32.mrb[0].mxu0
        %v2474 = vadd.f32 %v2433, %v2473
        %v2475 = vpop.f32.mrb[0].mxu0
        %2476 = vdwg.mxu0
        %v2477 = vmul.f32 %v1798, %v1871
        %v2478 = vmul.f32 %v1800, %v1873
        %v2479 = vmul.f32 %v1802, %v1875
        %v2480 = vmul.f32 %v1804, %v1877
        %v2481 = vpack.c.bf16 %v2479, %v2477
        %v2482 = vpack.c.bf16 %v2480, %v2478
        %v2483 = vmul.f32 %v1808, %v1871
        %v2484 = vmul.f32 %v1810, %v1873
        %v2485 = vmul.f32 %v1812, %v1875
        %v2486 = vmul.f32 %v1814, %v1877
        %v2487 = vpack.c.bf16 %v2485, %v2483
        %v2488 = vpack.c.bf16 %v2486, %v2484
        %v2489 = vmul.f32 %v1818, %v1871
        %v2490 = vmul.f32 %v1820, %v1873
        %v2491 = vmul.f32 %v1822, %v1875
        %v2492 = vmul.f32 %v1824, %v1877
        %v2493 = vpack.c.bf16 %v2491, %v2489
        %v2494 = vpack.c.bf16 %v2492, %v2490
        %2495 = vmatprep.subr.bf16.mxu0 0
        %2496 = vmatpush1.bf16.msra.mxu0 %v2258
        %2497 = vmatprep.subr.bf16.mxu0 0
        %2498 = vmatpush1.bf16.msra.mxu0 %v2259
        %2499 = vmatprep.subr.bf16.mxu0 0
        %2500 = vmatpush1.bf16.msra.mxu0 %v2260
        %2501 = vmatprep.subr.bf16.mxu0 0
        %2502 = vmatpush1.bf16.msra.mxu0 %v2261
        %2503 = vmatprep.subr.bf16.mxu0 0
        %2504 = vmatpush1.bf16.msra.mxu0 %v2262
        %2505 = vmatprep.subr.bf16.mxu0 0
        %2506 = vmatpush1.bf16.msra.mxu0 %v2263
        %2507 = vmatprep.subr.bf16.mxu0 0
        %2508 = vmatpush1.bf16.msra.mxu0 %v2264
        %2509 = vmatprep.subr.bf16.mxu0 0
        %2510 = vmatpush1.bf16.msra.mxu0 %v2265
        %2511 = vmatprep.subr.bf16.mxu0 0
        %2512 = vmatpush1.bf16.msra.mxu0 %v2266
        %2513 = vmatprep.subr.bf16.mxu0 0
        %2514 = vmatpush1.bf16.msra.mxu0 %v2267
        %2515 = vmatprep.subr.bf16.mxu0 0
        %2516 = vmatpush1.bf16.msra.mxu0 %v2268
        %2517 = vmatprep.subr.bf16.mxu0 0
        %2518 = vmatpush1.bf16.msra.mxu0 %v2269
        %2519 = vmatprep.subr.bf16.mxu0 0
        %2520 = vmatpush1.bf16.msra.mxu0 %v2270
        %2521 = vmatprep.subr.bf16.mxu0 0
        %2522 = vmatpush1.bf16.msra.mxu0 %v2271
        %2523 = vmatprep.subr.bf16.mxu0 0
        %2524 = vmatpush1.bf16.msra.mxu0 %v2272
        %2525 = vmatprep.subr.bf16.mxu0 0
        %2526 = vmatpush1.bf16.msra.mxu0 %v2273
        %2527 = vmatprep.mubr.bf16.mxu0 %v2482
        %2528 = vmatmul.mubr.bf16.gmra.mrb[0].mxu0 %v2481
        %v2529 = vpop.f32.mrb[0].mxu0
        %v2530 = vadd.f32 0.0, %v2529
        %v2531 = vpop.f32.mrb[0].mxu0
        %v2532 = vpop.f32.mrb[0].mxu0
        %v2533 = vadd.f32 0.0, %v2532
        %v2534 = vpop.f32.mrb[0].mxu0
        %2535 = vdwg.mxu0
        %2536 = vmatprep.subr.bf16.mxu0 0
        %2537 = vmatpush1.bf16.msra.mxu0 %v2274
        %2538 = vmatprep.subr.bf16.mxu0 0
        %2539 = vmatpush1.bf16.msra.mxu0 %v2275
        %2540 = vmatprep.subr.bf16.mxu0 0
        %2541 = vmatpush1.bf16.msra.mxu0 %v2276
        %2542 = vmatprep.subr.bf16.mxu0 0
        %2543 = vmatpush1.bf16.msra.mxu0 %v2277
        %2544 = vmatprep.subr.bf16.mxu0 0
        %2545 = vmatpush1.bf16.msra.mxu0 %v2278
        %2546 = vmatprep.subr.bf16.mxu0 0
        %2547 = vmatpush1.bf16.msra.mxu0 %v2279
        %2548 = vmatprep.subr.bf16.mxu0 0
        %2549 = vmatpush1.bf16.msra.mxu0 %v2280
        %2550 = vmatprep.subr.bf16.mxu0 0
        %2551 = vmatpush1.bf16.msra.mxu0 %v2281
        %2552 = vmatprep.subr.bf16.mxu0 0
        %2553 = vmatpush1.bf16.msra.mxu0 %v2282
        %2554 = vmatprep.subr.bf16.mxu0 0
        %2555 = vmatpush1.bf16.msra.mxu0 %v2283
        %2556 = vmatprep.subr.bf16.mxu0 0
        %2557 = vmatpush1.bf16.msra.mxu0 %v2284
        %2558 = vmatprep.subr.bf16.mxu0 0
        %2559 = vmatpush1.bf16.msra.mxu0 %v2285
        %2560 = vmatprep.subr.bf16.mxu0 0
        %2561 = vmatpush1.bf16.msra.mxu0 %v2286
        %2562 = vmatprep.subr.bf16.mxu0 0
        %2563 = vmatpush1.bf16.msra.mxu0 %v2287
        %2564 = vmatprep.subr.bf16.mxu0 0
        %2565 = vmatpush1.bf16.msra.mxu0 %v2288
        %2566 = vmatprep.subr.bf16.mxu0 0
        %2567 = vmatpush1.bf16.msra.mxu0 %v2289
        %2568 = vmatprep.mubr.bf16.mxu0 %v2488
        %2569 = vmatmul.mubr.bf16.gmra.mrb[0].mxu0 %v2487
        %v2570 = vpop.f32.mrb[0].mxu0
        %v2571 = vadd.f32 %v2530, %v2570
        %v2572 = vpop.f32.mrb[0].mxu0
        %v2573 = vpop.f32.mrb[0].mxu0
        %v2574 = vadd.f32 %v2533, %v2573
        %v2575 = vpop.f32.mrb[0].mxu0
        %2576 = vdwg.mxu0
        %2577 = vmatprep.subr.bf16.mxu0 0
        %2578 = vmatpush1.bf16.msra.mxu0 %v2290
        %2579 = vmatprep.subr.bf16.mxu0 0
        %2580 = vmatpush1.bf16.msra.mxu0 %v2291
        %2581 = vmatprep.subr.bf16.mxu0 0
        %2582 = vmatpush1.bf16.msra.mxu0 %v2292
        %2583 = vmatprep.subr.bf16.mxu0 0
        %2584 = vmatpush1.bf16.msra.mxu0 %v2293
        %2585 = vmatprep.subr.bf16.mxu0 0
        %2586 = vmatpush1.bf16.msra.mxu0 %v2294
        %2587 = vmatprep.subr.bf16.mxu0 0
        %2588 = vmatpush1.bf16.msra.mxu0 %v2295
        %2589 = vmatprep.subr.bf16.mxu0 0
        %2590 = vmatpush1.bf16.msra.mxu0 %v2296
        %2591 = vmatprep.subr.bf16.mxu0 0
        %2592 = vmatpush1.bf16.msra.mxu0 %v2297
        %2593 = vmatprep.subr.bf16.mxu0 0
        %2594 = vmatpush1.bf16.msra.mxu0 %v2298
        %2595 = vmatprep.subr.bf16.mxu0 0
        %2596 = vmatpush1.bf16.msra.mxu0 %v2299
        %2597 = vmatprep.subr.bf16.mxu0 0
        %2598 = vmatpush1.bf16.msra.mxu0 %v2300
        %2599 = vmatprep.subr.bf16.mxu0 0
        %2600 = vmatpush1.bf16.msra.mxu0 %v2301
        %2601 = vmatprep.subr.bf16.mxu0 0
        %2602 = vmatpush1.bf16.msra.mxu0 %v2302
        %2603 = vmatprep.subr.bf16.mxu0 0
        %2604 = vmatpush1.bf16.msra.mxu0 %v2303
        %2605 = vmatprep.subr.bf16.mxu0 0
        %2606 = vmatpush1.bf16.msra.mxu0 %v2304
        %2607 = vmatprep.subr.bf16.mxu0 0
        %2608 = vmatpush1.bf16.msra.mxu0 %v2305
        %2609 = vmatprep.mubr.bf16.mxu0 %v2494
        %2610 = vmatmul.mubr.bf16.gmra.mrb[0].mxu0 %v2493
        %v2611 = vpop.f32.mrb[0].mxu0
        %v2612 = vadd.f32 %v2571, %v2611
        %v2613 = vpop.f32.mrb[0].mxu0
        %v2614 = vpop.f32.mrb[0].mxu0
        %v2615 = vadd.f32 %v2574, %v2614
        %v2616 = vpop.f32.mrb[0].mxu0
        %2617 = vdwg.mxu0
        %v2618 = vmul.f32 %v1798, %v1881
        %v2619 = vmul.f32 %v1800, %v1883
        %v2620 = vmul.f32 %v1802, %v1885
        %v2621 = vmul.f32 %v1804, %v1887
        %v2622 = vpack.c.bf16 %v2620, %v2618
        %v2623 = vpack.c.bf16 %v2621, %v2619
        %v2624 = vmul.f32 %v1808, %v1881
        %v2625 = vmul.f32 %v1810, %v1883
        %v2626 = vmul.f32 %v1812, %v1885
        %v2627 = vmul.f32 %v1814, %v1887
        %v2628 = vpack.c.bf16 %v2626, %v2624
        %v2629 = vpack.c.bf16 %v2627, %v2625
        %v2630 = vmul.f32 %v1818, %v1881
        %v2631 = vmul.f32 %v1820, %v1883
        %v2632 = vmul.f32 %v1822, %v1885
        %v2633 = vmul.f32 %v1824, %v1887
        %v2634 = vpack.c.bf16 %v2632, %v2630
        %v2635 = vpack.c.bf16 %v2633, %v2631
        %2636 = vmatprep.subr.bf16.mxu0 0
        %2637 = vmatpush1.bf16.msra.mxu0 %v2258
        %2638 = vmatprep.subr.bf16.mxu0 0
        %2639 = vmatpush1.bf16.msra.mxu0 %v2259
        %2640 = vmatprep.subr.bf16.mxu0 0
        %2641 = vmatpush1.bf16.msra.mxu0 %v2260
        %2642 = vmatprep.subr.bf16.mxu0 0
        %2643 = vmatpush1.bf16.msra.mxu0 %v2261
        %2644 = vmatprep.subr.bf16.mxu0 0
        %2645 = vmatpush1.bf16.msra.mxu0 %v2262
        %2646 = vmatprep.subr.bf16.mxu0 0
        %2647 = vmatpush1.bf16.msra.mxu0 %v2263
        %2648 = vmatprep.subr.bf16.mxu0 0
        %2649 = vmatpush1.bf16.msra.mxu0 %v2264
        %2650 = vmatprep.subr.bf16.mxu0 0
        %2651 = vmatpush1.bf16.msra.mxu0 %v2265
        %2652 = vmatprep.subr.bf16.mxu0 0
        %2653 = vmatpush1.bf16.msra.mxu0 %v2266
        %2654 = vmatprep.subr.bf16.mxu0 0
        %2655 = vmatpush1.bf16.msra.mxu0 %v2267
        %2656 = vmatprep.subr.bf16.mxu0 0
        %2657 = vmatpush1.bf16.msra.mxu0 %v2268
        %2658 = vmatprep.subr.bf16.mxu0 0
        %2659 = vmatpush1.bf16.msra.mxu0 %v2269
        %2660 = vmatprep.subr.bf16.mxu0 0
        %2661 = vmatpush1.bf16.msra.mxu0 %v2270
        %2662 = vmatprep.subr.bf16.mxu0 0
        %2663 = vmatpush1.bf16.msra.mxu0 %v2271
        %2664 = vmatprep.subr.bf16.mxu0 0
        %2665 = vmatpush1.bf16.msra.mxu0 %v2272
        %2666 = vmatprep.subr.bf16.mxu0 0
        %2667 = vmatpush1.bf16.msra.mxu0 %v2273
        %2668 = vmatprep.mubr.bf16.mxu0 %v2623
        %2669 = vmatmul.mubr.bf16.gmra.mrb[0].mxu0 %v2622
        %v2670 = vpop.f32.mrb[0].mxu0
        %v2671 = vadd.f32 0.0, %v2670
        %v2672 = vpop.f32.mrb[0].mxu0
        %v2673 = vpop.f32.mrb[0].mxu0
        %v2674 = vadd.f32 0.0, %v2673
        %v2675 = vpop.f32.mrb[0].mxu0
        %2676 = vdwg.mxu0
        %2677 = vmatprep.subr.bf16.mxu0 0
        %2678 = vmatpush1.bf16.msra.mxu0 %v2274
        %2679 = vmatprep.subr.bf16.mxu0 0
        %2680 = vmatpush1.bf16.msra.mxu0 %v2275
        %2681 = vmatprep.subr.bf16.mxu0 0
        %2682 = vmatpush1.bf16.msra.mxu0 %v2276
        %2683 = vmatprep.subr.bf16.mxu0 0
        %2684 = vmatpush1.bf16.msra.mxu0 %v2277
        %2685 = vmatprep.subr.bf16.mxu0 0
        %2686 = vmatpush1.bf16.msra.mxu0 %v2278
        %2687 = vmatprep.subr.bf16.mxu0 0
        %2688 = vmatpush1.bf16.msra.mxu0 %v2279
        %2689 = vmatprep.subr.bf16.mxu0 0
        %2690 = vmatpush1.bf16.msra.mxu0 %v2280
        %2691 = vmatprep.subr.bf16.mxu0 0
        %2692 = vmatpush1.bf16.msra.mxu0 %v2281
        %2693 = vmatprep.subr.bf16.mxu0 0
        %2694 = vmatpush1.bf16.msra.mxu0 %v2282
        %2695 = vmatprep.subr.bf16.mxu0 0
        %2696 = vmatpush1.bf16.msra.mxu0 %v2283
        %2697 = vmatprep.subr.bf16.mxu0 0
        %2698 = vmatpush1.bf16.msra.mxu0 %v2284
        %2699 = vmatprep.subr.bf16.mxu0 0
        %2700 = vmatpush1.bf16.msra.mxu0 %v2285
        %2701 = vmatprep.subr.bf16.mxu0 0
        %2702 = vmatpush1.bf16.msra.mxu0 %v2286
        %2703 = vmatprep.subr.bf16.mxu0 0
        %2704 = vmatpush1.bf16.msra.mxu0 %v2287
        %2705 = vmatprep.subr.bf16.mxu0 0
        %2706 = vmatpush1.bf16.msra.mxu0 %v2288
        %2707 = vmatprep.subr.bf16.mxu0 0
        %2708 = vmatpush1.bf16.msra.mxu0 %v2289
        %2709 = vmatprep.mubr.bf16.mxu0 %v2629
        %2710 = vmatmul.mubr.bf16.gmra.mrb[0].mxu0 %v2628
        %v2711 = vpop.f32.mrb[0].mxu0
        %v2712 = vadd.f32 %v2671, %v2711
        %v2713 = vpop.f32.mrb[0].mxu0
        %v2714 = vpop.f32.mrb[0].mxu0
        %v2715 = vadd.f32 %v2674, %v2714
        %v2716 = vpop.f32.mrb[0].mxu0
        %2717 = vdwg.mxu0
        %2718 = vmatprep.subr.bf16.mxu0 0
        %2719 = vmatpush1.bf16.msra.mxu0 %v2290
        %2720 = vmatprep.subr.bf16.mxu0 0
        %2721 = vmatpush1.bf16.msra.mxu0 %v2291
        %2722 = vmatprep.subr.bf16.mxu0 0
        %2723 = vmatpush1.bf16.msra.mxu0 %v2292
        %2724 = vmatprep.subr.bf16.mxu0 0
        %2725 = vmatpush1.bf16.msra.mxu0 %v2293
        %2726 = vmatprep.subr.bf16.mxu0 0
        %2727 = vmatpush1.bf16.msra.mxu0 %v2294
        %2728 = vmatprep.subr.bf16.mxu0 0
        %2729 = vmatpush1.bf16.msra.mxu0 %v2295
        %2730 = vmatprep.subr.bf16.mxu0 0
        %2731 = vmatpush1.bf16.msra.mxu0 %v2296
        %2732 = vmatprep.subr.bf16.mxu0 0
        %2733 = vmatpush1.bf16.msra.mxu0 %v2297
        %2734 = vmatprep.subr.bf16.mxu0 0
        %2735 = vmatpush1.bf16.msra.mxu0 %v2298
        %2736 = vmatprep.subr.bf16.mxu0 0
        %2737 = vmatpush1.bf16.msra.mxu0 %v2299
        %2738 = vmatprep.subr.bf16.mxu0 0
        %2739 = vmatpush1.bf16.msra.mxu0 %v2300
        %2740 = vmatprep.subr.bf16.mxu0 0
        %2741 = vmatpush1.bf16.msra.mxu0 %v2301
        %2742 = vmatprep.subr.bf16.mxu0 0
        %2743 = vmatpush1.bf16.msra.mxu0 %v2302
        %2744 = vmatprep.subr.bf16.mxu0 0
        %2745 = vmatpush1.bf16.msra.mxu0 %v2303
        %2746 = vmatprep.subr.bf16.mxu0 0
        %2747 = vmatpush1.bf16.msra.mxu0 %v2304
        %2748 = vmatprep.subr.bf16.mxu0 0
        %2749 = vmatpush1.bf16.msra.mxu0 %v2305
        %2750 = vmatprep.mubr.bf16.mxu0 %v2635
        %2751 = vmatmul.mubr.bf16.gmra.mrb[0].mxu0 %v2634
        %v2752 = vpop.f32.mrb[0].mxu0
        %v2753 = vadd.f32 %v2712, %v2752
        %v2754 = vpop.f32.mrb[0].mxu0
        %v2755 = vpop.f32.mrb[0].mxu0
        %v2756 = vadd.f32 %v2715, %v2755
        %v2757 = vpop.f32.mrb[0].mxu0
        %2758 = vdwg.mxu0
        %v2759 = vmax.f32 %v2471, %v2612
        %v2760 = vmax.f32 %v2474, %v2615
        %v2761 = vmax.f32 %v2759, %v2753
        %v2762 = vmax.f32 %v2760, %v2756
        %v2763 = vsub.f32 %v2471, %v2761
        %v2764 = vsub.f32 %v2474, %v2762
        %v2765 = vmul.f32 %v2763, 1.442695
        %v2766 = vpow.pop %v2765
        %v2767 = vmul.f32 %v2764, 1.442695
        %v2768 = vpow.pop %v2767
        %v2769 = vsub.f32 %v2612, %v2761
        %v2770 = vsub.f32 %v2615, %v2762
        %v2771 = vmul.f32 %v2769, 1.442695
        %v2772 = vpow.pop %v2771
        %v2773 = vmul.f32 %v2770, 1.442695
        %v2774 = vpow.pop %v2773
        %v2775 = vsub.f32 %v2753, %v2761
        %v2776 = vsub.f32 %v2756, %v2762
        %v2777 = vmul.f32 %v2775, 1.442695
        %v2778 = vpow.pop %v2777
        %v2779 = vmul.f32 %v2776, 1.442695
        %v2780 = vpow.pop %v2779
        %v2781 = vadd.f32 %v2766, %v2772
        %v2782 = vadd.f32 %v2768, %v2774
        %v2783 = vadd.f32 %v2781, %v2778
        %v2784 = vadd.f32 %v2782, %v2780
        %v2785 = vrcp.pop %v2783
        %v2786 = vmul.f32 0.33333334, %v2785
        %v2787 = vrcp.pop %v2784
        %v2788 = vmul.f32 0.33333334, %v2787
        %v2789 = vld [vmem:[#allocation20] sm:$0xff]
        %v2790 = vld [vmem:[#allocation20 + $0x8] sm:$0xff]
        %v2791 = vld [vmem:[#allocation20 + $0x10] sm:$0xff]
        %v2792 = vld [vmem:[#allocation20 + $0x18] sm:$0xff]
        %v2793 = vld [vmem:[#allocation20 + $0x20] sm:$0xff]
        %v2794 = vld [vmem:[#allocation20 + $0x28] sm:$0xff]
        %v2795 = vld [vmem:[#allocation20 + $0x30] sm:$0xff]
        %v2796 = vld [vmem:[#allocation20 + $0x38] sm:$0xff]
        %v2797 = vld [vmem:[#allocation20 + $0x40] sm:$0xff]
        %v2798 = vld [vmem:[#allocation20 + $0x48] sm:$0xff]
        %v2799 = vld [vmem:[#allocation20 + $0x50] sm:$0xff]
        %v2800 = vld [vmem:[#allocation20 + $0x58] sm:$0xff]
        %v2801 = vld [vmem:[#allocation20 + $0x60] sm:$0xff]
        %v2802 = vld [vmem:[#allocation20 + $0x68] sm:$0xff]
        %v2803 = vld [vmem:[#allocation20 + $0x70] sm:$0xff]
        %v2804 = vld [vmem:[#allocation20 + $0x78] sm:$0xff]
        %v2805 = vmul.f32 %v2766, %v2786
        %v2806 = vmul.f32 %v2768, %v2788
        %v2807 = vpack.c.bf16 %v2806, %v2805
        %v2824 = vunpack.c.l.b16 %v2789
        %v2825 = vunpack.c.h.b16 %v2789
        %v2826 = vunpack.c.l.b16 %v2790
        %v2827 = vunpack.c.h.b16 %v2790
        %v2828 = vunpack.c.l.b16 %v2791
        %v2829 = vunpack.c.h.b16 %v2791
        %v2830 = vunpack.c.l.b16 %v2792
        %v2831 = vunpack.c.h.b16 %v2792
        %v2832 = vunpack.c.l.b16 %v2793
        %v2833 = vunpack.c.h.b16 %v2793
        %v2834 = vunpack.c.l.b16 %v2794
        %v2835 = vunpack.c.h.b16 %v2794
        %v2836 = vunpack.c.l.b16 %v2795
        %v2837 = vunpack.c.h.b16 %v2795
        %v2838 = vunpack.c.l.b16 %v2796
        %v2839 = vunpack.c.h.b16 %v2796
        %v2840 = vunpack.c.l.b16 %v2797
        %v2841 = vunpack.c.h.b16 %v2797
        %v2842 = vunpack.c.l.b16 %v2798
        %v2843 = vunpack.c.h.b16 %v2798
        %v2844 = vunpack.c.l.b16 %v2799
        %v2845 = vunpack.c.h.b16 %v2799
        %v2846 = vunpack.c.l.b16 %v2800
        %v2847 = vunpack.c.h.b16 %v2800
        %v2848 = vunpack.c.l.b16 %v2801
        %v2849 = vunpack.c.h.b16 %v2801
        %v2850 = vunpack.c.l.b16 %v2802
        %v2851 = vunpack.c.h.b16 %v2802
        %v2852 = vunpack.c.l.b16 %v2803
        %v2853 = vunpack.c.h.b16 %v2803
        %v2854 = vunpack.c.l.b16 %v2804
        %v2855 = vunpack.c.h.b16 %v2804
        %v2856 = vpack.c.b16 %v2826, %v2824
        %v2857 = vpack.c.b16 %v2827, %v2825
        %v2858 = vpack.c.b16 %v2830, %v2828
        %v2859 = vpack.c.b16 %v2831, %v2829
        %v2860 = vpack.c.b16 %v2834, %v2832
        %v2861 = vpack.c.b16 %v2835, %v2833
        %v2862 = vpack.c.b16 %v2838, %v2836
        %v2863 = vpack.c.b16 %v2839, %v2837
        %v2864 = vpack.c.b16 %v2842, %v2840
        %v2865 = vpack.c.b16 %v2843, %v2841
        %v2866 = vpack.c.b16 %v2846, %v2844
        %v2867 = vpack.c.b16 %v2847, %v2845
        %v2868 = vpack.c.b16 %v2850, %v2848
        %v2869 = vpack.c.b16 %v2851, %v2849
        %v2870 = vpack.c.b16 %v2854, %v2852
        %v2871 = vpack.c.b16 %v2855, %v2853
        %2888 = vmatprep.subr.bf16.mxu0 %v2857
        %2889 = vmatpush1.bf16.msra.mxu0 %v2856
        %2890 = vmatprep.subr.bf16.mxu0 %v2859
        %2891 = vmatpush1.bf16.msra.mxu0 %v2858
        %2892 = vmatprep.subr.bf16.mxu0 %v2861
        %2893 = vmatpush1.bf16.msra.mxu0 %v2860
        %2894 = vmatprep.subr.bf16.mxu0 %v2863
        %2895 = vmatpush1.bf16.msra.mxu0 %v2862
        %2896 = vmatprep.subr.bf16.mxu0 %v2865
        %2897 = vmatpush1.bf16.msra.mxu0 %v2864
        %2898 = vmatprep.subr.bf16.mxu0 %v2867
        %2899 = vmatpush1.bf16.msra.mxu0 %v2866
        %2900 = vmatprep.subr.bf16.mxu0 %v2869
        %2901 = vmatpush1.bf16.msra.mxu0 %v2868
        %2902 = vmatprep.subr.bf16.mxu0 %v2871
        %2903 = vmatpush1.bf16.msra.mxu0 %v2870
        %2904 = vmatprep.subr.bf16.mxu0 0
        %2905 = vmatpush1.bf16.msra.mxu0 0
        %2906 = vmatprep.subr.bf16.mxu0 0
        %2907 = vmatpush1.bf16.msra.mxu0 0
        %2908 = vmatprep.subr.bf16.mxu0 0
        %2909 = vmatpush1.bf16.msra.mxu0 0
        %2910 = vmatprep.subr.bf16.mxu0 0
        %2911 = vmatpush1.bf16.msra.mxu0 0
        %2912 = vmatprep.subr.bf16.mxu0 0
        %2913 = vmatpush1.bf16.msra.mxu0 0
        %2914 = vmatprep.subr.bf16.mxu0 0
        %2915 = vmatpush1.bf16.msra.mxu0 0
        %2916 = vmatprep.subr.bf16.mxu0 0
        %2917 = vmatpush1.bf16.msra.mxu0 0
        %2918 = vmatprep.subr.bf16.mxu0 0
        %2919 = vmatpush1.bf16.msra.mxu0 0
        %2920 = vmatprep.mubr.bf16.mxu0 0
        %2921 = vmatmul.mubr.bf16.gmra.mrb[0].mxu0 %v2807
        %v2922 = vpop.f32.mrb[0].mxu0
        %v2923 = vadd.f32 0.0, %v2922
        %v2924 = vpop.f32.mrb[0].mxu0
        %v2925 = vadd.f32 0.0, %v2924
        %v2926 = vpop.f32.mrb[0].mxu0
        %v2927 = vadd.f32 0.0, %v2926
        %v2928 = vpop.f32.mrb[0].mxu0
        %v2929 = vadd.f32 0.0, %v2928
        %2930 = vdwg.mxu0
        %v2931 = vmul.f32 %v2923, %v1924
        %v2932 = vmul.f32 %v2925, %v1926
        %v2933 = vmul.f32 %v2927, %v1928
        %v2934 = vmul.f32 %v2929, %v1930
        %v2935 = vadd.f32 %v2931, 0.0
        %v2936 = vadd.f32 %v2932, 0.0
        %v2937 = vadd.f32 %v2933, 0.0
        %v2938 = vadd.f32 %v2934, 0.0
        %v2939 = vmul.f32 %v2772, %v2786
        %v2940 = vmul.f32 %v2774, %v2788
        %v2941 = vpack.c.bf16 %v2940, %v2939
        %2942 = vmatprep.subr.bf16.mxu0 %v2857
        %2943 = vmatpush1.bf16.msra.mxu0 %v2856
        %2944 = vmatprep.subr.bf16.mxu0 %v2859
        %2945 = vmatpush1.bf16.msra.mxu0 %v2858
        %2946 = vmatprep.subr.bf16.mxu0 %v2861
        %2947 = vmatpush1.bf16.msra.mxu0 %v2860
        %2948 = vmatprep.subr.bf16.mxu0 %v2863
        %2949 = vmatpush1.bf16.msra.mxu0 %v2862
        %2950 = vmatprep.subr.bf16.mxu0 %v2865
        %2951 = vmatpush1.bf16.msra.mxu0 %v2864
        %2952 = vmatprep.subr.bf16.mxu0 %v2867
        %2953 = vmatpush1.bf16.msra.mxu0 %v2866
        %2954 = vmatprep.subr.bf16.mxu0 %v2869
        %2955 = vmatpush1.bf16.msra.mxu0 %v2868
        %2956 = vmatprep.subr.bf16.mxu0 %v2871
        %2957 = vmatpush1.bf16.msra.mxu0 %v2870
        %2958 = vmatprep.subr.bf16.mxu0 0
        %2959 = vmatpush1.bf16.msra.mxu0 0
        %2960 = vmatprep.subr.bf16.mxu0 0
        %2961 = vmatpush1.bf16.msra.mxu0 0
        %2962 = vmatprep.subr.bf16.mxu0 0
        %2963 = vmatpush1.bf16.msra.mxu0 0
        %2964 = vmatprep.subr.bf16.mxu0 0
        %2965 = vmatpush1.bf16.msra.mxu0 0
        %2966 = vmatprep.subr.bf16.mxu0 0
        %2967 = vmatpush1.bf16.msra.mxu0 0
        %2968 = vmatprep.subr.bf16.mxu0 0
        %2969 = vmatpush1.bf16.msra.mxu0 0
        %2970 = vmatprep.subr.bf16.mxu0 0
        %2971 = vmatpush1.bf16.msra.mxu0 0
        %2972 = vmatprep.subr.bf16.mxu0 0
        %2973 = vmatpush1.bf16.msra.mxu0 0
        %2974 = vmatprep.mubr.bf16.mxu0 0
        %2975 = vmatmul.mubr.bf16.gmra.mrb[0].mxu0 %v2941
        %v2976 = vpop.f32.mrb[0].mxu0
        %v2977 = vadd.f32 0.0, %v2976
        %v2978 = vpop.f32.mrb[0].mxu0
        %v2979 = vadd.f32 0.0, %v2978
        %v2980 = vpop.f32.mrb[0].mxu0
        %v2981 = vadd.f32 0.0, %v2980
        %v2982 = vpop.f32.mrb[0].mxu0
        %v2983 = vadd.f32 0.0, %v2982
        %2984 = vdwg.mxu0
        %v2985 = vmul.f32 %v2977, %v1934
        %v2986 = vmul.f32 %v2979, %v1936
        %v2987 = vmul.f32 %v2981, %v1938
        %v2988 = vmul.f32 %v2983, %v1940
        %v2989 = vadd.f32 %v2935, %v2985
        %v2990 = vadd.f32 %v2936, %v2986
        %v2991 = vadd.f32 %v2937, %v2987
        %v2992 = vadd.f32 %v2938, %v2988
        %v2993 = vmul.f32 %v2778, %v2786
        %v2994 = vmul.f32 %v2780, %v2788
        %v2995 = vpack.c.bf16 %v2994, %v2993
        %2996 = vmatprep.subr.bf16.mxu0 %v2857
        %2997 = vmatpush1.bf16.msra.mxu0 %v2856
        %2998 = vmatprep.subr.bf16.mxu0 %v2859
        %2999 = vmatpush1.bf16.msra.mxu0 %v2858
        %3000 = vmatprep.subr.bf16.mxu0 %v2861
        %3001 = vmatpush1.bf16.msra.mxu0 %v2860
        %3002 = vmatprep.subr.bf16.mxu0 %v2863
        %3003 = vmatpush1.bf16.msra.mxu0 %v2862
        %3004 = vmatprep.subr.bf16.mxu0 %v2865
        %3005 = vmatpush1.bf16.msra.mxu0 %v2864
        %3006 = vmatprep.subr.bf16.mxu0 %v2867
        %3007 = vmatpush1.bf16.msra.mxu0 %v2866
        %3008 = vmatprep.subr.bf16.mxu0 %v2869
        %3009 = vmatpush1.bf16.msra.mxu0 %v2868
        %3010 = vmatprep.subr.bf16.mxu0 %v2871
        %3011 = vmatpush1.bf16.msra.mxu0 %v2870
        %3012 = vmatprep.subr.bf16.mxu0 0
        %3013 = vmatpush1.bf16.msra.mxu0 0
        %3014 = vmatprep.subr.bf16.mxu0 0
        %3015 = vmatpush1.bf16.msra.mxu0 0
        %3016 = vmatprep.subr.bf16.mxu0 0
        %3017 = vmatpush1.bf16.msra.mxu0 0
        %3018 = vmatprep.subr.bf16.mxu0 0
        %3019 = vmatpush1.bf16.msra.mxu0 0
        %3020 = vmatprep.subr.bf16.mxu0 0
        %3021 = vmatpush1.bf16.msra.mxu0 0
        %3022 = vmatprep.subr.bf16.mxu0 0
        %3023 = vmatpush1.bf16.msra.mxu0 0
        %3024 = vmatprep.subr.bf16.mxu0 0
        %3025 = vmatpush1.bf16.msra.mxu0 0
        %3026 = vmatprep.subr.bf16.mxu0 0
        %3027 = vmatpush1.bf16.msra.mxu0 0
        %3028 = vmatprep.mubr.bf16.mxu0 0
        %3029 = vmatmul.mubr.bf16.gmra.mrb[0].mxu0 %v2995
        %v3030 = vpop.f32.mrb[0].mxu0
        %v3031 = vadd.f32 0.0, %v3030
        %v3032 = vpop.f32.mrb[0].mxu0
        %v3033 = vadd.f32 0.0, %v3032
        %v3034 = vpop.f32.mrb[0].mxu0
        %v3035 = vadd.f32 0.0, %v3034
        %v3036 = vpop.f32.mrb[0].mxu0
        %v3037 = vadd.f32 0.0, %v3036
        %3038 = vdwg.mxu0
        %v3039 = vmul.f32 %v3031, %v1944
        %v3040 = vmul.f32 %v3033, %v1946
        %v3041 = vmul.f32 %v3035, %v1948
        %v3042 = vmul.f32 %v3037, %v1950
        %v3043 = vadd.f32 %v2989, %v3039
        %v3044 = vadd.f32 %v2990, %v3040
        %v3045 = vadd.f32 %v2991, %v3041
        %v3046 = vadd.f32 %v2992, %v3042
        %v3047 = vpack.c.bf16 %v3045, %v3043
        %v3048 = vpack.c.bf16 %v3046, %v3044
        %v3049 = vld [vmem:[#allocation15] sm:$0xff]
        %v3050 = vld [vmem:[#allocation15 + $0x8] sm:$0xff]
        %v3051 = vld [vmem:[#allocation15 + $0x10] sm:$0xff]
        %v3052 = vld [vmem:[#allocation15 + $0x18] sm:$0xff]
        %v3053 = vld [vmem:[#allocation15 + $0x20] sm:$0xff]
        %v3054 = vld [vmem:[#allocation15 + $0x28] sm:$0xff]
        %v3055 = vld [vmem:[#allocation15 + $0x30] sm:$0xff]
        %v3056 = vld [vmem:[#allocation15 + $0x38] sm:$0xff]
        %v3057 = vld [vmem:[#allocation15 + $0x40] sm:$0xff]
        %v3058 = vld [vmem:[#allocation15 + $0x48] sm:$0xff]
        %v3059 = vld [vmem:[#allocation15 + $0x50] sm:$0xff]
        %v3060 = vld [vmem:[#allocation15 + $0x58] sm:$0xff]
        %v3061 = vld [vmem:[#allocation15 + $0x60] sm:$0xff]
        %v3062 = vld [vmem:[#allocation15 + $0x68] sm:$0xff]
        %v3063 = vld [vmem:[#allocation15 + $0x70] sm:$0xff]
        %v3064 = vld [vmem:[#allocation15 + $0x78] sm:$0xff]
        %v3065 = vld [vmem:[#allocation15 + $0x80] sm:$0xff]
        %v3066 = vld [vmem:[#allocation15 + $0x88] sm:$0xff]
        %v3067 = vld [vmem:[#allocation15 + $0x90] sm:$0xff]
        %v3068 = vld [vmem:[#allocation15 + $0x98] sm:$0xff]
        %v3069 = vld [vmem:[#allocation15 + $0xa0] sm:$0xff]
        %v3070 = vld [vmem:[#allocation15 + $0xa8] sm:$0xff]
        %v3071 = vld [vmem:[#allocation15 + $0xb0] sm:$0xff]
        %v3072 = vld [vmem:[#allocation15 + $0xb8] sm:$0xff]
        %v3073 = vld [vmem:[#allocation15 + $0xc0] sm:$0xff]
        %v3074 = vld [vmem:[#allocation15 + $0xc8] sm:$0xff]
        %v3075 = vld [vmem:[#allocation15 + $0xd0] sm:$0xff]
        %v3076 = vld [vmem:[#allocation15 + $0xd8] sm:$0xff]
        %v3077 = vld [vmem:[#allocation15 + $0xe0] sm:$0xff]
        %v3078 = vld [vmem:[#allocation15 + $0xe8] sm:$0xff]
        %v3079 = vld [vmem:[#allocation15 + $0xf0] sm:$0xff]
        %v3080 = vld [vmem:[#allocation15 + $0xf8] sm:$0xff]
        %v3081 = vld [vmem:[%s12] sm:$0x3]
        %v3083 = vlaneseq
        %v3084 = vshrl.u32 %v3083, 7
        %v3085 = vsub.s32 0, %v3084
        %v3086 = vrot.slane %v3081, %v3085
        %v3087 = vlaneseq
        %v3088 = vshrl.u32 %v3087, 7
        %v3089 = vsub.s32 1, %v3088
        %v3090 = vrot.slane %v3081, %v3089
        %v3125 = vunpack.c.l.b16 %v3049
        %v3126 = vunpack.c.h.b16 %v3049
        %v3127 = vunpack.c.l.b16 %v3050
        %v3128 = vunpack.c.h.b16 %v3050
        %v3129 = vunpack.c.l.b16 %v3051
        %v3130 = vunpack.c.h.b16 %v3051
        %v3131 = vunpack.c.l.b16 %v3052
        %v3132 = vunpack.c.h.b16 %v3052
        %v3133 = vunpack.c.l.b16 %v3053
        %v3134 = vunpack.c.h.b16 %v3053
        %v3135 = vunpack.c.l.b16 %v3054
        %v3136 = vunpack.c.h.b16 %v3054
        %v3137 = vunpack.c.l.b16 %v3055
        %v3138 = vunpack.c.h.b16 %v3055
        %v3139 = vunpack.c.l.b16 %v3056
        %v3140 = vunpack.c.h.b16 %v3056
        %v3141 = vunpack.c.l.b16 %v3057
        %v3142 = vunpack.c.h.b16 %v3057
        %v3143 = vunpack.c.l.b16 %v3058
        %v3144 = vunpack.c.h.b16 %v3058
        %v3145 = vunpack.c.l.b16 %v3059
        %v3146 = vunpack.c.h.b16 %v3059
        %v3147 = vunpack.c.l.b16 %v3060
        %v3148 = vunpack.c.h.b16 %v3060
        %v3149 = vunpack.c.l.b16 %v3061
        %v3150 = vunpack.c.h.b16 %v3061
        %v3151 = vunpack.c.l.b16 %v3062
        %v3152 = vunpack.c.h.b16 %v3062
        %v3153 = vunpack.c.l.b16 %v3063
        %v3154 = vunpack.c.h.b16 %v3063
        %v3155 = vunpack.c.l.b16 %v3064
        %v3156 = vunpack.c.h.b16 %v3064
        %v3157 = vunpack.c.l.b16 %v3065
        %v3158 = vunpack.c.h.b16 %v3065
        %v3159 = vunpack.c.l.b16 %v3066
        %v3160 = vunpack.c.h.b16 %v3066
        %v3161 = vunpack.c.l.b16 %v3067
        %v3162 = vunpack.c.h.b16 %v3067
        %v3163 = vunpack.c.l.b16 %v3068
        %v3164 = vunpack.c.h.b16 %v3068
        %v3165 = vunpack.c.l.b16 %v3069
        %v3166 = vunpack.c.h.b16 %v3069
        %v3167 = vunpack.c.l.b16 %v3070
        %v3168 = vunpack.c.h.b16 %v3070
        %v3169 = vunpack.c.l.b16 %v3071
        %v3170 = vunpack.c.h.b16 %v3071
        %v3171 = vunpack.c.l.b16 %v3072
        %v3172 = vunpack.c.h.b16 %v3072
        %v3173 = vunpack.c.l.b16 %v3073
        %v3174 = vunpack.c.h.b16 %v3073
        %v3175 = vunpack.c.l.b16 %v3074
        %v3176 = vunpack.c.h.b16 %v3074
        %v3177 = vunpack.c.l.b16 %v3075
        %v3178 = vunpack.c.h.b16 %v3075
        %v3179 = vunpack.c.l.b16 %v3076
        %v3180 = vunpack.c.h.b16 %v3076
        %v3181 = vunpack.c.l.b16 %v3077
        %v3182 = vunpack.c.h.b16 %v3077
        %v3183 = vunpack.c.l.b16 %v3078
        %v3184 = vunpack.c.h.b16 %v3078
        %v3185 = vunpack.c.l.b16 %v3079
        %v3186 = vunpack.c.h.b16 %v3079
        %v3187 = vunpack.c.l.b16 %v3080
        %v3188 = vunpack.c.h.b16 %v3080
        %v3189 = vpack.c.b16 %v3127, %v3125
        %v3190 = vpack.c.b16 %v3128, %v3126
        %v3191 = vpack.c.b16 %v3131, %v3129
        %v3192 = vpack.c.b16 %v3132, %v3130
        %v3193 = vpack.c.b16 %v3135, %v3133
        %v3194 = vpack.c.b16 %v3136, %v3134
        %v3195 = vpack.c.b16 %v3139, %v3137
        %v3196 = vpack.c.b16 %v3140, %v3138
        %v3197 = vpack.c.b16 %v3143, %v3141
        %v3198 = vpack.c.b16 %v3144, %v3142
        %v3199 = vpack.c.b16 %v3147, %v3145
        %v3200 = vpack.c.b16 %v3148, %v3146
        %v3201 = vpack.c.b16 %v3151, %v3149
        %v3202 = vpack.c.b16 %v3152, %v3150
        %v3203 = vpack.c.b16 %v3155, %v3153
        %v3204 = vpack.c.b16 %v3156, %v3154
        %v3205 = vpack.c.b16 %v3159, %v3157
        %v3206 = vpack.c.b16 %v3160, %v3158
        %v3207 = vpack.c.b16 %v3163, %v3161
        %v3208 = vpack.c.b16 %v3164, %v3162
        %v3209 = vpack.c.b16 %v3167, %v3165
        %v3210 = vpack.c.b16 %v3168, %v3166
        %v3211 = vpack.c.b16 %v3171, %v3169
        %v3212 = vpack.c.b16 %v3172, %v3170
        %v3213 = vpack.c.b16 %v3175, %v3173
        %v3214 = vpack.c.b16 %v3176, %v3174
        %v3215 = vpack.c.b16 %v3179, %v3177
        %v3216 = vpack.c.b16 %v3180, %v3178
        %v3217 = vpack.c.b16 %v3183, %v3181
        %v3218 = vpack.c.b16 %v3184, %v3182
        %v3219 = vpack.c.b16 %v3187, %v3185
        %v3220 = vpack.c.b16 %v3188, %v3186
        %3253 = vmatprep.subr.bf16.mxu0 %v3190
        %3254 = vmatpush1.bf16.msra.mxu0 %v3189
        %3255 = vmatprep.subr.bf16.mxu0 %v3192
        %3256 = vmatpush1.bf16.msra.mxu0 %v3191
        %3257 = vmatprep.subr.bf16.mxu0 %v3194
        %3258 = vmatpush1.bf16.msra.mxu0 %v3193
        %3259 = vmatprep.subr.bf16.mxu0 %v3196
        %3260 = vmatpush1.bf16.msra.mxu0 %v3195
        %3261 = vmatprep.subr.bf16.mxu0 %v3198
        %3262 = vmatpush1.bf16.msra.mxu0 %v3197
        %3263 = vmatprep.subr.bf16.mxu0 %v3200
        %3264 = vmatpush1.bf16.msra.mxu0 %v3199
        %3265 = vmatprep.subr.bf16.mxu0 %v3202
        %3266 = vmatpush1.bf16.msra.mxu0 %v3201
        %3267 = vmatprep.subr.bf16.mxu0 %v3204
        %3268 = vmatpush1.bf16.msra.mxu0 %v3203
        %3269 = vmatprep.subr.bf16.mxu0 %v3206
        %3270 = vmatpush1.bf16.msra.mxu0 %v3205
        %3271 = vmatprep.subr.bf16.mxu0 %v3208
        %3272 = vmatpush1.bf16.msra.mxu0 %v3207
        %3273 = vmatprep.subr.bf16.mxu0 %v3210
        %3274 = vmatpush1.bf16.msra.mxu0 %v3209
        %3275 = vmatprep.subr.bf16.mxu0 %v3212
        %3276 = vmatpush1.bf16.msra.mxu0 %v3211
        %3277 = vmatprep.subr.bf16.mxu0 %v3214
        %3278 = vmatpush1.bf16.msra.mxu0 %v3213
        %3279 = vmatprep.subr.bf16.mxu0 %v3216
        %3280 = vmatpush1.bf16.msra.mxu0 %v3215
        %3281 = vmatprep.subr.bf16.mxu0 %v3218
        %3282 = vmatpush1.bf16.msra.mxu0 %v3217
        %3283 = vmatprep.subr.bf16.mxu0 %v3220
        %3284 = vmatpush1.bf16.msra.mxu0 %v3219
        %3285 = vmatprep.mubr.bf16.mxu0 %v3048
        %3286 = vmatmul.mubr.bf16.gmra.mrb[0].mxu0 %v3047
        %v3287 = vpop.f32.mrb[0].mxu0
        %v3288 = vadd.f32 %v3086, %v3287
        %v3289 = vpop.f32.mrb[0].mxu0
        %v3290 = vadd.f32 %v3090, %v3289
        %v3291 = vpop.f32.mrb[0].mxu0
        %v3292 = vadd.f32 %v3086, %v3291
        %v3293 = vpop.f32.mrb[0].mxu0
        %v3294 = vadd.f32 %v3090, %v3293
        %3295 = vdwg.mxu0
        %v3296 = vpack.c.bf16 %v3292, %v3288
        %v3297 = vpack.c.bf16 %v3294, %v3290
        %v3298 = vld [vmem:[#allocation17] sm:$0xf]
        %v3299 = vld [vmem:[#allocation17 + $0x4] sm:$0xf]
        %v3300 = vld [vmem:[#allocation17 + $0x8] sm:$0xf]
        %v3301 = vld [vmem:[#allocation17 + $0xc] sm:$0xf]
        %v3302 = vld [vmem:[#allocation17 + $0x10] sm:$0xf]
        %v3303 = vld [vmem:[#allocation17 + $0x14] sm:$0xf]
        %v3304 = vld [vmem:[#allocation17 + $0x18] sm:$0xf]
        %v3305 = vld [vmem:[#allocation17 + $0x1c] sm:$0xf]
        %v3306 = vld [vmem:[#allocation17 + $0x20] sm:$0xf]
        %v3307 = vld [vmem:[#allocation17 + $0x24] sm:$0xf]
        %v3308 = vld [vmem:[#allocation17 + $0x28] sm:$0xf]
        %v3309 = vld [vmem:[#allocation17 + $0x2c] sm:$0xf]
        %v3310 = vld [vmem:[#allocation17 + $0x30] sm:$0xf]
        %v3311 = vld [vmem:[#allocation17 + $0x34] sm:$0xf]
        %v3312 = vld [vmem:[#allocation17 + $0x38] sm:$0xf]
        %v3313 = vld [vmem:[#allocation17 + $0x3c] sm:$0xf]
        %v3314 = vld [vmem:[#allocation17 + $0x40] sm:$0xf]
        %v3315 = vld [vmem:[#allocation17 + $0x44] sm:$0xf]
        %v3316 = vld [vmem:[#allocation17 + $0x48] sm:$0xf]
        %v3317 = vld [vmem:[#allocation17 + $0x4c] sm:$0xf]
        %v3318 = vld [vmem:[#allocation17 + $0x50] sm:$0xf]
        %v3319 = vld [vmem:[#allocation17 + $0x54] sm:$0xf]
        %v3320 = vld [vmem:[#allocation17 + $0x58] sm:$0xf]
        %v3321 = vld [vmem:[#allocation17 + $0x5c] sm:$0xf]
        %v3322 = vld [vmem:[#allocation17 + $0x60] sm:$0xf]
        %v3323 = vld [vmem:[#allocation17 + $0x64] sm:$0xf]
        %v3324 = vld [vmem:[#allocation17 + $0x68] sm:$0xf]
        %v3325 = vld [vmem:[#allocation17 + $0x6c] sm:$0xf]
        %v3326 = vld [vmem:[#allocation17 + $0x70] sm:$0xf]
        %v3327 = vld [vmem:[#allocation17 + $0x74] sm:$0xf]
        %v3328 = vld [vmem:[#allocation17 + $0x78] sm:$0xf]
        %v3329 = vld [vmem:[#allocation17 + $0x7c] sm:$0xf]
        %v3330 = vld [vmem:[%s13] sm:$0x1]
        %v3332 = vlaneseq
        %v3333 = vshrl.u32 %v3332, 7
        %v3334 = vsub.s32 0, %v3333
        %v3335 = vrot.slane %v3330, %v3334
        %v3369 = vunpack.c.l.b16 %v3298
        %v3370 = vunpack.c.l.b16 %v3299
        %v3371 = vunpack.c.l.b16 %v3300
        %v3372 = vunpack.c.l.b16 %v3301
        %v3373 = vunpack.c.l.b16 %v3302
        %v3374 = vunpack.c.l.b16 %v3303
        %v3375 = vunpack.c.l.b16 %v3304
        %v3376 = vunpack.c.l.b16 %v3305
        %v3377 = vunpack.c.l.b16 %v3306
        %v3378 = vunpack.c.l.b16 %v3307
        %v3379 = vunpack.c.l.b16 %v3308
        %v3380 = vunpack.c.l.b16 %v3309
        %v3381 = vunpack.c.l.b16 %v3310
        %v3382 = vunpack.c.l.b16 %v3311
        %v3383 = vunpack.c.l.b16 %v3312
        %v3384 = vunpack.c.l.b16 %v3313
        %v3385 = vunpack.c.l.b16 %v3314
        %v3386 = vunpack.c.l.b16 %v3315
        %v3387 = vunpack.c.l.b16 %v3316
        %v3388 = vunpack.c.l.b16 %v3317
        %v3389 = vunpack.c.l.b16 %v3318
        %v3390 = vunpack.c.l.b16 %v3319
        %v3391 = vunpack.c.l.b16 %v3320
        %v3392 = vunpack.c.l.b16 %v3321
        %v3393 = vunpack.c.l.b16 %v3322
        %v3394 = vunpack.c.l.b16 %v3323
        %v3395 = vunpack.c.l.b16 %v3324
        %v3396 = vunpack.c.l.b16 %v3325
        %v3397 = vunpack.c.l.b16 %v3326
        %v3398 = vunpack.c.l.b16 %v3327
        %v3399 = vunpack.c.l.b16 %v3328
        %v3400 = vunpack.c.l.b16 %v3329
        %v3401 = vpack.c.b16 %v3370, %v3369
        %v3402 = vpack.c.b16 %v3372, %v3371
        %v3403 = vpack.c.b16 %v3374, %v3373
        %v3404 = vpack.c.b16 %v3376, %v3375
        %v3405 = vpack.c.b16 %v3378, %v3377
        %v3406 = vpack.c.b16 %v3380, %v3379
        %v3407 = vpack.c.b16 %v3382, %v3381
        %v3408 = vpack.c.b16 %v3384, %v3383
        %v3409 = vpack.c.b16 %v3386, %v3385
        %v3410 = vpack.c.b16 %v3388, %v3387
        %v3411 = vpack.c.b16 %v3390, %v3389
        %v3412 = vpack.c.b16 %v3392, %v3391
        %v3413 = vpack.c.b16 %v3394, %v3393
        %v3414 = vpack.c.b16 %v3396, %v3395
        %v3415 = vpack.c.b16 %v3398, %v3397
        %v3416 = vpack.c.b16 %v3400, %v3399
        %3433 = vmatprep.subr.bf16.mxu0 0
        %3434 = vmatpush1.bf16.msra.mxu0 %v3401
        %3435 = vmatprep.subr.bf16.mxu0 0
        %3436 = vmatpush1.bf16.msra.mxu0 %v3402
        %3437 = vmatprep.subr.bf16.mxu0 0
        %3438 = vmatpush1.bf16.msra.mxu0 %v3403
        %3439 = vmatprep.subr.bf16.mxu0 0
        %3440 = vmatpush1.bf16.msra.mxu0 %v3404
        %3441 = vmatprep.subr.bf16.mxu0 0
        %3442 = vmatpush1.bf16.msra.mxu0 %v3405
        %3443 = vmatprep.subr.bf16.mxu0 0
        %3444 = vmatpush1.bf16.msra.mxu0 %v3406
        %3445 = vmatprep.subr.bf16.mxu0 0
        %3446 = vmatpush1.bf16.msra.mxu0 %v3407
        %3447 = vmatprep.subr.bf16.mxu0 0
        %3448 = vmatpush1.bf16.msra.mxu0 %v3408
        %3449 = vmatprep.subr.bf16.mxu0 0
        %3450 = vmatpush1.bf16.msra.mxu0 %v3409
        %3451 = vmatprep.subr.bf16.mxu0 0
        %3452 = vmatpush1.bf16.msra.mxu0 %v3410
        %3453 = vmatprep.subr.bf16.mxu0 0
        %3454 = vmatpush1.bf16.msra.mxu0 %v3411
        %3455 = vmatprep.subr.bf16.mxu0 0
        %3456 = vmatpush1.bf16.msra.mxu0 %v3412
        %3457 = vmatprep.subr.bf16.mxu0 0
        %3458 = vmatpush1.bf16.msra.mxu0 %v3413
        %3459 = vmatprep.subr.bf16.mxu0 0
        %3460 = vmatpush1.bf16.msra.mxu0 %v3414
        %3461 = vmatprep.subr.bf16.mxu0 0
        %3462 = vmatpush1.bf16.msra.mxu0 %v3415
        %3463 = vmatprep.subr.bf16.mxu0 0
        %3464 = vmatpush1.bf16.msra.mxu0 %v3416
        %3465 = vmatprep.mubr.bf16.mxu0 %v3297
        %3466 = vmatmul.mubr.bf16.gmra.mrb[0].mxu0 %v3296
        %v3467 = vpop.f32.mrb[0].mxu0
        %v3468 = vadd.f32 %v3335, %v3467
        %v3469 = vpop.f32.mrb[0].mxu0
        %v3470 = vpop.f32.mrb[0].mxu0
        %v3471 = vadd.f32 %v3335, %v3470
        %v3472 = vpop.f32.mrb[0].mxu0
        %3473 = vdwg.mxu0
        %3474 = vst [vmem:[%s678] sm:$0xff] %v3468
        %3475 = vst [vmem:[%s678 + $0x8] sm:$0xff] %v3471
        %s3476 = sand.u32 %s355, 1
        %s3477 = scalar_lea.sflag [#allocation5], %s3476
        %s3478 = sand.u32 %s355, 1
        %s3479 = smul.addr %s3478, 16
        %s3480 = scalar_lea.vmem [#allocation21], %s3479
        // Predicated region
        $region121: #{tpu_custom_call.1} parent=75 // pred_check
          %p3481 = pneg %p365
        $region122: #{tpu_custom_call.1} parent=75 // pred_check_branch
          %3483 = sbr.rel (%p3481) target = $region124
        $region123: #{tpu_custom_call.1} parent=75 // pred_region
          %s3484 = smul.u32 2, %s38
          %s3486 = ssub.s32 256, 256
          %3487 = vsyncadd %s3477, %s3486
          %s3488 = smul.addr %s3484, 128
          %s3489 = scalar_lea.hbm %s14, %s3488
          %s3490 = sshll.u32 %s3480, 4
          %s3491 = int_to_ptr.vmem [resolvable:$true] %s3490
          %3496 = dma.vmem_to_hbm [thread:$0]  %s3491, 256, %s3489, %s3477, 128, 128, 8
        $region124: #{tpu_custom_call.1} parent=75 // pred_fallthru
          _
      $region76: #{tpu_custom_call.1} parent=5 // pred_fallthru
        _
      %p3497 = scmp.le.s32.totalorder 2, %s33
      // Predicated region
      $region125: #{tpu_custom_call.1} parent=5 // pred_check
        %p3498 = pneg %p3497
      $region126: #{tpu_custom_call.1} parent=5 // pred_check_branch
        %3500 = sbr.rel (%p3498) target = $region128
      $region127: #{tpu_custom_call.1} parent=5 // pred_region
        %s3501 = ssub.s32 %s33, 2
        // Predicated region
        $region129: #{tpu_custom_call.1} parent=127 // pred_check
          %p3502 = pneg %p371
        $region130: #{tpu_custom_call.1} parent=127 // pred_check_branch
          %3504 = sbr.rel (%p3502) target = $region132
        $region131: #{tpu_custom_call.1} parent=127 // pred_region
          %s3505 = sand.u32 %s356, 1
          %s3506 = scalar_lea.sflag [#allocation5], %s3505
          %s3507 = sand.u32 %s356, 1
          %s3508 = smul.addr %s3507, 16
          %s3509 = scalar_lea.vmem [#allocation21], %s3508
          %3510 = dma.done %s3506, 256
        $region132: #{tpu_custom_call.1} parent=127 // pred_fallthru
          _
      $region128: #{tpu_custom_call.1} parent=5 // pred_fallthru
        _
    $region6: #{tpu_custom_call.1} parent=1 // loop_footer
      %s37 = sadd.s32 1, %s33
    $region7: #{tpu_custom_call.1} parent=1 // loop_footer_branch
      %32 = sbr.rel target = $region3
    $region8: #{tpu_custom_call.1} parent=1 // loop_exit
      _
    %3511 = vsyncpa [#allocation4], 1
    %s3512 = scalar_lea.sflag [#allocation4], 1
    %3513 = vsyncpa %s3512, 1
    %3514 = vsyncpa [#allocation7], 1
    %s3515 = scalar_lea.sflag [#allocation7], 1
    %3516 = vsyncpa %s3515, 1
    %3517 = vsyncpa [#allocation10], 1
    %3518 = vsyncpa [#allocation13], 1
    %3519 = vsyncpa [#allocation16], 1
    %3520 = vsyncpa [#allocation19], 1
    %3521 = vsyncpa [#allocation5], 1
    %s3522 = scalar_lea.sflag [#allocation5], 1
    %3523 = vsyncpa %s3522, 1

</llo_original>
